<compile_context>
chip_gen: v6e
topology: v6e:2x2x1
jax: 0.10.0
libtpu: 0.0.40
codegen_flags: <defaults>
</compile_context>

<pallas_src>
import functools
import math

import jax
import jax.numpy as jnp
from jax.experimental import pallas as pl
from jax.experimental.pallas import tpu as pltpu


# ----------------------------- config -------------------------------------
class Config:
    side_len = 16            # L (must be even for the checkerboard fft folding)
    pixel_size = 1.0         # Angstrom / pixel
    kv = 300.0               # acceleration voltage (kV)
    cs = 2.7                 # spherical aberration (mm)
    amplitude_contrast = 0.1
    b_factor = 0.0
    noise_sigma = 0.01
    input_volume_path = ""   # empty -> deterministic cube volume (as in init_volume)


def electron_wavelength_angstrom(kv):
    v = kv * 1.0e3
    return 12.2639 / math.sqrt(v + 0.97845e-6 * v * v)


# --------------------- deterministic parameter init -----------------------
def init_cube(side_len):
    """Synthetic volume: unit cube of side L/2 centered in an L^3 grid."""
    L = side_len
    vol = jnp.zeros((L, L, L), jnp.float32)
    c, half = L // 2, L // 4
    vol = vol.at[c - half:c + half, c - half:c + half, c - half:c + half].set(1.0)
    return vol


def make_vol_coords(L):
    """Normalized [-1, 1] sampling grid, flattened to [L^3, 3] (y, x, z order,
    matching the PyTorch Projector's torch.stack([y, x, z], dim=-1))."""
    lin = jnp.linspace(-1.0, 1.0, L)
    X, Y, Z = jnp.meshgrid(lin, lin, lin, indexing="ij")
    return jnp.stack([Y, X, Z], axis=-1).reshape(-1, 3).astype(jnp.float32)


def make_freq_grids(L, pixel_size):
    freq_pix = jnp.fft.fftshift(jnp.fft.fftfreq(L))                 # cycles/pixel (shift)
    freq_ang = jnp.fft.fftshift(jnp.fft.fftfreq(L, d=pixel_size))   # 1/Angstrom (CTF)
    fy, fx = jnp.meshgrid(freq_pix, freq_pix, indexing="ij")
    my, mx = jnp.meshgrid(freq_ang, freq_ang, indexing="ij")
    r2 = mx * mx + my * my
    ang = jnp.arctan2(my, mx)
    return (r2.astype(jnp.float32), ang.astype(jnp.float32),
            fx.astype(jnp.float32), fy.astype(jnp.float32))


def make_checkerboard(L):
    """C[i, j] = (-1)^(i+j); for even L, fftshift(fft2(ifftshift(x))) == C*fft2(C*x)."""
    i = jnp.arange(L)
    cb = jnp.where(((i[:, None] + i[None, :]) % 2) == 0, 1.0, -1.0)
    return cb.astype(jnp.float32)


# ------------------------- shared in-kernel helper -------------------------
def _rotated_voxel_coords(rot_ref, coords_ref, b, L):
    """Rotate the constant [-1,1] grid with image b's 3x3 matrix read as SMEM
    scalars (scalar*vector FMAs) and convert to continuous voxel coordinates."""
    c0 = coords_ref[0:1, :]   # Y component of the sampling grid   [1, L^3]
    c1 = coords_ref[1:2, :]   # X component
    c2 = coords_ref[2:3, :]   # Z component
    r = [rot_ref[b, k] for k in range(9)]        # R[b, k, j] = r[3*k + j]
    gx = c0 * r[0] + c1 * r[3] + c2 * r[6]       # grid_sample x -> vol W axis
    gy = c0 * r[1] + c1 * r[4] + c2 * r[7]       # grid_sample y -> vol H axis
    gz = c0 * r[2] + c1 * r[5] + c2 * r[8]       # grid_sample z -> vol D axis
    s = 0.5 * (L - 1)
    return (gx + 1.0) * s, (gy + 1.0) * s, (gz + 1.0) * s


# ------------------ Pallas kernel 1: rotation + corner indices -------------
def _projector_prep_kernel(rot_ref, coords_ref, idx_ref, *, L, B):
    # rot_ref:    SMEM [B, 9]      rotation matrices (row-major)
    # coords_ref: VMEM [3, L^3]    constant sampling grid (Y, X, Z rows)
    # idx_ref:    VMEM [B*8, L^3]  int32 flat corner indices (clamped in-range);
    #             row = b*8 + c with c enumerated in (dz, dy, dx) order.
    for b in range(B):
        ix, iy, iz = _rotated_voxel_coords(rot_ref, coords_ref, b, L)
        x0 = jnp.floor(ix)
        y0 = jnp.floor(iy)
        z0 = jnp.floor(iz)

        def clamped(v):
            return jnp.clip(v, 0.0, float(L - 1)).astype(jnp.int32)

        xi = (clamped(x0), clamped(x0 + 1.0))
        yi = (clamped(y0), clamped(y0 + 1.0))
        zi = (clamped(z0), clamped(z0 + 1.0))
        c = 0
        for dz in range(2):
            for dy in range(2):
                for dx in range(2):
                    flat = zi[dz] * (L * L) + yi[dy] * L + xi[dx]      # [1, L^3] i32
                    idx_ref[pl.ds(b * 8 + c, 1), :] = flat
                    c += 1


# ---- Pallas kernel 2: weights + corner-sum + z-projection + checkerboard ----
def _projector_finish_kernel(rot_ref, coords_ref, gath_ref, cb_ref, out_ref, *, L, B):
    # rot_ref:    SMEM [B, 9]       (weights recomputed here: no HBM round-trip)
    # coords_ref: VMEM [3, L^3]
    # gath_ref:   VMEM [B*8, L^3]   gathered corner voxel values (same row order as k1)
    # cb_ref:     VMEM [1, L*L]     (-1)^(row+col) checkerboard (pre-FFT fftshift fold)
    # out_ref:    VMEM [B, L*L]     checkerboarded projection, lane-dense
    LL = L * L
    cb = cb_ref[...]
    for b in range(B):
        ix, iy, iz = _rotated_voxel_coords(rot_ref, coords_ref, b, L)
        x0 = jnp.floor(ix)
        y0 = jnp.floor(iy)
        z0 = jnp.floor(iz)
        fx = ix - x0
        fy = iy - y0
        fz = iz - z0

        def axis_weights(v0, f):
            # grid_sample padding_mode='zeros': fold the per-axis in-bounds mask
            # into the interpolation weights (clamped indices then contribute 0).
            hi = float(L - 1)
            w0 = jnp.where((v0 >= 0.0) & (v0 <= hi), 1.0 - f, 0.0)
            w1 = jnp.where((v0 + 1.0 >= 0.0) & (v0 + 1.0 <= hi), f, 0.0)
            return (w0, w1)

        wx = axis_weights(x0, fx)
        wy = axis_weights(y0, fy)
        wz = axis_weights(z0, fz)

        interp = None
        c = 0
        for dz in range(2):
            for dy in range(2):
                for dx in range(2):
                    w = wz[dz] * wy[dy] * wx[dx]
                    term = gath_ref[pl.ds(b * 8 + c, 1), :] * w        # [1, L^3]
                    interp = term if interp is None else interp + term
                    c += 1

        # Projection over the first grid axis: unrolled add chain over lane
        # slices (all VPU, no cross-sublane XLU reduce).
        acc = interp[:, 0:LL]
        for z in range(1, L):
            acc = acc + interp[:, z * LL:(z + 1) * LL]
        out_ref[pl.ds(b, 1), :] = acc * cb


# ---------------- Pallas kernel 3: CTF * phase shift (Fourier) -------------
def _ctf_shift_kernel(par_ref, fr_ref, fi_ref, grids_ref, out_ref, *, phi0, B):
    # par_ref:  SMEM [B, 6] -> (half_sum, half_diff, cos(2*dang), sin(2*dang), s_x, s_y)
    # fr_ref/fi_ref: VMEM [B, L*L] real/imag of FFT(checkerboarded projection)
    # grids_ref: VMEM [7, L*L] -> (cos2a, sin2a, -pi*lam*r2, 0.5*pi*cs*lam^3*r2^2,
    #                              -2pi*fx, -2pi*fy, B-factor envelope)
    # out_ref:  VMEM [2*B, L*L]   single interleaved output: row 2b = re, 2b+1 = im
    cos2a = grids_ref[0:1, :]
    sin2a = grids_ref[1:2, :]
    g1 = grids_ref[2:3, :]
    g2 = grids_ref[3:4, :]
    gx = grids_ref[4:5, :]
    gy = grids_ref[5:6, :]
    env = grids_ref[6:7, :]
    for b in range(B):
        half_sum = par_ref[b, 0]
        half_diff = par_ref[b, 1]
        cos2da = par_ref[b, 2]
        sin2da = par_ref[b, 3]
        s_x = par_ref[b, 4]
        s_y = par_ref[b, 5]

        # Astigmatic defocus via angle addition: cos(2*(ang - dang)).
        defocus = half_sum + half_diff * (cos2a * cos2da + sin2a * sin2da)
        gamma = defocus * g1 + g2
        # -(sqrt(1-w^2)*sin(g) + w*cos(g)) == -sin(g + arcsin(w)) : one EUP op.
        h = -jnp.sin(gamma + phi0) * env

        # Fourier phase ramp for a real-space translation by (s_x, s_y) pixels.
        phase = s_x * gx + s_y * gy
        cp = jnp.cos(phase)
        sp = jnp.sin(phase)

        fr = fr_ref[pl.ds(b, 1), :] * h
        fi = fi_ref[pl.ds(b, 1), :] * h
        out_ref[pl.ds(2 * b, 1), :] = fr * cp - fi * sp
        out_ref[pl.ds(2 * b + 1, 1), :] = fr * sp + fi * cp


# ------------------------------- wrappers -----------------------------------
def _vmem_spec():
    return pl.BlockSpec(memory_space=pltpu.MemorySpace.VMEM)


def _smem_spec():
    return pl.BlockSpec(memory_space=pltpu.MemorySpace.SMEM)


def projector_prep(rot_flat, coords_t, *, L):
    B = rot_flat.shape[0]
    N = coords_t.shape[1]
    kernel = functools.partial(_projector_prep_kernel, L=L, B=B)
    return pl.pallas_call(
        kernel,
        out_shape=jax.ShapeDtypeStruct((B * 8, N), jnp.int32),
        in_specs=[_smem_spec(), _vmem_spec()],
        out_specs=_vmem_spec(),
    )(rot_flat, coords_t)


def projector_finish(rot_flat, coords_t, gathered, cb_row, *, L):
    B = rot_flat.shape[0]
    kernel = functools.partial(_projector_finish_kernel, L=L, B=B)
    return pl.pallas_call(
        kernel,
        out_shape=jax.ShapeDtypeStruct((B, L * L), jnp.float32),
        in_specs=[_smem_spec(), _vmem_spec(), _vmem_spec(), _vmem_spec()],
        out_specs=_vmem_spec(),
    )(rot_flat, coords_t, gathered, cb_row)


def ctf_and_shift(params, f_real, f_imag, grids, *, phi0):
    B, N = f_real.shape
    kernel = functools.partial(_ctf_shift_kernel, phi0=phi0, B=B)
    return pl.pallas_call(
        kernel,
        out_shape=jax.ShapeDtypeStruct((2 * B, N), jnp.float32),
        in_specs=[_smem_spec(), _vmem_spec(), _vmem_spec(), _vmem_spec()],
        out_specs=_vmem_spec(),
    )(params, f_real, f_imag, grids)


# --------------------------- LinearSimulator -------------------------------
class LinearSimulator:
    def __init__(self, config):
        self.config = config
        L = config.side_len
        assert L % 2 == 0, "checkerboard fftshift folding assumes even side_len"

        # init_volume(): path is empty -> deterministic cube volume.
        self.vol_flat = init_cube(L).reshape(-1)                    # [L^3]
        self.coords_t = make_vol_coords(L).T                        # [3, L^3]

        cb = make_checkerboard(L)                                   # [L, L]
        self.cb_row = cb.reshape(1, L * L)                          # pre-FFT fold (k2)
        self.cb_2d = cb                                             # post-IFFT fold (XLA)

        # Host-side precompute for the fused CTF+shift kernel: one packed
        # [7, L*L] constant-grid table with all static factors folded in.
        wavelength = electron_wavelength_angstrom(config.kv)
        cs_a = config.cs * 1.0e7                                    # mm -> Angstrom
        r2, ang, fx, fy = make_freq_grids(L, config.pixel_size)
        cos2a = jnp.cos(2.0 * ang)
        sin2a = jnp.sin(2.0 * ang)
        g1 = (-math.pi * wavelength) * r2
        g2 = (0.5 * math.pi * cs_a * wavelength ** 3) * (r2 * r2)
        gx = (-2.0 * math.pi) * fx
        gy = (-2.0 * math.pi) * fy
        if config.b_factor != 0.0:
            env = jnp.exp(-(config.b_factor / 4.0) * r2)
        else:
            env = jnp.ones_like(r2)
        self.grids = jnp.stack([cos2a, sin2a, g1, g2, gx, gy, env],
                               axis=0).reshape(7, L * L).astype(jnp.float32)
        self.phi0 = float(math.asin(config.amplitude_contrast))

    def __call__(self, rot_params, ctf_params, shift_params, noise):
        cfg = self.config
        L = cfg.side_len
        rotmat = rot_params["rotmat"].astype(jnp.float32)
        B = rotmat.shape[0]
        rot_flat = rotmat.reshape(B, 9)

        # -------- Projector: Pallas(rotate + corner indices) -> flat 1-D XLA
        #          gather -> Pallas(weights + corner & z sums + checkerboard)
        idx8 = projector_prep(rot_flat, self.coords_t, L=L)          # [B*8, L^3] i32
        gathered = jnp.take(self.vol_flat, idx8, axis=0, mode="clip")  # [B*8, L^3]
        proj = projector_finish(rot_flat, self.coords_t, gathered,
                                self.cb_row, L=L)                    # [B, L*L]

        # -------- Fourier domain: no fftshift rolls (folded into checkerboards)
        f_proj = jnp.fft.fftn(proj.reshape(B, L, L), axes=(-2, -1))  # [B, L, L] c64
        d_u = ctf_params["defocus_u"].reshape(B).astype(jnp.float32)
        d_v = ctf_params["defocus_v"].reshape(B).astype(jnp.float32)
        d_ang = ctf_params["defocus_angle"].reshape(B).astype(jnp.float32)
        s_x = shift_params["shift_x"].reshape(B).astype(jnp.float32)
        s_y = shift_params["shift_y"].reshape(B).astype(jnp.float32)
        params = jnp.stack([0.5 * (d_u + d_v), 0.5 * (d_u - d_v),
                            jnp.cos(2.0 * d_ang), jnp.sin(2.0 * d_ang),
                            s_x, s_y], axis=1).astype(jnp.float32)    # [B, 6] -> SMEM

        fr = jnp.real(f_proj).reshape(B, L * L)
        fi = jnp.imag(f_proj).reshape(B, L * L)
        out_ri = ctf_and_shift(params, fr, fi, self.grids, phi0=self.phi0)  # [2B, L*L]
        out_ri = out_ri.reshape(B, 2, L, L)
        f_filt = jax.lax.complex(out_ri[:, 0, :, :], out_ri[:, 1, :, :])

        # -------- Back to primal; post-IFFT checkerboard + noise FMA left to
        #          XLA so it fuses with the IFFT real-part extraction.
        y = jnp.fft.ifftn(f_filt, axes=(-2, -1))
        img = (jnp.real(y) * self.cb_2d).reshape(B, 1, L, L)
        img = img + jnp.float32(cfg.noise_sigma) * noise
        return img.astype(jnp.float32)


# --------------------------------- main -------------------------------------
if __name__ == "__main__":
    cfg = Config()
    B, L = 2, cfg.side_len
    sim = LinearSimulator(cfg)

    key = jax.random.PRNGKey(0)
    k_rot, k_du, k_dv, k_da, k_sx, k_sy, k_noise = jax.random.split(key, 7)

    # Deterministic proper rotation matrices via QR.
    g = jax.random.normal(k_rot, (B, 3, 3))
    q, r = jnp.linalg.qr(g)
    d = jnp.sign(jnp.diagonal(r, axis1=-2, axis2=-1))
    q = q * d[:, None, :]
    det = jnp.linalg.det(q)
    fix = jnp.concatenate([jnp.ones((B, 2)), det[:, None]], axis=1)
    q = q * fix[:, None, :]
    rot_params = {"rotmat": q.astype(jnp.float32)}

    ctf_params = {
        "defocus_u": (1.0e4 + 2.0e3 * jax.random.uniform(k_du, (B, 1, 1, 1))).astype(jnp.float32),
        "defocus_v": (1.0e4 + 2.0e3 * jax.random.uniform(k_dv, (B, 1, 1, 1))).astype(jnp.float32),
        "defocus_angle": (jnp.pi * jax.random.uniform(k_da, (B, 1, 1, 1))).astype(jnp.float32),
    }
    shift_params = {
        "shift_x": (2.0 * jax.random.normal(k_sx, (B,))).astype(jnp.float32),
        "shift_y": (2.0 * jax.random.normal(k_sy, (B,))).astype(jnp.float32),
    }
    noise = jax.random.normal(k_noise, (B, 1, L, L), dtype=jnp.float32)

    fwd = jax.jit(sim.__call__)
    out = fwd(rot_params, ctf_params, shift_params, noise)
    out = jax.block_until_ready(out)
    assert out.shape == (B, 1, L, L) and out.dtype == jnp.float32
    assert bool(jnp.all(jnp.isfinite(out)))
    print("KERNEL_OK")
</pallas_src>

<mosaic_0001>
module attributes {stable_mosaic.version = 11 : i64} {
  func.func @_projector_prep_kernel(%arg0: memref<2x9xf32, #tpu.memory_space<smem>>, %arg1: memref<3x4096xf32, #tpu.memory_space<vmem>>, %arg2: memref<16x4096xi32, #tpu.memory_space<vmem>>) attributes {dimension_semantics = [], scalar_prefetch = 0 : i64, scratch_operands = 0 : i64, tpu.core_type = #tpu.core_type<tc>} {
    %c0 = arith.constant 0 : index
    %c0_0 = arith.constant 0 : index
    %0 = vector.load %arg1[%c0, %c0_0] : memref<3x4096xf32, #tpu.memory_space<vmem>>, vector<1x4096xf32>
    %c1 = arith.constant 1 : index
    %c0_1 = arith.constant 0 : index
    %1 = vector.load %arg1[%c1, %c0_1] : memref<3x4096xf32, #tpu.memory_space<vmem>>, vector<1x4096xf32>
    %c2 = arith.constant 2 : index
    %c0_2 = arith.constant 0 : index
    %2 = vector.load %arg1[%c2, %c0_2] : memref<3x4096xf32, #tpu.memory_space<vmem>>, vector<1x4096xf32>
    %c0_3 = arith.constant 0 : index
    %c0_4 = arith.constant 0 : index
    %3 = memref.load %arg0[%c0_3, %c0_4] : memref<2x9xf32, #tpu.memory_space<smem>>
    %c0_5 = arith.constant 0 : index
    %c1_6 = arith.constant 1 : index
    %4 = memref.load %arg0[%c0_5, %c1_6] : memref<2x9xf32, #tpu.memory_space<smem>>
    %c0_7 = arith.constant 0 : index
    %c2_8 = arith.constant 2 : index
    %5 = memref.load %arg0[%c0_7, %c2_8] : memref<2x9xf32, #tpu.memory_space<smem>>
    %c0_9 = arith.constant 0 : index
    %c3 = arith.constant 3 : index
    %6 = memref.load %arg0[%c0_9, %c3] : memref<2x9xf32, #tpu.memory_space<smem>>
    %c0_10 = arith.constant 0 : index
    %c4 = arith.constant 4 : index
    %7 = memref.load %arg0[%c0_10, %c4] : memref<2x9xf32, #tpu.memory_space<smem>>
    %c0_11 = arith.constant 0 : index
    %c5 = arith.constant 5 : index
    %8 = memref.load %arg0[%c0_11, %c5] : memref<2x9xf32, #tpu.memory_space<smem>>
    %c0_12 = arith.constant 0 : index
    %c6 = arith.constant 6 : index
    %9 = memref.load %arg0[%c0_12, %c6] : memref<2x9xf32, #tpu.memory_space<smem>>
    %c0_13 = arith.constant 0 : index
    %c7 = arith.constant 7 : index
    %10 = memref.load %arg0[%c0_13, %c7] : memref<2x9xf32, #tpu.memory_space<smem>>
    %c0_14 = arith.constant 0 : index
    %c8 = arith.constant 8 : index
    %11 = memref.load %arg0[%c0_14, %c8] : memref<2x9xf32, #tpu.memory_space<smem>>
    %12 = vector.broadcast %3 : f32 to vector<1x4096xf32>
    %13 = arith.mulf %0, %12 : vector<1x4096xf32>
    %14 = vector.broadcast %6 : f32 to vector<1x4096xf32>
    %15 = arith.mulf %1, %14 : vector<1x4096xf32>
    %16 = arith.addf %13, %15 : vector<1x4096xf32>
    %17 = vector.broadcast %9 : f32 to vector<1x4096xf32>
    %18 = arith.mulf %2, %17 : vector<1x4096xf32>
    %19 = arith.addf %16, %18 : vector<1x4096xf32>
    %20 = vector.broadcast %4 : f32 to vector<1x4096xf32>
    %21 = arith.mulf %0, %20 : vector<1x4096xf32>
    %22 = vector.broadcast %7 : f32 to vector<1x4096xf32>
    %23 = arith.mulf %1, %22 : vector<1x4096xf32>
    %24 = arith.addf %21, %23 : vector<1x4096xf32>
    %25 = vector.broadcast %10 : f32 to vector<1x4096xf32>
    %26 = arith.mulf %2, %25 : vector<1x4096xf32>
    %27 = arith.addf %24, %26 : vector<1x4096xf32>
    %28 = vector.broadcast %5 : f32 to vector<1x4096xf32>
    %29 = arith.mulf %0, %28 : vector<1x4096xf32>
    %30 = vector.broadcast %8 : f32 to vector<1x4096xf32>
    %31 = arith.mulf %1, %30 : vector<1x4096xf32>
    %32 = arith.addf %29, %31 : vector<1x4096xf32>
    %33 = vector.broadcast %11 : f32 to vector<1x4096xf32>
    %34 = arith.mulf %2, %33 : vector<1x4096xf32>
    %35 = arith.addf %32, %34 : vector<1x4096xf32>
    %cst = arith.constant 1.000000e+00 : f32
    %36 = vector.broadcast %cst : f32 to vector<1x4096xf32>
    %37 = arith.addf %19, %36 : vector<1x4096xf32>
    %cst_15 = arith.constant 7.500000e+00 : f32
    %38 = vector.broadcast %cst_15 : f32 to vector<1x4096xf32>
    %39 = arith.mulf %37, %38 : vector<1x4096xf32>
    %cst_16 = arith.constant 1.000000e+00 : f32
    %40 = vector.broadcast %cst_16 : f32 to vector<1x4096xf32>
    %41 = arith.addf %27, %40 : vector<1x4096xf32>
    %cst_17 = arith.constant 7.500000e+00 : f32
    %42 = vector.broadcast %cst_17 : f32 to vector<1x4096xf32>
    %43 = arith.mulf %41, %42 : vector<1x4096xf32>
    %cst_18 = arith.constant 1.000000e+00 : f32
    %44 = vector.broadcast %cst_18 : f32 to vector<1x4096xf32>
    %45 = arith.addf %35, %44 : vector<1x4096xf32>
    %cst_19 = arith.constant 7.500000e+00 : f32
    %46 = vector.broadcast %cst_19 : f32 to vector<1x4096xf32>
    %47 = arith.mulf %45, %46 : vector<1x4096xf32>
    %48 = math.floor %39 : vector<1x4096xf32>
    %49 = math.floor %43 : vector<1x4096xf32>
    %50 = math.floor %47 : vector<1x4096xf32>
    %cst_20 = arith.constant 0.000000e+00 : f32
    %cst_21 = arith.constant 1.500000e+01 : f32
    %51 = vector.broadcast %cst_20 : f32 to vector<1x4096xf32>
    %52 = arith.maximumf %51, %48 : vector<1x4096xf32>
    %53 = vector.broadcast %cst_21 : f32 to vector<1x4096xf32>
    %54 = arith.minimumf %53, %52 : vector<1x4096xf32>
    %55 = arith.fptosi %54 : vector<1x4096xf32> to vector<1x4096xi32>
    %cst_22 = arith.constant 1.000000e+00 : f32
    %56 = vector.broadcast %cst_22 : f32 to vector<1x4096xf32>
    %57 = arith.addf %48, %56 : vector<1x4096xf32>
    %cst_23 = arith.constant 0.000000e+00 : f32
    %cst_24 = arith.constant 1.500000e+01 : f32
    %58 = vector.broadcast %cst_23 : f32 to vector<1x4096xf32>
    %59 = arith.maximumf %58, %57 : vector<1x4096xf32>
    %60 = vector.broadcast %cst_24 : f32 to vector<1x4096xf32>
    %61 = arith.minimumf %60, %59 : vector<1x4096xf32>
    %62 = arith.fptosi %61 : vector<1x4096xf32> to vector<1x4096xi32>
    %cst_25 = arith.constant 0.000000e+00 : f32
    %cst_26 = arith.constant 1.500000e+01 : f32
    %63 = vector.broadcast %cst_25 : f32 to vector<1x4096xf32>
    %64 = arith.maximumf %63, %49 : vector<1x4096xf32>
    %65 = vector.broadcast %cst_26 : f32 to vector<1x4096xf32>
    %66 = arith.minimumf %65, %64 : vector<1x4096xf32>
    %67 = arith.fptosi %66 : vector<1x4096xf32> to vector<1x4096xi32>
    %cst_27 = arith.constant 1.000000e+00 : f32
    %68 = vector.broadcast %cst_27 : f32 to vector<1x4096xf32>
    %69 = arith.addf %49, %68 : vector<1x4096xf32>
    %cst_28 = arith.constant 0.000000e+00 : f32
    %cst_29 = arith.constant 1.500000e+01 : f32
    %70 = vector.broadcast %cst_28 : f32 to vector<1x4096xf32>
    %71 = arith.maximumf %70, %69 : vector<1x4096xf32>
    %72 = vector.broadcast %cst_29 : f32 to vector<1x4096xf32>
    %73 = arith.minimumf %72, %71 : vector<1x4096xf32>
    %74 = arith.fptosi %73 : vector<1x4096xf32> to vector<1x4096xi32>
    %cst_30 = arith.constant 0.000000e+00 : f32
    %cst_31 = arith.constant 1.500000e+01 : f32
    %75 = vector.broadcast %cst_30 : f32 to vector<1x4096xf32>
    %76 = arith.maximumf %75, %50 : vector<1x4096xf32>
    %77 = vector.broadcast %cst_31 : f32 to vector<1x4096xf32>
    %78 = arith.minimumf %77, %76 : vector<1x4096xf32>
    %79 = arith.fptosi %78 : vector<1x4096xf32> to vector<1x4096xi32>
    %cst_32 = arith.constant 1.000000e+00 : f32
    %80 = vector.broadcast %cst_32 : f32 to vector<1x4096xf32>
    %81 = arith.addf %50, %80 : vector<1x4096xf32>
    %cst_33 = arith.constant 0.000000e+00 : f32
    %cst_34 = arith.constant 1.500000e+01 : f32
    %82 = vector.broadcast %cst_33 : f32 to vector<1x4096xf32>
    %83 = arith.maximumf %82, %81 : vector<1x4096xf32>
    %84 = vector.broadcast %cst_34 : f32 to vector<1x4096xf32>
    %85 = arith.minimumf %84, %83 : vector<1x4096xf32>
    %86 = arith.fptosi %85 : vector<1x4096xf32> to vector<1x4096xi32>
    %c256_i32 = arith.constant 256 : i32
    %87 = vector.broadcast %c256_i32 : i32 to vector<1x4096xi32>
    %88 = arith.muli %79, %87 : vector<1x4096xi32>
    %c16_i32 = arith.constant 16 : i32
    %89 = vector.broadcast %c16_i32 : i32 to vector<1x4096xi32>
    %90 = arith.muli %67, %89 : vector<1x4096xi32>
    %91 = arith.addi %88, %90 : vector<1x4096xi32>
    %92 = arith.addi %91, %55 : vector<1x4096xi32>
    %c0_35 = arith.constant 0 : index
    %c0_36 = arith.constant 0 : index
    %93 = vector.load %arg2[%c0_35, %c0_36] : memref<16x4096xi32, #tpu.memory_space<vmem>>, vector<1x4096xi32>
    tpu.vector_store %arg2[%c0_35, %c0_36], %92 {strides = array<i32>} : memref<16x4096xi32, #tpu.memory_space<vmem>>, vector<1x4096xi32>,
    %c256_i32_37 = arith.constant 256 : i32
    %94 = vector.broadcast %c256_i32_37 : i32 to vector<1x4096xi32>
    %95 = arith.muli %79, %94 : vector<1x4096xi32>
    %c16_i32_38 = arith.constant 16 : i32
    %96 = vector.broadcast %c16_i32_38 : i32 to vector<1x4096xi32>
    %97 = arith.muli %67, %96 : vector<1x4096xi32>
    %98 = arith.addi %95, %97 : vector<1x4096xi32>
    %99 = arith.addi %98, %62 : vector<1x4096xi32>
    %c1_39 = arith.constant 1 : index
    %c0_40 = arith.constant 0 : index
    %100 = vector.load %arg2[%c1_39, %c0_40] : memref<16x4096xi32, #tpu.memory_space<vmem>>, vector<1x4096xi32>
    tpu.vector_store %arg2[%c1_39, %c0_40], %99 {strides = array<i32>} : memref<16x4096xi32, #tpu.memory_space<vmem>>, vector<1x4096xi32>,
    %c256_i32_41 = arith.constant 256 : i32
    %101 = vector.broadcast %c256_i32_41 : i32 to vector<1x4096xi32>
    %102 = arith.muli %79, %101 : vector<1x4096xi32>
    %c16_i32_42 = arith.constant 16 : i32
    %103 = vector.broadcast %c16_i32_42 : i32 to vector<1x4096xi32>
    %104 = arith.muli %74, %103 : vector<1x4096xi32>
    %105 = arith.addi %102, %104 : vector<1x4096xi32>
    %106 = arith.addi %105, %55 : vector<1x4096xi32>
    %c2_43 = arith.constant 2 : index
    %c0_44 = arith.constant 0 : index
    %107 = vector.load %arg2[%c2_43, %c0_44] : memref<16x4096xi32, #tpu.memory_space<vmem>>, vector<1x4096xi32>
    tpu.vector_store %arg2[%c2_43, %c0_44], %106 {strides = array<i32>} : memref<16x4096xi32, #tpu.memory_space<vmem>>, vector<1x4096xi32>,
    %c256_i32_45 = arith.constant 256 : i32
    %108 = vector.broadcast %c256_i32_45 : i32 to vector<1x4096xi32>
    %109 = arith.muli %79, %108 : vector<1x4096xi32>
    %c16_i32_46 = arith.constant 16 : i32
    %110 = vector.broadcast %c16_i32_46 : i32 to vector<1x4096xi32>
    %111 = arith.muli %74, %110 : vector<1x4096xi32>
    %112 = arith.addi %109, %111 : vector<1x4096xi32>
    %113 = arith.addi %112, %62 : vector<1x4096xi32>
    %c3_47 = arith.constant 3 : index
    %c0_48 = arith.constant 0 : index
    %114 = vector.load %arg2[%c3_47, %c0_48] : memref<16x4096xi32, #tpu.memory_space<vmem>>, vector<1x4096xi32>
    tpu.vector_store %arg2[%c3_47, %c0_48], %113 {strides = array<i32>} : memref<16x4096xi32, #tpu.memory_space<vmem>>, vector<1x4096xi32>,
    %c256_i32_49 = arith.constant 256 : i32
    %115 = vector.broadcast %c256_i32_49 : i32 to vector<1x4096xi32>
    %116 = arith.muli %86, %115 : vector<1x4096xi32>
    %c16_i32_50 = arith.constant 16 : i32
    %117 = vector.broadcast %c16_i32_50 : i32 to vector<1x4096xi32>
    %118 = arith.muli %67, %117 : vector<1x4096xi32>
    %119 = arith.addi %116, %118 : vector<1x4096xi32>
    %120 = arith.addi %119, %55 : vector<1x4096xi32>
    %c4_51 = arith.constant 4 : index
    %c0_52 = arith.constant 0 : index
    %121 = vector.load %arg2[%c4_51, %c0_52] : memref<16x4096xi32, #tpu.memory_space<vmem>>, vector<1x4096xi32>
    tpu.vector_store %arg2[%c4_51, %c0_52], %120 {strides = array<i32>} : memref<16x4096xi32, #tpu.memory_space<vmem>>, vector<1x4096xi32>,
    %c256_i32_53 = arith.constant 256 : i32
    %122 = vector.broadcast %c256_i32_53 : i32 to vector<1x4096xi32>
    %123 = arith.muli %86, %122 : vector<1x4096xi32>
    %c16_i32_54 = arith.constant 16 : i32
    %124 = vector.broadcast %c16_i32_54 : i32 to vector<1x4096xi32>
    %125 = arith.muli %67, %124 : vector<1x4096xi32>
    %126 = arith.addi %123, %125 : vector<1x4096xi32>
    %127 = arith.addi %126, %62 : vector<1x4096xi32>
    %c5_55 = arith.constant 5 : index
    %c0_56 = arith.constant 0 : index
    %128 = vector.load %arg2[%c5_55, %c0_56] : memref<16x4096xi32, #tpu.memory_space<vmem>>, vector<1x4096xi32>
    tpu.vector_store %arg2[%c5_55, %c0_56], %127 {strides = array<i32>} : memref<16x4096xi32, #tpu.memory_space<vmem>>, vector<1x4096xi32>,
    %c256_i32_57 = arith.constant 256 : i32
    %129 = vector.broadcast %c256_i32_57 : i32 to vector<1x4096xi32>
    %130 = arith.muli %86, %129 : vector<1x4096xi32>
    %c16_i32_58 = arith.constant 16 : i32
    %131 = vector.broadcast %c16_i32_58 : i32 to vector<1x4096xi32>
    %132 = arith.muli %74, %131 : vector<1x4096xi32>
    %133 = arith.addi %130, %132 : vector<1x4096xi32>
    %134 = arith.addi %133, %55 : vector<1x4096xi32>
    %c6_59 = arith.constant 6 : index
    %c0_60 = arith.constant 0 : index
    %135 = vector.load %arg2[%c6_59, %c0_60] : memref<16x4096xi32, #tpu.memory_space<vmem>>, vector<1x4096xi32>
    tpu.vector_store %arg2[%c6_59, %c0_60], %134 {strides = array<i32>} : memref<16x4096xi32, #tpu.memory_space<vmem>>, vector<1x4096xi32>,
    %c256_i32_61 = arith.constant 256 : i32
    %136 = vector.broadcast %c256_i32_61 : i32 to vector<1x4096xi32>
    %137 = arith.muli %86, %136 : vector<1x4096xi32>
    %c16_i32_62 = arith.constant 16 : i32
    %138 = vector.broadcast %c16_i32_62 : i32 to vector<1x4096xi32>
    %139 = arith.muli %74, %138 : vector<1x4096xi32>
    %140 = arith.addi %137, %139 : vector<1x4096xi32>
    %141 = arith.addi %140, %62 : vector<1x4096xi32>
    %c7_63 = arith.constant 7 : index
    %c0_64 = arith.constant 0 : index
    %142 = vector.load %arg2[%c7_63, %c0_64] : memref<16x4096xi32, #tpu.memory_space<vmem>>, vector<1x4096xi32>
    tpu.vector_store %arg2[%c7_63, %c0_64], %141 {strides = array<i32>} : memref<16x4096xi32, #tpu.memory_space<vmem>>, vector<1x4096xi32>,
    %c0_65 = arith.constant 0 : index
    %c0_66 = arith.constant 0 : index
    %143 = vector.load %arg1[%c0_65, %c0_66] : memref<3x4096xf32, #tpu.memory_space<vmem>>, vector<1x4096xf32>
    %c1_67 = arith.constant 1 : index
    %c0_68 = arith.constant 0 : index
    %144 = vector.load %arg1[%c1_67, %c0_68] : memref<3x4096xf32, #tpu.memory_space<vmem>>, vector<1x4096xf32>
    %c2_69 = arith.constant 2 : index
    %c0_70 = arith.constant 0 : index
    %145 = vector.load %arg1[%c2_69, %c0_70] : memref<3x4096xf32, #tpu.memory_space<vmem>>, vector<1x4096xf32>
    %c1_71 = arith.constant 1 : index
    %c0_72 = arith.constant 0 : index
    %146 = memref.load %arg0[%c1_71, %c0_72] : memref<2x9xf32, #tpu.memory_space<smem>>
    %c1_73 = arith.constant 1 : index
    %c1_74 = arith.constant 1 : index
    %147 = memref.load %arg0[%c1_73, %c1_74] : memref<2x9xf32, #tpu.memory_space<smem>>
    %c1_75 = arith.constant 1 : index
    %c2_76 = arith.constant 2 : index
    %148 = memref.load %arg0[%c1_75, %c2_76] : memref<2x9xf32, #tpu.memory_space<smem>>
    %c1_77 = arith.constant 1 : index
    %c3_78 = arith.constant 3 : index
    %149 = memref.load %arg0[%c1_77, %c3_78] : memref<2x9xf32, #tpu.memory_space<smem>>
    %c1_79 = arith.constant 1 : index
    %c4_80 = arith.constant 4 : index
    %150 = memref.load %arg0[%c1_79, %c4_80] : memref<2x9xf32, #tpu.memory_space<smem>>
    %c1_81 = arith.constant 1 : index
    %c5_82 = arith.constant 5 : index
    %151 = memref.load %arg0[%c1_81, %c5_82] : memref<2x9xf32, #tpu.memory_space<smem>>
    %c1_83 = arith.constant 1 : index
    %c6_84 = arith.constant 6 : index
    %152 = memref.load %arg0[%c1_83, %c6_84] : memref<2x9xf32, #tpu.memory_space<smem>>
    %c1_85 = arith.constant 1 : index
    %c7_86 = arith.constant 7 : index
    %153 = memref.load %arg0[%c1_85, %c7_86] : memref<2x9xf32, #tpu.memory_space<smem>>
    %c1_87 = arith.constant 1 : index
    %c8_88 = arith.constant 8 : index
    %154 = memref.load %arg0[%c1_87, %c8_88] : memref<2x9xf32, #tpu.memory_space<smem>>
    %155 = vector.broadcast %146 : f32 to vector<1x4096xf32>
    %156 = arith.mulf %143, %155 : vector<1x4096xf32>
    %157 = vector.broadcast %149 : f32 to vector<1x4096xf32>
    %158 = arith.mulf %144, %157 : vector<1x4096xf32>
    %159 = arith.addf %156, %158 : vector<1x4096xf32>
    %160 = vector.broadcast %152 : f32 to vector<1x4096xf32>
    %161 = arith.mulf %145, %160 : vector<1x4096xf32>
    %162 = arith.addf %159, %161 : vector<1x4096xf32>
    %163 = vector.broadcast %147 : f32 to vector<1x4096xf32>
    %164 = arith.mulf %143, %163 : vector<1x4096xf32>
    %165 = vector.broadcast %150 : f32 to vector<1x4096xf32>
    %166 = arith.mulf %144, %165 : vector<1x4096xf32>
    %167 = arith.addf %164, %166 : vector<1x4096xf32>
    %168 = vector.broadcast %153 : f32 to vector<1x4096xf32>
    %169 = arith.mulf %145, %168 : vector<1x4096xf32>
    %170 = arith.addf %167, %169 : vector<1x4096xf32>
    %171 = vector.broadcast %148 : f32 to vector<1x4096xf32>
    %172 = arith.mulf %143, %171 : vector<1x4096xf32>
    %173 = vector.broadcast %151 : f32 to vector<1x4096xf32>
    %174 = arith.mulf %144, %173 : vector<1x4096xf32>
    %175 = arith.addf %172, %174 : vector<1x4096xf32>
    %176 = vector.broadcast %154 : f32 to vector<1x4096xf32>
    %177 = arith.mulf %145, %176 : vector<1x4096xf32>
    %178 = arith.addf %175, %177 : vector<1x4096xf32>
    %cst_89 = arith.constant 1.000000e+00 : f32
    %179 = vector.broadcast %cst_89 : f32 to vector<1x4096xf32>
    %180 = arith.addf %162, %179 : vector<1x4096xf32>
    %cst_90 = arith.constant 7.500000e+00 : f32
    %181 = vector.broadcast %cst_90 : f32 to vector<1x4096xf32>
    %182 = arith.mulf %180, %181 : vector<1x4096xf32>
    %cst_91 = arith.constant 1.000000e+00 : f32
    %183 = vector.broadcast %cst_91 : f32 to vector<1x4096xf32>
    %184 = arith.addf %170, %183 : vector<1x4096xf32>
    %cst_92 = arith.constant 7.500000e+00 : f32
    %185 = vector.broadcast %cst_92 : f32 to vector<1x4096xf32>
    %186 = arith.mulf %184, %185 : vector<1x4096xf32>
    %cst_93 = arith.constant 1.000000e+00 : f32
    %187 = vector.broadcast %cst_93 : f32 to vector<1x4096xf32>
    %188 = arith.addf %178, %187 : vector<1x4096xf32>
    %cst_94 = arith.constant 7.500000e+00 : f32
    %189 = vector.broadcast %cst_94 : f32 to vector<1x4096xf32>
    %190 = arith.mulf %188, %189 : vector<1x4096xf32>
    %191 = math.floor %182 : vector<1x4096xf32>
    %192 = math.floor %186 : vector<1x4096xf32>
    %193 = math.floor %190 : vector<1x4096xf32>
    %cst_95 = arith.constant 0.000000e+00 : f32
    %cst_96 = arith.constant 1.500000e+01 : f32
    %194 = vector.broadcast %cst_95 : f32 to vector<1x4096xf32>
    %195 = arith.maximumf %194, %191 : vector<1x4096xf32>
    %196 = vector.broadcast %cst_96 : f32 to vector<1x4096xf32>
    %197 = arith.minimumf %196, %195 : vector<1x4096xf32>
    %198 = arith.fptosi %197 : vector<1x4096xf32> to vector<1x4096xi32>
    %cst_97 = arith.constant 1.000000e+00 : f32
    %199 = vector.broadcast %cst_97 : f32 to vector<1x4096xf32>
    %200 = arith.addf %191, %199 : vector<1x4096xf32>
    %cst_98 = arith.constant 0.000000e+00 : f32
    %cst_99 = arith.constant 1.500000e+01 : f32
    %201 = vector.broadcast %cst_98 : f32 to vector<1x4096xf32>
    %202 = arith.maximumf %201, %200 : vector<1x4096xf32>
    %203 = vector.broadcast %cst_99 : f32 to vector<1x4096xf32>
    %204 = arith.minimumf %203, %202 : vector<1x4096xf32>
    %205 = arith.fptosi %204 : vector<1x4096xf32> to vector<1x4096xi32>
    %cst_100 = arith.constant 0.000000e+00 : f32
    %cst_101 = arith.constant 1.500000e+01 : f32
    %206 = vector.broadcast %cst_100 : f32 to vector<1x4096xf32>
    %207 = arith.maximumf %206, %192 : vector<1x4096xf32>
    %208 = vector.broadcast %cst_101 : f32 to vector<1x4096xf32>
    %209 = arith.minimumf %208, %207 : vector<1x4096xf32>
    %210 = arith.fptosi %209 : vector<1x4096xf32> to vector<1x4096xi32>
    %cst_102 = arith.constant 1.000000e+00 : f32
    %211 = vector.broadcast %cst_102 : f32 to vector<1x4096xf32>
    %212 = arith.addf %192, %211 : vector<1x4096xf32>
    %cst_103 = arith.constant 0.000000e+00 : f32
    %cst_104 = arith.constant 1.500000e+01 : f32
    %213 = vector.broadcast %cst_103 : f32 to vector<1x4096xf32>
    %214 = arith.maximumf %213, %212 : vector<1x4096xf32>
    %215 = vector.broadcast %cst_104 : f32 to vector<1x4096xf32>
    %216 = arith.minimumf %215, %214 : vector<1x4096xf32>
    %217 = arith.fptosi %216 : vector<1x4096xf32> to vector<1x4096xi32>
    %cst_105 = arith.constant 0.000000e+00 : f32
    %cst_106 = arith.constant 1.500000e+01 : f32
    %218 = vector.broadcast %cst_105 : f32 to vector<1x4096xf32>
    %219 = arith.maximumf %218, %193 : vector<1x4096xf32>
    %220 = vector.broadcast %cst_106 : f32 to vector<1x4096xf32>
    %221 = arith.minimumf %220, %219 : vector<1x4096xf32>
    %222 = arith.fptosi %221 : vector<1x4096xf32> to vector<1x4096xi32>
    %cst_107 = arith.constant 1.000000e+00 : f32
    %223 = vector.broadcast %cst_107 : f32 to vector<1x4096xf32>
    %224 = arith.addf %193, %223 : vector<1x4096xf32>
    %cst_108 = arith.constant 0.000000e+00 : f32
    %cst_109 = arith.constant 1.500000e+01 : f32
    %225 = vector.broadcast %cst_108 : f32 to vector<1x4096xf32>
    %226 = arith.maximumf %225, %224 : vector<1x4096xf32>
    %227 = vector.broadcast %cst_109 : f32 to vector<1x4096xf32>
    %228 = arith.minimumf %227, %226 : vector<1x4096xf32>
    %229 = arith.fptosi %228 : vector<1x4096xf32> to vector<1x4096xi32>
    %c256_i32_110 = arith.constant 256 : i32
    %230 = vector.broadcast %c256_i32_110 : i32 to vector<1x4096xi32>
    %231 = arith.muli %222, %230 : vector<1x4096xi32>
    %c16_i32_111 = arith.constant 16 : i32
    %232 = vector.broadcast %c16_i32_111 : i32 to vector<1x4096xi32>
    %233 = arith.muli %210, %232 : vector<1x4096xi32>
    %234 = arith.addi %231, %233 : vector<1x4096xi32>
    %235 = arith.addi %234, %198 : vector<1x4096xi32>
    %c8_112 = arith.constant 8 : index
    %c0_113 = arith.constant 0 : index
    %236 = vector.load %arg2[%c8_112, %c0_113] : memref<16x4096xi32, #tpu.memory_space<vmem>>, vector<1x4096xi32>
    tpu.vector_store %arg2[%c8_112, %c0_113], %235 {strides = array<i32>} : memref<16x4096xi32, #tpu.memory_space<vmem>>, vector<1x4096xi32>,
    %c256_i32_114 = arith.constant 256 : i32
    %237 = vector.broadcast %c256_i32_114 : i32 to vector<1x4096xi32>
    %238 = arith.muli %222, %237 : vector<1x4096xi32>
    %c16_i32_115 = arith.constant 16 : i32
    %239 = vector.broadcast %c16_i32_115 : i32 to vector<1x4096xi32>
    %240 = arith.muli %210, %239 : vector<1x4096xi32>
    %241 = arith.addi %238, %240 : vector<1x4096xi32>
    %242 = arith.addi %241, %205 : vector<1x4096xi32>
    %c9 = arith.constant 9 : index
    %c0_116 = arith.constant 0 : index
    %243 = vector.load %arg2[%c9, %c0_116] : memref<16x4096xi32, #tpu.memory_space<vmem>>, vector<1x4096xi32>
    tpu.vector_store %arg2[%c9, %c0_116], %242 {strides = array<i32>} : memref<16x4096xi32, #tpu.memory_space<vmem>>, vector<1x4096xi32>,
    %c256_i32_117 = arith.constant 256 : i32
    %244 = vector.broadcast %c256_i32_117 : i32 to vector<1x4096xi32>
    %245 = arith.muli %222, %244 : vector<1x4096xi32>
    %c16_i32_118 = arith.constant 16 : i32
    %246 = vector.broadcast %c16_i32_118 : i32 to vector<1x4096xi32>
    %247 = arith.muli %217, %246 : vector<1x4096xi32>
    %248 = arith.addi %245, %247 : vector<1x4096xi32>
    %249 = arith.addi %248, %198 : vector<1x4096xi32>
    %c10 = arith.constant 10 : index
    %c0_119 = arith.constant 0 : index
    %250 = vector.load %arg2[%c10, %c0_119] : memref<16x4096xi32, #tpu.memory_space<vmem>>, vector<1x4096xi32>
    tpu.vector_store %arg2[%c10, %c0_119], %249 {strides = array<i32>} : memref<16x4096xi32, #tpu.memory_space<vmem>>, vector<1x4096xi32>,
    %c256_i32_120 = arith.constant 256 : i32
    %251 = vector.broadcast %c256_i32_120 : i32 to vector<1x4096xi32>
    %252 = arith.muli %222, %251 : vector<1x4096xi32>
    %c16_i32_121 = arith.constant 16 : i32
    %253 = vector.broadcast %c16_i32_121 : i32 to vector<1x4096xi32>
    %254 = arith.muli %217, %253 : vector<1x4096xi32>
    %255 = arith.addi %252, %254 : vector<1x4096xi32>
    %256 = arith.addi %255, %205 : vector<1x4096xi32>
    %c11 = arith.constant 11 : index
    %c0_122 = arith.constant 0 : index
    %257 = vector.load %arg2[%c11, %c0_122] : memref<16x4096xi32, #tpu.memory_space<vmem>>, vector<1x4096xi32>
    tpu.vector_store %arg2[%c11, %c0_122], %256 {strides = array<i32>} : memref<16x4096xi32, #tpu.memory_space<vmem>>, vector<1x4096xi32>,
    %c256_i32_123 = arith.constant 256 : i32
    %258 = vector.broadcast %c256_i32_123 : i32 to vector<1x4096xi32>
    %259 = arith.muli %229, %258 : vector<1x4096xi32>
    %c16_i32_124 = arith.constant 16 : i32
    %260 = vector.broadcast %c16_i32_124 : i32 to vector<1x4096xi32>
    %261 = arith.muli %210, %260 : vector<1x4096xi32>
    %262 = arith.addi %259, %261 : vector<1x4096xi32>
    %263 = arith.addi %262, %198 : vector<1x4096xi32>
    %c12 = arith.constant 12 : index
    %c0_125 = arith.constant 0 : index
    %264 = vector.load %arg2[%c12, %c0_125] : memref<16x4096xi32, #tpu.memory_space<vmem>>, vector<1x4096xi32>
    tpu.vector_store %arg2[%c12, %c0_125], %263 {strides = array<i32>} : memref<16x4096xi32, #tpu.memory_space<vmem>>, vector<1x4096xi32>,
    %c256_i32_126 = arith.constant 256 : i32
    %265 = vector.broadcast %c256_i32_126 : i32 to vector<1x4096xi32>
    %266 = arith.muli %229, %265 : vector<1x4096xi32>
    %c16_i32_127 = arith.constant 16 : i32
    %267 = vector.broadcast %c16_i32_127 : i32 to vector<1x4096xi32>
    %268 = arith.muli %210, %267 : vector<1x4096xi32>
    %269 = arith.addi %266, %268 : vector<1x4096xi32>
    %270 = arith.addi %269, %205 : vector<1x4096xi32>
    %c13 = arith.constant 13 : index
    %c0_128 = arith.constant 0 : index
    %271 = vector.load %arg2[%c13, %c0_128] : memref<16x4096xi32, #tpu.memory_space<vmem>>, vector<1x4096xi32>
    tpu.vector_store %arg2[%c13, %c0_128], %270 {strides = array<i32>} : memref<16x4096xi32, #tpu.memory_space<vmem>>, vector<1x4096xi32>,
    %c256_i32_129 = arith.constant 256 : i32
    %272 = vector.broadcast %c256_i32_129 : i32 to vector<1x4096xi32>
    %273 = arith.muli %229, %272 : vector<1x4096xi32>
    %c16_i32_130 = arith.constant 16 : i32
    %274 = vector.broadcast %c16_i32_130 : i32 to vector<1x4096xi32>
    %275 = arith.muli %217, %274 : vector<1x4096xi32>
    %276 = arith.addi %273, %275 : vector<1x4096xi32>
    %277 = arith.addi %276, %198 : vector<1x4096xi32>
    %c14 = arith.constant 14 : index
    %c0_131 = arith.constant 0 : index
    %278 = vector.load %arg2[%c14, %c0_131] : memref<16x4096xi32, #tpu.memory_space<vmem>>, vector<1x4096xi32>
    tpu.vector_store %arg2[%c14, %c0_131], %277 {strides = array<i32>} : memref<16x4096xi32, #tpu.memory_space<vmem>>, vector<1x4096xi32>,
    %c256_i32_132 = arith.constant 256 : i32
    %279 = vector.broadcast %c256_i32_132 : i32 to vector<1x4096xi32>
    %280 = arith.muli %229, %279 : vector<1x4096xi32>
    %c16_i32_133 = arith.constant 16 : i32
    %281 = vector.broadcast %c16_i32_133 : i32 to vector<1x4096xi32>
    %282 = arith.muli %217, %281 : vector<1x4096xi32>
    %283 = arith.addi %280, %282 : vector<1x4096xi32>
    %284 = arith.addi %283, %205 : vector<1x4096xi32>
    %c15 = arith.constant 15 : index
    %c0_134 = arith.constant 0 : index
    %285 = vector.load %arg2[%c15, %c0_134] : memref<16x4096xi32, #tpu.memory_space<vmem>>, vector<1x4096xi32>
    tpu.vector_store %arg2[%c15, %c0_134], %284 {strides = array<i32>} : memref<16x4096xi32, #tpu.memory_space<vmem>>, vector<1x4096xi32>,
    return
  }
}

module attributes {stable_mosaic.version = 11 : i64} {
  func.func @_projector_finish_kernel(%arg0: memref<2x9xf32, #tpu.memory_space<smem>>, %arg1: memref<3x4096xf32, #tpu.memory_space<vmem>>, %arg2: memref<16x4096xf32, #tpu.memory_space<vmem>>, %arg3: memref<1x256xf32, #tpu.memory_space<vmem>>, %arg4: memref<2x256xf32, #tpu.memory_space<vmem>>) attributes {dimension_semantics = [], scalar_prefetch = 0 : i64, scratch_operands = 0 : i64, tpu.core_type = #tpu.core_type<tc>} {
    %c0 = arith.constant 0 : index
    %c0_0 = arith.constant 0 : index
    %0 = vector.load %arg3[%c0, %c0_0] : memref<1x256xf32, #tpu.memory_space<vmem>>, vector<1x256xf32>
    %c0_1 = arith.constant 0 : index
    %c0_2 = arith.constant 0 : index
    %1 = vector.load %arg1[%c0_1, %c0_2] : memref<3x4096xf32, #tpu.memory_space<vmem>>, vector<1x4096xf32>
    %c1 = arith.constant 1 : index
    %c0_3 = arith.constant 0 : index
    %2 = vector.load %arg1[%c1, %c0_3] : memref<3x4096xf32, #tpu.memory_space<vmem>>, vector<1x4096xf32>
    %c2 = arith.constant 2 : index
    %c0_4 = arith.constant 0 : index
    %3 = vector.load %arg1[%c2, %c0_4] : memref<3x4096xf32, #tpu.memory_space<vmem>>, vector<1x4096xf32>
    %c0_5 = arith.constant 0 : index
    %c0_6 = arith.constant 0 : index
    %4 = memref.load %arg0[%c0_5, %c0_6] : memref<2x9xf32, #tpu.memory_space<smem>>
    %c0_7 = arith.constant 0 : index
    %c1_8 = arith.constant 1 : index
    %5 = memref.load %arg0[%c0_7, %c1_8] : memref<2x9xf32, #tpu.memory_space<smem>>
    %c0_9 = arith.constant 0 : index
    %c2_10 = arith.constant 2 : index
    %6 = memref.load %arg0[%c0_9, %c2_10] : memref<2x9xf32, #tpu.memory_space<smem>>
    %c0_11 = arith.constant 0 : index
    %c3 = arith.constant 3 : index
    %7 = memref.load %arg0[%c0_11, %c3] : memref<2x9xf32, #tpu.memory_space<smem>>
    %c0_12 = arith.constant 0 : index
    %c4 = arith.constant 4 : index
    %8 = memref.load %arg0[%c0_12, %c4] : memref<2x9xf32, #tpu.memory_space<smem>>
    %c0_13 = arith.constant 0 : index
    %c5 = arith.constant 5 : index
    %9 = memref.load %arg0[%c0_13, %c5] : memref<2x9xf32, #tpu.memory_space<smem>>
    %c0_14 = arith.constant 0 : index
    %c6 = arith.constant 6 : index
    %10 = memref.load %arg0[%c0_14, %c6] : memref<2x9xf32, #tpu.memory_space<smem>>
    %c0_15 = arith.constant 0 : index
    %c7 = arith.constant 7 : index
    %11 = memref.load %arg0[%c0_15, %c7] : memref<2x9xf32, #tpu.memory_space<smem>>
    %c0_16 = arith.constant 0 : index
    %c8 = arith.constant 8 : index
    %12 = memref.load %arg0[%c0_16, %c8] : memref<2x9xf32, #tpu.memory_space<smem>>
    %13 = vector.broadcast %4 : f32 to vector<1x4096xf32>
    %14 = arith.mulf %1, %13 : vector<1x4096xf32>
    %15 = vector.broadcast %7 : f32 to vector<1x4096xf32>
    %16 = arith.mulf %2, %15 : vector<1x4096xf32>
    %17 = arith.addf %14, %16 : vector<1x4096xf32>
    %18 = vector.broadcast %10 : f32 to vector<1x4096xf32>
    %19 = arith.mulf %3, %18 : vector<1x4096xf32>
    %20 = arith.addf %17, %19 : vector<1x4096xf32>
    %21 = vector.broadcast %5 : f32 to vector<1x4096xf32>
    %22 = arith.mulf %1, %21 : vector<1x4096xf32>
    %23 = vector.broadcast %8 : f32 to vector<1x4096xf32>
    %24 = arith.mulf %2, %23 : vector<1x4096xf32>
    %25 = arith.addf %22, %24 : vector<1x4096xf32>
    %26 = vector.broadcast %11 : f32 to vector<1x4096xf32>
    %27 = arith.mulf %3, %26 : vector<1x4096xf32>
    %28 = arith.addf %25, %27 : vector<1x4096xf32>
    %29 = vector.broadcast %6 : f32 to vector<1x4096xf32>
    %30 = arith.mulf %1, %29 : vector<1x4096xf32>
    %31 = vector.broadcast %9 : f32 to vector<1x4096xf32>
    %32 = arith.mulf %2, %31 : vector<1x4096xf32>
    %33 = arith.addf %30, %32 : vector<1x4096xf32>
    %34 = vector.broadcast %12 : f32 to vector<1x4096xf32>
    %35 = arith.mulf %3, %34 : vector<1x4096xf32>
    %36 = arith.addf %33, %35 : vector<1x4096xf32>
    %cst = arith.constant 1.000000e+00 : f32
    %37 = vector.broadcast %cst : f32 to vector<1x4096xf32>
    %38 = arith.addf %20, %37 : vector<1x4096xf32>
    %cst_17 = arith.constant 7.500000e+00 : f32
    %39 = vector.broadcast %cst_17 : f32 to vector<1x4096xf32>
    %40 = arith.mulf %38, %39 : vector<1x4096xf32>
    %cst_18 = arith.constant 1.000000e+00 : f32
    %41 = vector.broadcast %cst_18 : f32 to vector<1x4096xf32>
    %42 = arith.addf %28, %41 : vector<1x4096xf32>
    %cst_19 = arith.constant 7.500000e+00 : f32
    %43 = vector.broadcast %cst_19 : f32 to vector<1x4096xf32>
    %44 = arith.mulf %42, %43 : vector<1x4096xf32>
    %cst_20 = arith.constant 1.000000e+00 : f32
    %45 = vector.broadcast %cst_20 : f32 to vector<1x4096xf32>
    %46 = arith.addf %36, %45 : vector<1x4096xf32>
    %cst_21 = arith.constant 7.500000e+00 : f32
    %47 = vector.broadcast %cst_21 : f32 to vector<1x4096xf32>
    %48 = arith.mulf %46, %47 : vector<1x4096xf32>
    %49 = math.floor %40 : vector<1x4096xf32>
    %50 = math.floor %44 : vector<1x4096xf32>
    %51 = math.floor %48 : vector<1x4096xf32>
    %52 = arith.subf %40, %49 : vector<1x4096xf32>
    %53 = arith.subf %44, %50 : vector<1x4096xf32>
    %54 = arith.subf %48, %51 : vector<1x4096xf32>
    %cst_22 = arith.constant 0.000000e+00 : f32
    %55 = vector.broadcast %cst_22 : f32 to vector<1x4096xf32>
    %56 = arith.cmpf oge, %49, %55 : vector<1x4096xf32>
    %cst_23 = arith.constant 1.500000e+01 : f32
    %57 = vector.broadcast %cst_23 : f32 to vector<1x4096xf32>
    %58 = arith.cmpf ole, %49, %57 : vector<1x4096xf32>
    %59 = arith.andi %56, %58 : vector<1x4096xi1>
    %cst_24 = arith.constant 1.000000e+00 : f32
    %60 = vector.broadcast %cst_24 : f32 to vector<1x4096xf32>
    %61 = arith.subf %60, %52 : vector<1x4096xf32>
    %cst_25 = arith.constant 0.000000e+00 : f32
    %62 = vector.broadcast %cst_25 : f32 to vector<1x4096xf32>
    %63 = arith.select %59, %61, %62 : vector<1x4096xi1>, vector<1x4096xf32>
    %cst_26 = arith.constant 1.000000e+00 : f32
    %64 = vector.broadcast %cst_26 : f32 to vector<1x4096xf32>
    %65 = arith.addf %49, %64 : vector<1x4096xf32>
    %cst_27 = arith.constant 0.000000e+00 : f32
    %66 = vector.broadcast %cst_27 : f32 to vector<1x4096xf32>
    %67 = arith.cmpf oge, %65, %66 : vector<1x4096xf32>
    %cst_28 = arith.constant 1.000000e+00 : f32
    %68 = vector.broadcast %cst_28 : f32 to vector<1x4096xf32>
    %69 = arith.addf %49, %68 : vector<1x4096xf32>
    %cst_29 = arith.constant 1.500000e+01 : f32
    %70 = vector.broadcast %cst_29 : f32 to vector<1x4096xf32>
    %71 = arith.cmpf ole, %69, %70 : vector<1x4096xf32>
    %72 = arith.andi %67, %71 : vector<1x4096xi1>
    %cst_30 = arith.constant 0.000000e+00 : f32
    %73 = vector.broadcast %cst_30 : f32 to vector<1x4096xf32>
    %74 = arith.select %72, %52, %73 : vector<1x4096xi1>, vector<1x4096xf32>
    %cst_31 = arith.constant 0.000000e+00 : f32
    %75 = vector.broadcast %cst_31 : f32 to vector<1x4096xf32>
    %76 = arith.cmpf oge, %50, %75 : vector<1x4096xf32>
    %cst_32 = arith.constant 1.500000e+01 : f32
    %77 = vector.broadcast %cst_32 : f32 to vector<1x4096xf32>
    %78 = arith.cmpf ole, %50, %77 : vector<1x4096xf32>
    %79 = arith.andi %76, %78 : vector<1x4096xi1>
    %cst_33 = arith.constant 1.000000e+00 : f32
    %80 = vector.broadcast %cst_33 : f32 to vector<1x4096xf32>
    %81 = arith.subf %80, %53 : vector<1x4096xf32>
    %cst_34 = arith.constant 0.000000e+00 : f32
    %82 = vector.broadcast %cst_34 : f32 to vector<1x4096xf32>
    %83 = arith.select %79, %81, %82 : vector<1x4096xi1>, vector<1x4096xf32>
    %cst_35 = arith.constant 1.000000e+00 : f32
    %84 = vector.broadcast %cst_35 : f32 to vector<1x4096xf32>
    %85 = arith.addf %50, %84 : vector<1x4096xf32>
    %cst_36 = arith.constant 0.000000e+00 : f32
    %86 = vector.broadcast %cst_36 : f32 to vector<1x4096xf32>
    %87 = arith.cmpf oge, %85, %86 : vector<1x4096xf32>
    %cst_37 = arith.constant 1.000000e+00 : f32
    %88 = vector.broadcast %cst_37 : f32 to vector<1x4096xf32>
    %89 = arith.addf %50, %88 : vector<1x4096xf32>
    %cst_38 = arith.constant 1.500000e+01 : f32
    %90 = vector.broadcast %cst_38 : f32 to vector<1x4096xf32>
    %91 = arith.cmpf ole, %89, %90 : vector<1x4096xf32>
    %92 = arith.andi %87, %91 : vector<1x4096xi1>
    %cst_39 = arith.constant 0.000000e+00 : f32
    %93 = vector.broadcast %cst_39 : f32 to vector<1x4096xf32>
    %94 = arith.select %92, %53, %93 : vector<1x4096xi1>, vector<1x4096xf32>
    %cst_40 = arith.constant 0.000000e+00 : f32
    %95 = vector.broadcast %cst_40 : f32 to vector<1x4096xf32>
    %96 = arith.cmpf oge, %51, %95 : vector<1x4096xf32>
    %cst_41 = arith.constant 1.500000e+01 : f32
    %97 = vector.broadcast %cst_41 : f32 to vector<1x4096xf32>
    %98 = arith.cmpf ole, %51, %97 : vector<1x4096xf32>
    %99 = arith.andi %96, %98 : vector<1x4096xi1>
    %cst_42 = arith.constant 1.000000e+00 : f32
    %100 = vector.broadcast %cst_42 : f32 to vector<1x4096xf32>
    %101 = arith.subf %100, %54 : vector<1x4096xf32>
    %cst_43 = arith.constant 0.000000e+00 : f32
    %102 = vector.broadcast %cst_43 : f32 to vector<1x4096xf32>
    %103 = arith.select %99, %101, %102 : vector<1x4096xi1>, vector<1x4096xf32>
    %cst_44 = arith.constant 1.000000e+00 : f32
    %104 = vector.broadcast %cst_44 : f32 to vector<1x4096xf32>
    %105 = arith.addf %51, %104 : vector<1x4096xf32>
    %cst_45 = arith.constant 0.000000e+00 : f32
    %106 = vector.broadcast %cst_45 : f32 to vector<1x4096xf32>
    %107 = arith.cmpf oge, %105, %106 : vector<1x4096xf32>
    %cst_46 = arith.constant 1.000000e+00 : f32
    %108 = vector.broadcast %cst_46 : f32 to vector<1x4096xf32>
    %109 = arith.addf %51, %108 : vector<1x4096xf32>
    %cst_47 = arith.constant 1.500000e+01 : f32
    %110 = vector.broadcast %cst_47 : f32 to vector<1x4096xf32>
    %111 = arith.cmpf ole, %109, %110 : vector<1x4096xf32>
    %112 = arith.andi %107, %111 : vector<1x4096xi1>
    %cst_48 = arith.constant 0.000000e+00 : f32
    %113 = vector.broadcast %cst_48 : f32 to vector<1x4096xf32>
    %114 = arith.select %112, %54, %113 : vector<1x4096xi1>, vector<1x4096xf32>
    %115 = arith.mulf %103, %83 : vector<1x4096xf32>
    %116 = arith.mulf %115, %63 : vector<1x4096xf32>
    %c0_49 = arith.constant 0 : index
    %c0_50 = arith.constant 0 : index
    %117 = vector.load %arg2[%c0_49, %c0_50] : memref<16x4096xf32, #tpu.memory_space<vmem>>, vector<1x4096xf32>
    %118 = arith.mulf %117, %116 : vector<1x4096xf32>
    %119 = arith.mulf %103, %83 : vector<1x4096xf32>
    %120 = arith.mulf %119, %74 : vector<1x4096xf32>
    %c1_51 = arith.constant 1 : index
    %c0_52 = arith.constant 0 : index
    %121 = vector.load %arg2[%c1_51, %c0_52] : memref<16x4096xf32, #tpu.memory_space<vmem>>, vector<1x4096xf32>
    %122 = arith.mulf %121, %120 : vector<1x4096xf32>
    %123 = arith.addf %118, %122 : vector<1x4096xf32>
    %124 = arith.mulf %103, %94 : vector<1x4096xf32>
    %125 = arith.mulf %124, %63 : vector<1x4096xf32>
    %c2_53 = arith.constant 2 : index
    %c0_54 = arith.constant 0 : index
    %126 = vector.load %arg2[%c2_53, %c0_54] : memref<16x4096xf32, #tpu.memory_space<vmem>>, vector<1x4096xf32>
    %127 = arith.mulf %126, %125 : vector<1x4096xf32>
    %128 = arith.addf %123, %127 : vector<1x4096xf32>
    %129 = arith.mulf %103, %94 : vector<1x4096xf32>
    %130 = arith.mulf %129, %74 : vector<1x4096xf32>
    %c3_55 = arith.constant 3 : index
    %c0_56 = arith.constant 0 : index
    %131 = vector.load %arg2[%c3_55, %c0_56] : memref<16x4096xf32, #tpu.memory_space<vmem>>, vector<1x4096xf32>
    %132 = arith.mulf %131, %130 : vector<1x4096xf32>
    %133 = arith.addf %128, %132 : vector<1x4096xf32>
    %134 = arith.mulf %114, %83 : vector<1x4096xf32>
    %135 = arith.mulf %134, %63 : vector<1x4096xf32>
    %c4_57 = arith.constant 4 : index
    %c0_58 = arith.constant 0 : index
    %136 = vector.load %arg2[%c4_57, %c0_58] : memref<16x4096xf32, #tpu.memory_space<vmem>>, vector<1x4096xf32>
    %137 = arith.mulf %136, %135 : vector<1x4096xf32>
    %138 = arith.addf %133, %137 : vector<1x4096xf32>
    %139 = arith.mulf %114, %83 : vector<1x4096xf32>
    %140 = arith.mulf %139, %74 : vector<1x4096xf32>
    %c5_59 = arith.constant 5 : index
    %c0_60 = arith.constant 0 : index
    %141 = vector.load %arg2[%c5_59, %c0_60] : memref<16x4096xf32, #tpu.memory_space<vmem>>, vector<1x4096xf32>
    %142 = arith.mulf %141, %140 : vector<1x4096xf32>
    %143 = arith.addf %138, %142 : vector<1x4096xf32>
    %144 = arith.mulf %114, %94 : vector<1x4096xf32>
    %145 = arith.mulf %144, %63 : vector<1x4096xf32>
    %c6_61 = arith.constant 6 : index
    %c0_62 = arith.constant 0 : index
    %146 = vector.load %arg2[%c6_61, %c0_62] : memref<16x4096xf32, #tpu.memory_space<vmem>>, vector<1x4096xf32>
    %147 = arith.mulf %146, %145 : vector<1x4096xf32>
    %148 = arith.addf %143, %147 : vector<1x4096xf32>
    %149 = arith.mulf %114, %94 : vector<1x4096xf32>
    %150 = arith.mulf %149, %74 : vector<1x4096xf32>
    %c7_63 = arith.constant 7 : index
    %c0_64 = arith.constant 0 : index
    %151 = vector.load %arg2[%c7_63, %c0_64] : memref<16x4096xf32, #tpu.memory_space<vmem>>, vector<1x4096xf32>
    %152 = arith.mulf %151, %150 : vector<1x4096xf32>
    %153 = arith.addf %148, %152 : vector<1x4096xf32>
    %154 = vector.extract_strided_slice %153 {offsets = [0, 0], sizes = [1, 256], strides = [1, 1]} : vector<1x4096xf32> to vector<1x256xf32>
    %155 = vector.extract_strided_slice %153 {offsets = [0, 256], sizes = [1, 256], strides = [1, 1]} : vector<1x4096xf32> to vector<1x256xf32>
    %156 = arith.addf %154, %155 : vector<1x256xf32>
    %157 = vector.extract_strided_slice %153 {offsets = [0, 512], sizes = [1, 256], strides = [1, 1]} : vector<1x4096xf32> to vector<1x256xf32>
    %158 = arith.addf %156, %157 : vector<1x256xf32>
    %159 = vector.extract_strided_slice %153 {offsets = [0, 768], sizes = [1, 256], strides = [1, 1]} : vector<1x4096xf32> to vector<1x256xf32>
    %160 = arith.addf %158, %159 : vector<1x256xf32>
    %161 = vector.extract_strided_slice %153 {offsets = [0, 1024], sizes = [1, 256], strides = [1, 1]} : vector<1x4096xf32> to vector<1x256xf32>
    %162 = arith.addf %160, %161 : vector<1x256xf32>
    %163 = vector.extract_strided_slice %153 {offsets = [0, 1280], sizes = [1, 256], strides = [1, 1]} : vector<1x4096xf32> to vector<1x256xf32>
    %164 = arith.addf %162, %163 : vector<1x256xf32>
    %165 = vector.extract_strided_slice %153 {offsets = [0, 1536], sizes = [1, 256], strides = [1, 1]} : vector<1x4096xf32> to vector<1x256xf32>
    %166 = arith.addf %164, %165 : vector<1x256xf32>
    %167 = vector.extract_strided_slice %153 {offsets = [0, 1792], sizes = [1, 256], strides = [1, 1]} : vector<1x4096xf32> to vector<1x256xf32>
    %168 = arith.addf %166, %167 : vector<1x256xf32>
    %169 = vector.extract_strided_slice %153 {offsets = [0, 2048], sizes = [1, 256], strides = [1, 1]} : vector<1x4096xf32> to vector<1x256xf32>
    %170 = arith.addf %168, %169 : vector<1x256xf32>
    %171 = vector.extract_strided_slice %153 {offsets = [0, 2304], sizes = [1, 256], strides = [1, 1]} : vector<1x4096xf32> to vector<1x256xf32>
    %172 = arith.addf %170, %171 : vector<1x256xf32>
    %173 = vector.extract_strided_slice %153 {offsets = [0, 2560], sizes = [1, 256], strides = [1, 1]} : vector<1x4096xf32> to vector<1x256xf32>
    %174 = arith.addf %172, %173 : vector<1x256xf32>
    %175 = vector.extract_strided_slice %153 {offsets = [0, 2816], sizes = [1, 256], strides = [1, 1]} : vector<1x4096xf32> to vector<1x256xf32>
    %176 = arith.addf %174, %175 : vector<1x256xf32>
    %177 = vector.extract_strided_slice %153 {offsets = [0, 3072], sizes = [1, 256], strides = [1, 1]} : vector<1x4096xf32> to vector<1x256xf32>
    %178 = arith.addf %176, %177 : vector<1x256xf32>
    %179 = vector.extract_strided_slice %153 {offsets = [0, 3328], sizes = [1, 256], strides = [1, 1]} : vector<1x4096xf32> to vector<1x256xf32>
    %180 = arith.addf %178, %179 : vector<1x256xf32>
    %181 = vector.extract_strided_slice %153 {offsets = [0, 3584], sizes = [1, 256], strides = [1, 1]} : vector<1x4096xf32> to vector<1x256xf32>
    %182 = arith.addf %180, %181 : vector<1x256xf32>
    %183 = vector.extract_strided_slice %153 {offsets = [0, 3840], sizes = [1, 256], strides = [1, 1]} : vector<1x4096xf32> to vector<1x256xf32>
    %184 = arith.addf %182, %183 : vector<1x256xf32>
    %185 = arith.mulf %184, %0 : vector<1x256xf32>
    %c0_65 = arith.constant 0 : index
    %c0_66 = arith.constant 0 : index
    %186 = vector.load %arg4[%c0_65, %c0_66] : memref<2x256xf32, #tpu.memory_space<vmem>>, vector<1x256xf32>
    tpu.vector_store %arg4[%c0_65, %c0_66], %185 {strides = array<i32>} : memref<2x256xf32, #tpu.memory_space<vmem>>, vector<1x256xf32>,
    %c0_67 = arith.constant 0 : index
    %c0_68 = arith.constant 0 : index
    %187 = vector.load %arg1[%c0_67, %c0_68] : memref<3x4096xf32, #tpu.memory_space<vmem>>, vector<1x4096xf32>
    %c1_69 = arith.constant 1 : index
    %c0_70 = arith.constant 0 : index
    %188 = vector.load %arg1[%c1_69, %c0_70] : memref<3x4096xf32, #tpu.memory_space<vmem>>, vector<1x4096xf32>
    %c2_71 = arith.constant 2 : index
    %c0_72 = arith.constant 0 : index
    %189 = vector.load %arg1[%c2_71, %c0_72] : memref<3x4096xf32, #tpu.memory_space<vmem>>, vector<1x4096xf32>
    %c1_73 = arith.constant 1 : index
    %c0_74 = arith.constant 0 : index
    %190 = memref.load %arg0[%c1_73, %c0_74] : memref<2x9xf32, #tpu.memory_space<smem>>
    %c1_75 = arith.constant 1 : index
    %c1_76 = arith.constant 1 : index
    %191 = memref.load %arg0[%c1_75, %c1_76] : memref<2x9xf32, #tpu.memory_space<smem>>
    %c1_77 = arith.constant 1 : index
    %c2_78 = arith.constant 2 : index
    %192 = memref.load %arg0[%c1_77, %c2_78] : memref<2x9xf32, #tpu.memory_space<smem>>
    %c1_79 = arith.constant 1 : index
    %c3_80 = arith.constant 3 : index
    %193 = memref.load %arg0[%c1_79, %c3_80] : memref<2x9xf32, #tpu.memory_space<smem>>
    %c1_81 = arith.constant 1 : index
    %c4_82 = arith.constant 4 : index
    %194 = memref.load %arg0[%c1_81, %c4_82] : memref<2x9xf32, #tpu.memory_space<smem>>
    %c1_83 = arith.constant 1 : index
    %c5_84 = arith.constant 5 : index
    %195 = memref.load %arg0[%c1_83, %c5_84] : memref<2x9xf32, #tpu.memory_space<smem>>
    %c1_85 = arith.constant 1 : index
    %c6_86 = arith.constant 6 : index
    %196 = memref.load %arg0[%c1_85, %c6_86] : memref<2x9xf32, #tpu.memory_space<smem>>
    %c1_87 = arith.constant 1 : index
    %c7_88 = arith.constant 7 : index
    %197 = memref.load %arg0[%c1_87, %c7_88] : memref<2x9xf32, #tpu.memory_space<smem>>
    %c1_89 = arith.constant 1 : index
    %c8_90 = arith.constant 8 : index
    %198 = memref.load %arg0[%c1_89, %c8_90] : memref<2x9xf32, #tpu.memory_space<smem>>
    %199 = vector.broadcast %190 : f32 to vector<1x4096xf32>
    %200 = arith.mulf %187, %199 : vector<1x4096xf32>
    %201 = vector.broadcast %193 : f32 to vector<1x4096xf32>
    %202 = arith.mulf %188, %201 : vector<1x4096xf32>
    %203 = arith.addf %200, %202 : vector<1x4096xf32>
    %204 = vector.broadcast %196 : f32 to vector<1x4096xf32>
    %205 = arith.mulf %189, %204 : vector<1x4096xf32>
    %206 = arith.addf %203, %205 : vector<1x4096xf32>
    %207 = vector.broadcast %191 : f32 to vector<1x4096xf32>
    %208 = arith.mulf %187, %207 : vector<1x4096xf32>
    %209 = vector.broadcast %194 : f32 to vector<1x4096xf32>
    %210 = arith.mulf %188, %209 : vector<1x4096xf32>
    %211 = arith.addf %208, %210 : vector<1x4096xf32>
    %212 = vector.broadcast %197 : f32 to vector<1x4096xf32>
    %213 = arith.mulf %189, %212 : vector<1x4096xf32>
    %214 = arith.addf %211, %213 : vector<1x4096xf32>
    %215 = vector.broadcast %192 : f32 to vector<1x4096xf32>
    %216 = arith.mulf %187, %215 : vector<1x4096xf32>
    %217 = vector.broadcast %195 : f32 to vector<1x4096xf32>
    %218 = arith.mulf %188, %217 : vector<1x4096xf32>
    %219 = arith.addf %216, %218 : vector<1x4096xf32>
    %220 = vector.broadcast %198 : f32 to vector<1x4096xf32>
    %221 = arith.mulf %189, %220 : vector<1x4096xf32>
    %222 = arith.addf %219, %221 : vector<1x4096xf32>
    %cst_91 = arith.constant 1.000000e+00 : f32
    %223 = vector.broadcast %cst_91 : f32 to vector<1x4096xf32>
    %224 = arith.addf %206, %223 : vector<1x4096xf32>
    %cst_92 = arith.constant 7.500000e+00 : f32
    %225 = vector.broadcast %cst_92 : f32 to vector<1x4096xf32>
    %226 = arith.mulf %224, %225 : vector<1x4096xf32>
    %cst_93 = arith.constant 1.000000e+00 : f32
    %227 = vector.broadcast %cst_93 : f32 to vector<1x4096xf32>
    %228 = arith.addf %214, %227 : vector<1x4096xf32>
    %cst_94 = arith.constant 7.500000e+00 : f32
    %229 = vector.broadcast %cst_94 : f32 to vector<1x4096xf32>
    %230 = arith.mulf %228, %229 : vector<1x4096xf32>
    %cst_95 = arith.constant 1.000000e+00 : f32
    %231 = vector.broadcast %cst_95 : f32 to vector<1x4096xf32>
    %232 = arith.addf %222, %231 : vector<1x4096xf32>
    %cst_96 = arith.constant 7.500000e+00 : f32
    %233 = vector.broadcast %cst_96 : f32 to vector<1x4096xf32>
    %234 = arith.mulf %232, %233 : vector<1x4096xf32>
    %235 = math.floor %226 : vector<1x4096xf32>
    %236 = math.floor %230 : vector<1x4096xf32>
    %237 = math.floor %234 : vector<1x4096xf32>
    %238 = arith.subf %226, %235 : vector<1x4096xf32>
    %239 = arith.subf %230, %236 : vector<1x4096xf32>
    %240 = arith.subf %234, %237 : vector<1x4096xf32>
    %cst_97 = arith.constant 0.000000e+00 : f32
    %241 = vector.broadcast %cst_97 : f32 to vector<1x4096xf32>
    %242 = arith.cmpf oge, %235, %241 : vector<1x4096xf32>
    %cst_98 = arith.constant 1.500000e+01 : f32
    %243 = vector.broadcast %cst_98 : f32 to vector<1x4096xf32>
    %244 = arith.cmpf ole, %235, %243 : vector<1x4096xf32>
    %245 = arith.andi %242, %244 : vector<1x4096xi1>
    %cst_99 = arith.constant 1.000000e+00 : f32
    %246 = vector.broadcast %cst_99 : f32 to vector<1x4096xf32>
    %247 = arith.subf %246, %238 : vector<1x4096xf32>
    %cst_100 = arith.constant 0.000000e+00 : f32
    %248 = vector.broadcast %cst_100 : f32 to vector<1x4096xf32>
    %249 = arith.select %245, %247, %248 : vector<1x4096xi1>, vector<1x4096xf32>
    %cst_101 = arith.constant 1.000000e+00 : f32
    %250 = vector.broadcast %cst_101 : f32 to vector<1x4096xf32>
    %251 = arith.addf %235, %250 : vector<1x4096xf32>
    %cst_102 = arith.constant 0.000000e+00 : f32
    %252 = vector.broadcast %cst_102 : f32 to vector<1x4096xf32>
    %253 = arith.cmpf oge, %251, %252 : vector<1x4096xf32>
    %cst_103 = arith.constant 1.000000e+00 : f32
    %254 = vector.broadcast %cst_103 : f32 to vector<1x4096xf32>
    %255 = arith.addf %235, %254 : vector<1x4096xf32>
    %cst_104 = arith.constant 1.500000e+01 : f32
    %256 = vector.broadcast %cst_104 : f32 to vector<1x4096xf32>
    %257 = arith.cmpf ole, %255, %256 : vector<1x4096xf32>
    %258 = arith.andi %253, %257 : vector<1x4096xi1>
    %cst_105 = arith.constant 0.000000e+00 : f32
    %259 = vector.broadcast %cst_105 : f32 to vector<1x4096xf32>
    %260 = arith.select %258, %238, %259 : vector<1x4096xi1>, vector<1x4096xf32>
    %cst_106 = arith.constant 0.000000e+00 : f32
    %261 = vector.broadcast %cst_106 : f32 to vector<1x4096xf32>
    %262 = arith.cmpf oge, %236, %261 : vector<1x4096xf32>
    %cst_107 = arith.constant 1.500000e+01 : f32
    %263 = vector.broadcast %cst_107 : f32 to vector<1x4096xf32>
    %264 = arith.cmpf ole, %236, %263 : vector<1x4096xf32>
    %265 = arith.andi %262, %264 : vector<1x4096xi1>
    %cst_108 = arith.constant 1.000000e+00 : f32
    %266 = vector.broadcast %cst_108 : f32 to vector<1x4096xf32>
    %267 = arith.subf %266, %239 : vector<1x4096xf32>
    %cst_109 = arith.constant 0.000000e+00 : f32
    %268 = vector.broadcast %cst_109 : f32 to vector<1x4096xf32>
    %269 = arith.select %265, %267, %268 : vector<1x4096xi1>, vector<1x4096xf32>
    %cst_110 = arith.constant 1.000000e+00 : f32
    %270 = vector.broadcast %cst_110 : f32 to vector<1x4096xf32>
    %271 = arith.addf %236, %270 : vector<1x4096xf32>
    %cst_111 = arith.constant 0.000000e+00 : f32
    %272 = vector.broadcast %cst_111 : f32 to vector<1x4096xf32>
    %273 = arith.cmpf oge, %271, %272 : vector<1x4096xf32>
    %cst_112 = arith.constant 1.000000e+00 : f32
    %274 = vector.broadcast %cst_112 : f32 to vector<1x4096xf32>
    %275 = arith.addf %236, %274 : vector<1x4096xf32>
    %cst_113 = arith.constant 1.500000e+01 : f32
    %276 = vector.broadcast %cst_113 : f32 to vector<1x4096xf32>
    %277 = arith.cmpf ole, %275, %276 : vector<1x4096xf32>
    %278 = arith.andi %273, %277 : vector<1x4096xi1>
    %cst_114 = arith.constant 0.000000e+00 : f32
    %279 = vector.broadcast %cst_114 : f32 to vector<1x4096xf32>
    %280 = arith.select %278, %239, %279 : vector<1x4096xi1>, vector<1x4096xf32>
    %cst_115 = arith.constant 0.000000e+00 : f32
    %281 = vector.broadcast %cst_115 : f32 to vector<1x4096xf32>
    %282 = arith.cmpf oge, %237, %281 : vector<1x4096xf32>
    %cst_116 = arith.constant 1.500000e+01 : f32
    %283 = vector.broadcast %cst_116 : f32 to vector<1x4096xf32>
    %284 = arith.cmpf ole, %237, %283 : vector<1x4096xf32>
    %285 = arith.andi %282, %284 : vector<1x4096xi1>
    %cst_117 = arith.constant 1.000000e+00 : f32
    %286 = vector.broadcast %cst_117 : f32 to vector<1x4096xf32>
    %287 = arith.subf %286, %240 : vector<1x4096xf32>
    %cst_118 = arith.constant 0.000000e+00 : f32
    %288 = vector.broadcast %cst_118 : f32 to vector<1x4096xf32>
    %289 = arith.select %285, %287, %288 : vector<1x4096xi1>, vector<1x4096xf32>
    %cst_119 = arith.constant 1.000000e+00 : f32
    %290 = vector.broadcast %cst_119 : f32 to vector<1x4096xf32>
    %291 = arith.addf %237, %290 : vector<1x4096xf32>
    %cst_120 = arith.constant 0.000000e+00 : f32
    %292 = vector.broadcast %cst_120 : f32 to vector<1x4096xf32>
    %293 = arith.cmpf oge, %291, %292 : vector<1x4096xf32>
    %cst_121 = arith.constant 1.000000e+00 : f32
    %294 = vector.broadcast %cst_121 : f32 to vector<1x4096xf32>
    %295 = arith.addf %237, %294 : vector<1x4096xf32>
    %cst_122 = arith.constant 1.500000e+01 : f32
    %296 = vector.broadcast %cst_122 : f32 to vector<1x4096xf32>
    %297 = arith.cmpf ole, %295, %296 : vector<1x4096xf32>
    %298 = arith.andi %293, %297 : vector<1x4096xi1>
    %cst_123 = arith.constant 0.000000e+00 : f32
    %299 = vector.broadcast %cst_123 : f32 to vector<1x4096xf32>
    %300 = arith.select %298, %240, %299 : vector<1x4096xi1>, vector<1x4096xf32>
    %301 = arith.mulf %289, %269 : vector<1x4096xf32>
    %302 = arith.mulf %301, %249 : vector<1x4096xf32>
    %c8_124 = arith.constant 8 : index
    %c0_125 = arith.constant 0 : index
    %303 = vector.load %arg2[%c8_124, %c0_125] : memref<16x4096xf32, #tpu.memory_space<vmem>>, vector<1x4096xf32>
    %304 = arith.mulf %303, %302 : vector<1x4096xf32>
    %305 = arith.mulf %289, %269 : vector<1x4096xf32>
    %306 = arith.mulf %305, %260 : vector<1x4096xf32>
    %c9 = arith.constant 9 : index
    %c0_126 = arith.constant 0 : index
    %307 = vector.load %arg2[%c9, %c0_126] : memref<16x4096xf32, #tpu.memory_space<vmem>>, vector<1x4096xf32>
    %308 = arith.mulf %307, %306 : vector<1x4096xf32>
    %309 = arith.addf %304, %308 : vector<1x4096xf32>
    %310 = arith.mulf %289, %280 : vector<1x4096xf32>
    %311 = arith.mulf %310, %249 : vector<1x4096xf32>
    %c10 = arith.constant 10 : index
    %c0_127 = arith.constant 0 : index
    %312 = vector.load %arg2[%c10, %c0_127] : memref<16x4096xf32, #tpu.memory_space<vmem>>, vector<1x4096xf32>
    %313 = arith.mulf %312, %311 : vector<1x4096xf32>
    %314 = arith.addf %309, %313 : vector<1x4096xf32>
    %315 = arith.mulf %289, %280 : vector<1x4096xf32>
    %316 = arith.mulf %315, %260 : vector<1x4096xf32>
    %c11 = arith.constant 11 : index
    %c0_128 = arith.constant 0 : index
    %317 = vector.load %arg2[%c11, %c0_128] : memref<16x4096xf32, #tpu.memory_space<vmem>>, vector<1x4096xf32>
    %318 = arith.mulf %317, %316 : vector<1x4096xf32>
    %319 = arith.addf %314, %318 : vector<1x4096xf32>
    %320 = arith.mulf %300, %269 : vector<1x4096xf32>
    %321 = arith.mulf %320, %249 : vector<1x4096xf32>
    %c12 = arith.constant 12 : index
    %c0_129 = arith.constant 0 : index
    %322 = vector.load %arg2[%c12, %c0_129] : memref<16x4096xf32, #tpu.memory_space<vmem>>, vector<1x4096xf32>
    %323 = arith.mulf %322, %321 : vector<1x4096xf32>
    %324 = arith.addf %319, %323 : vector<1x4096xf32>
    %325 = arith.mulf %300, %269 : vector<1x4096xf32>
    %326 = arith.mulf %325, %260 : vector<1x4096xf32>
    %c13 = arith.constant 13 : index
    %c0_130 = arith.constant 0 : index
    %327 = vector.load %arg2[%c13, %c0_130] : memref<16x4096xf32, #tpu.memory_space<vmem>>, vector<1x4096xf32>
    %328 = arith.mulf %327, %326 : vector<1x4096xf32>
    %329 = arith.addf %324, %328 : vector<1x4096xf32>
    %330 = arith.mulf %300, %280 : vector<1x4096xf32>
    %331 = arith.mulf %330, %249 : vector<1x4096xf32>
    %c14 = arith.constant 14 : index
    %c0_131 = arith.constant 0 : index
    %332 = vector.load %arg2[%c14, %c0_131] : memref<16x4096xf32, #tpu.memory_space<vmem>>, vector<1x4096xf32>
    %333 = arith.mulf %332, %331 : vector<1x4096xf32>
    %334 = arith.addf %329, %333 : vector<1x4096xf32>
    %335 = arith.mulf %300, %280 : vector<1x4096xf32>
    %336 = arith.mulf %335, %260 : vector<1x4096xf32>
    %c15 = arith.constant 15 : index
    %c0_132 = arith.constant 0 : index
    %337 = vector.load %arg2[%c15, %c0_132] : memref<16x4096xf32, #tpu.memory_space<vmem>>, vector<1x4096xf32>
    %338 = arith.mulf %337, %336 : vector<1x4096xf32>
    %339 = arith.addf %334, %338 : vector<1x4096xf32>
    %340 = vector.extract_strided_slice %339 {offsets = [0, 0], sizes = [1, 256], strides = [1, 1]} : vector<1x4096xf32> to vector<1x256xf32>
    %341 = vector.extract_strided_slice %339 {offsets = [0, 256], sizes = [1, 256], strides = [1, 1]} : vector<1x4096xf32> to vector<1x256xf32>
    %342 = arith.addf %340, %341 : vector<1x256xf32>
    %343 = vector.extract_strided_slice %339 {offsets = [0, 512], sizes = [1, 256], strides = [1, 1]} : vector<1x4096xf32> to vector<1x256xf32>
    %344 = arith.addf %342, %343 : vector<1x256xf32>
    %345 = vector.extract_strided_slice %339 {offsets = [0, 768], sizes = [1, 256], strides = [1, 1]} : vector<1x4096xf32> to vector<1x256xf32>
    %346 = arith.addf %344, %345 : vector<1x256xf32>
    %347 = vector.extract_strided_slice %339 {offsets = [0, 1024], sizes = [1, 256], strides = [1, 1]} : vector<1x4096xf32> to vector<1x256xf32>
    %348 = arith.addf %346, %347 : vector<1x256xf32>
    %349 = vector.extract_strided_slice %339 {offsets = [0, 1280], sizes = [1, 256], strides = [1, 1]} : vector<1x4096xf32> to vector<1x256xf32>
    %350 = arith.addf %348, %349 : vector<1x256xf32>
    %351 = vector.extract_strided_slice %339 {offsets = [0, 1536], sizes = [1, 256], strides = [1, 1]} : vector<1x4096xf32> to vector<1x256xf32>
    %352 = arith.addf %350, %351 : vector<1x256xf32>
    %353 = vector.extract_strided_slice %339 {offsets = [0, 1792], sizes = [1, 256], strides = [1, 1]} : vector<1x4096xf32> to vector<1x256xf32>
    %354 = arith.addf %352, %353 : vector<1x256xf32>
    %355 = vector.extract_strided_slice %339 {offsets = [0, 2048], sizes = [1, 256], strides = [1, 1]} : vector<1x4096xf32> to vector<1x256xf32>
    %356 = arith.addf %354, %355 : vector<1x256xf32>
    %357 = vector.extract_strided_slice %339 {offsets = [0, 2304], sizes = [1, 256], strides = [1, 1]} : vector<1x4096xf32> to vector<1x256xf32>
    %358 = arith.addf %356, %357 : vector<1x256xf32>
    %359 = vector.extract_strided_slice %339 {offsets = [0, 2560], sizes = [1, 256], strides = [1, 1]} : vector<1x4096xf32> to vector<1x256xf32>
    %360 = arith.addf %358, %359 : vector<1x256xf32>
    %361 = vector.extract_strided_slice %339 {offsets = [0, 2816], sizes = [1, 256], strides = [1, 1]} : vector<1x4096xf32> to vector<1x256xf32>
    %362 = arith.addf %360, %361 : vector<1x256xf32>
    %363 = vector.extract_strided_slice %339 {offsets = [0, 3072], sizes = [1, 256], strides = [1, 1]} : vector<1x4096xf32> to vector<1x256xf32>
    %364 = arith.addf %362, %363 : vector<1x256xf32>
    %365 = vector.extract_strided_slice %339 {offsets = [0, 3328], sizes = [1, 256], strides = [1, 1]} : vector<1x4096xf32> to vector<1x256xf32>
    %366 = arith.addf %364, %365 : vector<1x256xf32>
    %367 = vector.extract_strided_slice %339 {offsets = [0, 3584], sizes = [1, 256], strides = [1, 1]} : vector<1x4096xf32> to vector<1x256xf32>
    %368 = arith.addf %366, %367 : vector<1x256xf32>
    %369 = vector.extract_strided_slice %339 {offsets = [0, 3840], sizes = [1, 256], strides = [1, 1]} : vector<1x4096xf32> to vector<1x256xf32>
    %370 = arith.addf %368, %369 : vector<1x256xf32>
    %371 = arith.mulf %370, %0 : vector<1x256xf32>
    %c1_133 = arith.constant 1 : index
    %c0_134 = arith.constant 0 : index
    %372 = vector.load %arg4[%c1_133, %c0_134] : memref<2x256xf32, #tpu.memory_space<vmem>>, vector<1x256xf32>
    tpu.vector_store %arg4[%c1_133, %c0_134], %371 {strides = array<i32>} : memref<2x256xf32, #tpu.memory_space<vmem>>, vector<1x256xf32>,
    return
  }
}

module attributes {stable_mosaic.version = 11 : i64} {
  func.func @_ctf_shift_kernel(%arg0: memref<2x6xf32, #tpu.memory_space<smem>>, %arg1: memref<2x256xf32, #tpu.memory_space<vmem>>, %arg2: memref<2x256xf32, #tpu.memory_space<vmem>>, %arg3: memref<7x256xf32, #tpu.memory_space<vmem>>, %arg4: memref<4x256xf32, #tpu.memory_space<vmem>>) attributes {dimension_semantics = [], scalar_prefetch = 0 : i64, scratch_operands = 0 : i64, tpu.core_type = #tpu.core_type<tc>} {
    %c0 = arith.constant 0 : index
    %c0_0 = arith.constant 0 : index
    %0 = vector.load %arg3[%c0, %c0_0] : memref<7x256xf32, #tpu.memory_space<vmem>>, vector<1x256xf32>
    %c1 = arith.constant 1 : index
    %c0_1 = arith.constant 0 : index
    %1 = vector.load %arg3[%c1, %c0_1] : memref<7x256xf32, #tpu.memory_space<vmem>>, vector<1x256xf32>
    %c2 = arith.constant 2 : index
    %c0_2 = arith.constant 0 : index
    %2 = vector.load %arg3[%c2, %c0_2] : memref<7x256xf32, #tpu.memory_space<vmem>>, vector<1x256xf32>
    %c3 = arith.constant 3 : index
    %c0_3 = arith.constant 0 : index
    %3 = vector.load %arg3[%c3, %c0_3] : memref<7x256xf32, #tpu.memory_space<vmem>>, vector<1x256xf32>
    %c4 = arith.constant 4 : index
    %c0_4 = arith.constant 0 : index
    %4 = vector.load %arg3[%c4, %c0_4] : memref<7x256xf32, #tpu.memory_space<vmem>>, vector<1x256xf32>
    %c5 = arith.constant 5 : index
    %c0_5 = arith.constant 0 : index
    %5 = vector.load %arg3[%c5, %c0_5] : memref<7x256xf32, #tpu.memory_space<vmem>>, vector<1x256xf32>
    %c6 = arith.constant 6 : index
    %c0_6 = arith.constant 0 : index
    %6 = vector.load %arg3[%c6, %c0_6] : memref<7x256xf32, #tpu.memory_space<vmem>>, vector<1x256xf32>
    %c0_7 = arith.constant 0 : index
    %c0_8 = arith.constant 0 : index
    %7 = memref.load %arg0[%c0_7, %c0_8] : memref<2x6xf32, #tpu.memory_space<smem>>
    %c0_9 = arith.constant 0 : index
    %c1_10 = arith.constant 1 : index
    %8 = memref.load %arg0[%c0_9, %c1_10] : memref<2x6xf32, #tpu.memory_space<smem>>
    %c0_11 = arith.constant 0 : index
    %c2_12 = arith.constant 2 : index
    %9 = memref.load %arg0[%c0_11, %c2_12] : memref<2x6xf32, #tpu.memory_space<smem>>
    %c0_13 = arith.constant 0 : index
    %c3_14 = arith.constant 3 : index
    %10 = memref.load %arg0[%c0_13, %c3_14] : memref<2x6xf32, #tpu.memory_space<smem>>
    %c0_15 = arith.constant 0 : index
    %c4_16 = arith.constant 4 : index
    %11 = memref.load %arg0[%c0_15, %c4_16] : memref<2x6xf32, #tpu.memory_space<smem>>
    %c0_17 = arith.constant 0 : index
    %c5_18 = arith.constant 5 : index
    %12 = memref.load %arg0[%c0_17, %c5_18] : memref<2x6xf32, #tpu.memory_space<smem>>
    %13 = vector.broadcast %9 : f32 to vector<1x256xf32>
    %14 = arith.mulf %0, %13 : vector<1x256xf32>
    %15 = vector.broadcast %10 : f32 to vector<1x256xf32>
    %16 = arith.mulf %1, %15 : vector<1x256xf32>
    %17 = arith.addf %14, %16 : vector<1x256xf32>
    %18 = vector.broadcast %8 : f32 to vector<1x256xf32>
    %19 = arith.mulf %18, %17 : vector<1x256xf32>
    %20 = vector.broadcast %7 : f32 to vector<1x256xf32>
    %21 = arith.addf %20, %19 : vector<1x256xf32>
    %22 = arith.mulf %21, %2 : vector<1x256xf32>
    %23 = arith.addf %22, %3 : vector<1x256xf32>
    %cst = arith.constant 0.100167423 : f32
    %24 = vector.broadcast %cst : f32 to vector<1x256xf32>
    %25 = arith.addf %23, %24 : vector<1x256xf32>
    %26 = math.sin %25 : vector<1x256xf32>
    %cst_19 = arith.constant 0.000000e+00 : f32
    %27 = vector.broadcast %cst_19 : f32 to vector<1x256xf32>
    %28 = arith.subf %27, %26 : vector<1x256xf32>
    %29 = arith.mulf %28, %6 : vector<1x256xf32>
    %30 = vector.broadcast %11 : f32 to vector<1x256xf32>
    %31 = arith.mulf %30, %4 : vector<1x256xf32>
    %32 = vector.broadcast %12 : f32 to vector<1x256xf32>
    %33 = arith.mulf %32, %5 : vector<1x256xf32>
    %34 = arith.addf %31, %33 : vector<1x256xf32>
    %35 = math.cos %34 : vector<1x256xf32>
    %36 = math.sin %34 : vector<1x256xf32>
    %c0_20 = arith.constant 0 : index
    %c0_21 = arith.constant 0 : index
    %37 = vector.load %arg1[%c0_20, %c0_21] : memref<2x256xf32, #tpu.memory_space<vmem>>, vector<1x256xf32>
    %38 = arith.mulf %37, %29 : vector<1x256xf32>
    %c0_22 = arith.constant 0 : index
    %c0_23 = arith.constant 0 : index
    %39 = vector.load %arg2[%c0_22, %c0_23] : memref<2x256xf32, #tpu.memory_space<vmem>>, vector<1x256xf32>
    %40 = arith.mulf %39, %29 : vector<1x256xf32>
    %41 = arith.mulf %38, %35 : vector<1x256xf32>
    %42 = arith.mulf %40, %36 : vector<1x256xf32>
    %43 = arith.subf %41, %42 : vector<1x256xf32>
    %c0_24 = arith.constant 0 : index
    %c0_25 = arith.constant 0 : index
    %44 = vector.load %arg4[%c0_24, %c0_25] : memref<4x256xf32, #tpu.memory_space<vmem>>, vector<1x256xf32>
    tpu.vector_store %arg4[%c0_24, %c0_25], %43 {strides = array<i32>} : memref<4x256xf32, #tpu.memory_space<vmem>>, vector<1x256xf32>,
    %45 = arith.mulf %38, %36 : vector<1x256xf32>
    %46 = arith.mulf %40, %35 : vector<1x256xf32>
    %47 = arith.addf %45, %46 : vector<1x256xf32>
    %c1_26 = arith.constant 1 : index
    %c0_27 = arith.constant 0 : index
    %48 = vector.load %arg4[%c1_26, %c0_27] : memref<4x256xf32, #tpu.memory_space<vmem>>, vector<1x256xf32>
    tpu.vector_store %arg4[%c1_26, %c0_27], %47 {strides = array<i32>} : memref<4x256xf32, #tpu.memory_space<vmem>>, vector<1x256xf32>,
    %c1_28 = arith.constant 1 : index
    %c0_29 = arith.constant 0 : index
    %49 = memref.load %arg0[%c1_28, %c0_29] : memref<2x6xf32, #tpu.memory_space<smem>>
    %c1_30 = arith.constant 1 : index
    %c1_31 = arith.constant 1 : index
    %50 = memref.load %arg0[%c1_30, %c1_31] : memref<2x6xf32, #tpu.memory_space<smem>>
    %c1_32 = arith.constant 1 : index
    %c2_33 = arith.constant 2 : index
    %51 = memref.load %arg0[%c1_32, %c2_33] : memref<2x6xf32, #tpu.memory_space<smem>>
    %c1_34 = arith.constant 1 : index
    %c3_35 = arith.constant 3 : index
    %52 = memref.load %arg0[%c1_34, %c3_35] : memref<2x6xf32, #tpu.memory_space<smem>>
    %c1_36 = arith.constant 1 : index
    %c4_37 = arith.constant 4 : index
    %53 = memref.load %arg0[%c1_36, %c4_37] : memref<2x6xf32, #tpu.memory_space<smem>>
    %c1_38 = arith.constant 1 : index
    %c5_39 = arith.constant 5 : index
    %54 = memref.load %arg0[%c1_38, %c5_39] : memref<2x6xf32, #tpu.memory_space<smem>>
    %55 = vector.broadcast %51 : f32 to vector<1x256xf32>
    %56 = arith.mulf %0, %55 : vector<1x256xf32>
    %57 = vector.broadcast %52 : f32 to vector<1x256xf32>
    %58 = arith.mulf %1, %57 : vector<1x256xf32>
    %59 = arith.addf %56, %58 : vector<1x256xf32>
    %60 = vector.broadcast %50 : f32 to vector<1x256xf32>
    %61 = arith.mulf %60, %59 : vector<1x256xf32>
    %62 = vector.broadcast %49 : f32 to vector<1x256xf32>
    %63 = arith.addf %62, %61 : vector<1x256xf32>
    %64 = arith.mulf %63, %2 : vector<1x256xf32>
    %65 = arith.addf %64, %3 : vector<1x256xf32>
    %cst_40 = arith.constant 0.100167423 : f32
    %66 = vector.broadcast %cst_40 : f32 to vector<1x256xf32>
    %67 = arith.addf %65, %66 : vector<1x256xf32>
    %68 = math.sin %67 : vector<1x256xf32>
    %cst_41 = arith.constant 0.000000e+00 : f32
    %69 = vector.broadcast %cst_41 : f32 to vector<1x256xf32>
    %70 = arith.subf %69, %68 : vector<1x256xf32>
    %71 = arith.mulf %70, %6 : vector<1x256xf32>
    %72 = vector.broadcast %53 : f32 to vector<1x256xf32>
    %73 = arith.mulf %72, %4 : vector<1x256xf32>
    %74 = vector.broadcast %54 : f32 to vector<1x256xf32>
    %75 = arith.mulf %74, %5 : vector<1x256xf32>
    %76 = arith.addf %73, %75 : vector<1x256xf32>
    %77 = math.cos %76 : vector<1x256xf32>
    %78 = math.sin %76 : vector<1x256xf32>
    %c1_42 = arith.constant 1 : index
    %c0_43 = arith.constant 0 : index
    %79 = vector.load %arg1[%c1_42, %c0_43] : memref<2x256xf32, #tpu.memory_space<vmem>>, vector<1x256xf32>
    %80 = arith.mulf %79, %71 : vector<1x256xf32>
    %c1_44 = arith.constant 1 : index
    %c0_45 = arith.constant 0 : index
    %81 = vector.load %arg2[%c1_44, %c0_45] : memref<2x256xf32, #tpu.memory_space<vmem>>, vector<1x256xf32>
    %82 = arith.mulf %81, %71 : vector<1x256xf32>
    %83 = arith.mulf %80, %77 : vector<1x256xf32>
    %84 = arith.mulf %82, %78 : vector<1x256xf32>
    %85 = arith.subf %83, %84 : vector<1x256xf32>
    %c2_46 = arith.constant 2 : index
    %c0_47 = arith.constant 0 : index
    %86 = vector.load %arg4[%c2_46, %c0_47] : memref<4x256xf32, #tpu.memory_space<vmem>>, vector<1x256xf32>
    tpu.vector_store %arg4[%c2_46, %c0_47], %85 {strides = array<i32>} : memref<4x256xf32, #tpu.memory_space<vmem>>, vector<1x256xf32>,
    %87 = arith.mulf %80, %78 : vector<1x256xf32>
    %88 = arith.mulf %82, %77 : vector<1x256xf32>
    %89 = arith.addf %87, %88 : vector<1x256xf32>
    %c3_48 = arith.constant 3 : index
    %c0_49 = arith.constant 0 : index
    %90 = vector.load %arg4[%c3_48, %c0_49] : memref<4x256xf32, #tpu.memory_space<vmem>>, vector<1x256xf32>
    tpu.vector_store %arg4[%c3_48, %c0_49], %89 {strides = array<i32>} : memref<4x256xf32, #tpu.memory_space<vmem>>, vector<1x256xf32>,
    return
  }
}

</mosaic_0001>

<llo_original>
// kernel: a_call__.3
$region0: #{a_call__.3}
  #allocation0 [shape = 'u32[]', space=smem, size = 0x4, offset = 0x4, fixed_abs, tag = 'smem constant byte address 0x4 - core index']
  #allocation1 [shape = 'u32[144,128]{1,0:T(1,128)}', space=vmem, size = 0x12000, scoped, tag = 'internal scratch']
  %s0 = inlined_call_operand.vmem [shape: f32[2,9], index: 0, kind: input, shape index: {}]
  %s1 = inlined_call_operand.hbm [shape: f32[3,4096], index: 1, kind: input, shape index: {}]
  %s2 = inlined_call_operand.vmem [shape: s32[16,4096], index: 2, kind: output, shape index: {}]
  %s3 = sld [smem:[#allocation0]]
  $region26: #{a_call__.3} parent=0
    _
  %s5 = ssub.s32 1, %s3
  %s6 = scalar_select 0, %s5, %s3
  $region1: #{a_call__.3} parent=0
    #allocation2 [shape = 'u8[1024]{0}', space=smem, size = 0x400, scoped, tag = 'input window, operand 0, single buffered']
    #allocation3 [shape = 's32[1]{0}', space=sflag, size = 0x4, scoped, tag = 'scoped memory for a_call__.3']
    #allocation4 [shape = 's32[1]{0}', space=sflag, size = 0x4, scoped, tag = 'scoped memory for a_call__.3']
    #allocation5 [shape = 'u8[65536]{0}', space=vmem, size = 0x10000, scoped, tag = 'input window, operand 1, single buffered']
    %7 = vsyncpa [#allocation4], 0
    %8 = vsyncpa [#allocation3], 0
    // Predicated region
    $region2: #{a_call__.3} parent=1 // pred_check
      _
    $region3: #{a_call__.3} parent=1 // pred_check_branch
      %10 = sbr.rel (0) target = $region5
    $region4: #{a_call__.3} parent=1 // pred_region
      %s12 = ssub.s32 32, 32
      %13 = vsyncadd [#allocation4], %s12
      %s15 = sshll.u32 %s0, 4
      %s16 = int_to_ptr.vmem [resolvable:$true] %s15
      %18 = dma.vmem_to_smem %s16, 32, [#allocation2], [#allocation4]
    $region5: #{a_call__.3} parent=1 // pred_fallthru
      _
    // Predicated region
    $region6: #{a_call__.3} parent=1 // pred_check
      _
    $region7: #{a_call__.3} parent=1 // pred_check_branch
      %20 = sbr.rel (0) target = $region9
    $region8: #{a_call__.3} parent=1 // pred_region
      %s22 = ssub.s32 2048, 2048
      %23 = vsyncadd [#allocation3], %s22
      %s25 = sshll.u32 [#allocation5], 4
      %s26 = int_to_ptr.vmem [resolvable:$true] %s25
      %28 = dma.hbm_to_vmem [thread:$0]  %s1, 2048, %s26, [#allocation3]
    $region9: #{a_call__.3} parent=1 // pred_fallthru
      _
    // Predicated region
    $region10: #{a_call__.3} parent=1 // pred_check
      _
    $region11: #{a_call__.3} parent=1 // pred_check_branch
      %30 = sbr.rel (0) target = $region13
    $region12: #{a_call__.3} parent=1 // pred_region
      %31 = dma.done [#allocation4], 32
    $region13: #{a_call__.3} parent=1 // pred_fallthru
      _
    // Predicated region
    $region14: #{a_call__.3} parent=1 // pred_check
      _
    $region15: #{a_call__.3} parent=1 // pred_check_branch
      %33 = sbr.rel (0) target = $region17
    $region16: #{a_call__.3} parent=1 // pred_region
      %34 = dma.done [#allocation3], 2048
    $region17: #{a_call__.3} parent=1 // pred_fallthru
      _
    %35 = sfence
    %v36 = vld [vmem:[#allocation5] ss:$4 sm:$0xff]
    %s37 = scalar_lea.vmem [#allocation5], 32
    %v38 = vld [vmem:[%s37] ss:$4 sm:$0xff]
    %s39 = scalar_lea.vmem [#allocation5], 64
    %v40 = vld [vmem:[%s39] ss:$4 sm:$0xff]
    %s41 = scalar_lea.vmem [#allocation5], 96
    %v42 = vld [vmem:[%s41] ss:$4 sm:$0xff]
    %s43 = scalar_lea.vmem [#allocation5], 1
    %v44 = vld [vmem:[%s43] ss:$4 sm:$0xff]
    %s45 = scalar_lea.vmem [#allocation5], 33
    %v46 = vld [vmem:[%s45] ss:$4 sm:$0xff]
    %s47 = scalar_lea.vmem [#allocation5], 65
    %v48 = vld [vmem:[%s47] ss:$4 sm:$0xff]
    %s49 = scalar_lea.vmem [#allocation5], 97
    %v50 = vld [vmem:[%s49] ss:$4 sm:$0xff]
    %s51 = scalar_lea.vmem [#allocation5], 2
    %v52 = vld [vmem:[%s51] ss:$4 sm:$0xff]
    %s53 = scalar_lea.vmem [#allocation5], 34
    %v54 = vld [vmem:[%s53] ss:$4 sm:$0xff]
    %s55 = scalar_lea.vmem [#allocation5], 66
    %v56 = vld [vmem:[%s55] ss:$4 sm:$0xff]
    %s57 = scalar_lea.vmem [#allocation5], 98
    %v58 = vld [vmem:[%s57] ss:$4 sm:$0xff]
    %s59 = sld [smem:[#allocation2]]
    %s60 = sld [smem:[#allocation2 + $0x1]]
    %s61 = sld [smem:[#allocation2 + $0x2]]
    %s62 = sld [smem:[#allocation2 + $0x3]]
    %s63 = sld [smem:[#allocation2 + $0x4]]
    %s64 = sld [smem:[#allocation2 + $0x5]]
    %s65 = sld [smem:[#allocation2 + $0x6]]
    %s66 = sld [smem:[#allocation2 + $0x7]]
    %s67 = sld [smem:[#allocation2 + $0x8]]
    %v68 = vstv %s59
    %v69 = vmul.f32 %v36, %v68
    %v70 = vmul.f32 %v38, %v68
    %v71 = vmul.f32 %v40, %v68
    %v72 = vmul.f32 %v42, %v68
    %v73 = vstv %s62
    %v74 = vmul.f32 %v44, %v73
    %v75 = vmul.f32 %v46, %v73
    %v76 = vmul.f32 %v48, %v73
    %v77 = vmul.f32 %v50, %v73
    %v78 = vadd.f32 %v69, %v74
    %v79 = vadd.f32 %v70, %v75
    %v80 = vadd.f32 %v71, %v76
    %v81 = vadd.f32 %v72, %v77
    %v82 = vstv %s65
    %v83 = vmul.f32 %v52, %v82
    %v84 = vmul.f32 %v54, %v82
    %v85 = vmul.f32 %v56, %v82
    %v86 = vmul.f32 %v58, %v82
    %v87 = vadd.f32 %v78, %v83
    %v88 = vadd.f32 %v79, %v84
    %v89 = vadd.f32 %v80, %v85
    %v90 = vadd.f32 %v81, %v86
    %v91 = vstv %s60
    %v92 = vmul.f32 %v36, %v91
    %v93 = vmul.f32 %v38, %v91
    %v94 = vmul.f32 %v40, %v91
    %v95 = vmul.f32 %v42, %v91
    %v96 = vstv %s63
    %v97 = vmul.f32 %v44, %v96
    %v98 = vmul.f32 %v46, %v96
    %v99 = vmul.f32 %v48, %v96
    %v100 = vmul.f32 %v50, %v96
    %v101 = vadd.f32 %v92, %v97
    %v102 = vadd.f32 %v93, %v98
    %v103 = vadd.f32 %v94, %v99
    %v104 = vadd.f32 %v95, %v100
    %v105 = vstv %s66
    %v106 = vmul.f32 %v52, %v105
    %v107 = vmul.f32 %v54, %v105
    %v108 = vmul.f32 %v56, %v105
    %v109 = vmul.f32 %v58, %v105
    %v110 = vadd.f32 %v101, %v106
    %v111 = vadd.f32 %v102, %v107
    %v112 = vadd.f32 %v103, %v108
    %v113 = vadd.f32 %v104, %v109
    %v114 = vstv %s61
    %v115 = vmul.f32 %v36, %v114
    %v116 = vmul.f32 %v38, %v114
    %v117 = vmul.f32 %v40, %v114
    %v118 = vmul.f32 %v42, %v114
    %v119 = vstv %s64
    %v120 = vmul.f32 %v44, %v119
    %v121 = vmul.f32 %v46, %v119
    %v122 = vmul.f32 %v48, %v119
    %v123 = vmul.f32 %v50, %v119
    %v124 = vadd.f32 %v115, %v120
    %v125 = vadd.f32 %v116, %v121
    %v126 = vadd.f32 %v117, %v122
    %v127 = vadd.f32 %v118, %v123
    %v128 = vstv %s67
    %v129 = vmul.f32 %v52, %v128
    %v130 = vmul.f32 %v54, %v128
    %v131 = vmul.f32 %v56, %v128
    %v132 = vmul.f32 %v58, %v128
    %v133 = vadd.f32 %v124, %v129
    %v134 = vadd.f32 %v125, %v130
    %v135 = vadd.f32 %v126, %v131
    %v136 = vadd.f32 %v127, %v132
    %v137 = vadd.f32 %v87, 1.0
    %v138 = vadd.f32 %v88, 1.0
    %v139 = vadd.f32 %v89, 1.0
    %v140 = vadd.f32 %v90, 1.0
    %v141 = vmul.f32 %v137, 7.5
    %v142 = vmul.f32 %v138, 7.5
    %v143 = vmul.f32 %v139, 7.5
    %v144 = vmul.f32 %v140, 7.5
    %v145 = vadd.f32 %v110, 1.0
    %v146 = vadd.f32 %v111, 1.0
    %v147 = vadd.f32 %v112, 1.0
    %v148 = vadd.f32 %v113, 1.0
    %v149 = vmul.f32 %v145, 7.5
    %v150 = vmul.f32 %v146, 7.5
    %v151 = vmul.f32 %v147, 7.5
    %v152 = vmul.f32 %v148, 7.5
    %v153 = vadd.f32 %v133, 1.0
    %v154 = vadd.f32 %v134, 1.0
    %v155 = vadd.f32 %v135, 1.0
    %v156 = vadd.f32 %v136, 1.0
    %v157 = vmul.f32 %v153, 7.5
    %v158 = vmul.f32 %v154, 7.5
    %v159 = vmul.f32 %v155, 7.5
    %v160 = vmul.f32 %v156, 7.5
    %v161 = vfloor.f32 %v141
    %v162 = vfloor.f32 %v142
    %v163 = vfloor.f32 %v143
    %v164 = vfloor.f32 %v144
    %v165 = vfloor.f32 %v149
    %v166 = vfloor.f32 %v150
    %v167 = vfloor.f32 %v151
    %v168 = vfloor.f32 %v152
    %v169 = vfloor.f32 %v157
    %v170 = vfloor.f32 %v158
    %v171 = vfloor.f32 %v159
    %v172 = vfloor.f32 %v160
    %v173 = vmax.f32 %v161, 0.0
    %v174 = vmax.f32 %v162, 0.0
    %v175 = vmax.f32 %v163, 0.0
    %v176 = vmax.f32 %v164, 0.0
    %v177 = vmin.f32 %v173, 15.0
    %v178 = vmin.f32 %v174, 15.0
    %v179 = vmin.f32 %v175, 15.0
    %v180 = vmin.f32 %v176, 15.0
    %v181 = vcvt.f32.s32.to.zero.pseudo %v177
    %v182 = vcvt.f32.s32.to.zero.pseudo %v178
    %v183 = vcvt.f32.s32.to.zero.pseudo %v179
    %v184 = vcvt.f32.s32.to.zero.pseudo %v180
    %v185 = vadd.f32 %v161, 1.0
    %v186 = vadd.f32 %v162, 1.0
    %v187 = vadd.f32 %v163, 1.0
    %v188 = vadd.f32 %v164, 1.0
    %v189 = vmax.f32 %v185, 0.0
    %v190 = vmax.f32 %v186, 0.0
    %v191 = vmax.f32 %v187, 0.0
    %v192 = vmax.f32 %v188, 0.0
    %v193 = vmin.f32 %v189, 15.0
    %v194 = vmin.f32 %v190, 15.0
    %v195 = vmin.f32 %v191, 15.0
    %v196 = vmin.f32 %v192, 15.0
    %v197 = vcvt.f32.s32.to.zero.pseudo %v193
    %v198 = vcvt.f32.s32.to.zero.pseudo %v194
    %v199 = vcvt.f32.s32.to.zero.pseudo %v195
    %v200 = vcvt.f32.s32.to.zero.pseudo %v196
    %v201 = vmax.f32 %v165, 0.0
    %v202 = vmax.f32 %v166, 0.0
    %v203 = vmax.f32 %v167, 0.0
    %v204 = vmax.f32 %v168, 0.0
    %v205 = vmin.f32 %v201, 15.0
    %v206 = vmin.f32 %v202, 15.0
    %v207 = vmin.f32 %v203, 15.0
    %v208 = vmin.f32 %v204, 15.0
    %v209 = vcvt.f32.s32.to.zero.pseudo %v205
    %v210 = vcvt.f32.s32.to.zero.pseudo %v206
    %v211 = vcvt.f32.s32.to.zero.pseudo %v207
    %v212 = vcvt.f32.s32.to.zero.pseudo %v208
    %v213 = vadd.f32 %v165, 1.0
    %v214 = vadd.f32 %v166, 1.0
    %v215 = vadd.f32 %v167, 1.0
    %v216 = vadd.f32 %v168, 1.0
    %v217 = vmax.f32 %v213, 0.0
    %v218 = vmax.f32 %v214, 0.0
    %v219 = vmax.f32 %v215, 0.0
    %v220 = vmax.f32 %v216, 0.0
    %v221 = vmin.f32 %v217, 15.0
    %v222 = vmin.f32 %v218, 15.0
    %v223 = vmin.f32 %v219, 15.0
    %v224 = vmin.f32 %v220, 15.0
    %v225 = vcvt.f32.s32.to.zero.pseudo %v221
    %v226 = vcvt.f32.s32.to.zero.pseudo %v222
    %v227 = vcvt.f32.s32.to.zero.pseudo %v223
    %v228 = vcvt.f32.s32.to.zero.pseudo %v224
    %v229 = vmax.f32 %v169, 0.0
    %v230 = vmax.f32 %v170, 0.0
    %v231 = vmax.f32 %v171, 0.0
    %v232 = vmax.f32 %v172, 0.0
    %v233 = vmin.f32 %v229, 15.0
    %v234 = vmin.f32 %v230, 15.0
    %v235 = vmin.f32 %v231, 15.0
    %v236 = vmin.f32 %v232, 15.0
    %v237 = vcvt.f32.s32.to.zero.pseudo %v233
    %v238 = vcvt.f32.s32.to.zero.pseudo %v234
    %v239 = vcvt.f32.s32.to.zero.pseudo %v235
    %v240 = vcvt.f32.s32.to.zero.pseudo %v236
    %v241 = vadd.f32 %v169, 1.0
    %v242 = vadd.f32 %v170, 1.0
    %v243 = vadd.f32 %v171, 1.0
    %v244 = vadd.f32 %v172, 1.0
    %v245 = vmax.f32 %v241, 0.0
    %v246 = vmax.f32 %v242, 0.0
    %v247 = vmax.f32 %v243, 0.0
    %v248 = vmax.f32 %v244, 0.0
    %v249 = vmin.f32 %v245, 15.0
    %v250 = vmin.f32 %v246, 15.0
    %v251 = vmin.f32 %v247, 15.0
    %v252 = vmin.f32 %v248, 15.0
    %v253 = vcvt.f32.s32.to.zero.pseudo %v249
    %v254 = vcvt.f32.s32.to.zero.pseudo %v250
    %v255 = vcvt.f32.s32.to.zero.pseudo %v251
    %v256 = vcvt.f32.s32.to.zero.pseudo %v252
    %v257 = vmul.u32 %v237, 256
    %v258 = vmul.u32 %v238, 256
    %v259 = vmul.u32 %v239, 256
    %v260 = vmul.u32 %v240, 256
    %v261 = vmul.u32 %v209, 16
    %v262 = vmul.u32 %v210, 16
    %v263 = vmul.u32 %v211, 16
    %v264 = vmul.u32 %v212, 16
    %v265 = vadd.s32 %v257, %v261
    %v266 = vadd.s32 %v258, %v262
    %v267 = vadd.s32 %v259, %v263
    %v268 = vadd.s32 %v260, %v264
    %v269 = vadd.s32 %v265, %v181
    %v270 = vadd.s32 %v266, %v182
    %v271 = vadd.s32 %v267, %v183
    %v272 = vadd.s32 %v268, %v184
    %273 = vst [vmem:[%s2] ss:$8 sm:$0xf] %v269
    %274 = vst [vmem:[%s2] ss:$8 sm:$0xf0] %v269
    %s275 = scalar_lea.vmem %s2, 64
    %276 = vst [vmem:[%s275] ss:$8 sm:$0xf] %v270
    %277 = vst [vmem:[%s275] ss:$8 sm:$0xf0] %v270
    %s278 = scalar_lea.vmem %s2, 128
    %279 = vst [vmem:[%s278] ss:$8 sm:$0xf] %v271
    %280 = vst [vmem:[%s278] ss:$8 sm:$0xf0] %v271
    %s281 = scalar_lea.vmem %s2, 192
    %282 = vst [vmem:[%s281] ss:$8 sm:$0xf] %v272
    %283 = vst [vmem:[%s281] ss:$8 sm:$0xf0] %v272
    %v284 = vadd.s32 %v265, %v197
    %v285 = vadd.s32 %v266, %v198
    %v286 = vadd.s32 %v267, %v199
    %v287 = vadd.s32 %v268, %v200
    %s288 = scalar_lea.vmem %s2, 1
    %289 = vst [vmem:[%s288] ss:$8 sm:$0xf] %v284
    %290 = vst [vmem:[%s288] ss:$8 sm:$0xf0] %v284
    %s291 = scalar_lea.vmem %s2, 65
    %292 = vst [vmem:[%s291] ss:$8 sm:$0xf] %v285
    %293 = vst [vmem:[%s291] ss:$8 sm:$0xf0] %v285
    %s294 = scalar_lea.vmem %s2, 129
    %295 = vst [vmem:[%s294] ss:$8 sm:$0xf] %v286
    %296 = vst [vmem:[%s294] ss:$8 sm:$0xf0] %v286
    %s297 = scalar_lea.vmem %s2, 193
    %298 = vst [vmem:[%s297] ss:$8 sm:$0xf] %v287
    %299 = vst [vmem:[%s297] ss:$8 sm:$0xf0] %v287
    %v300 = vmul.u32 %v225, 16
    %v301 = vmul.u32 %v226, 16
    %v302 = vmul.u32 %v227, 16
    %v303 = vmul.u32 %v228, 16
    %v304 = vadd.s32 %v257, %v300
    %v305 = vadd.s32 %v258, %v301
    %v306 = vadd.s32 %v259, %v302
    %v307 = vadd.s32 %v260, %v303
    %v308 = vadd.s32 %v304, %v181
    %v309 = vadd.s32 %v305, %v182
    %v310 = vadd.s32 %v306, %v183
    %v311 = vadd.s32 %v307, %v184
    %s312 = scalar_lea.vmem %s2, 2
    %313 = vst [vmem:[%s312] ss:$8 sm:$0xf] %v308
    %314 = vst [vmem:[%s312] ss:$8 sm:$0xf0] %v308
    %s315 = scalar_lea.vmem %s2, 66
    %316 = vst [vmem:[%s315] ss:$8 sm:$0xf] %v309
    %317 = vst [vmem:[%s315] ss:$8 sm:$0xf0] %v309
    %s318 = scalar_lea.vmem %s2, 130
    %319 = vst [vmem:[%s318] ss:$8 sm:$0xf] %v310
    %320 = vst [vmem:[%s318] ss:$8 sm:$0xf0] %v310
    %s321 = scalar_lea.vmem %s2, 194
    %322 = vst [vmem:[%s321] ss:$8 sm:$0xf] %v311
    %323 = vst [vmem:[%s321] ss:$8 sm:$0xf0] %v311
    %v324 = vadd.s32 %v304, %v197
    %v325 = vadd.s32 %v305, %v198
    %v326 = vadd.s32 %v306, %v199
    %v327 = vadd.s32 %v307, %v200
    %s328 = scalar_lea.vmem %s2, 3
    %329 = vst [vmem:[%s328] ss:$8 sm:$0xf] %v324
    %330 = vst [vmem:[%s328] ss:$8 sm:$0xf0] %v324
    %s331 = scalar_lea.vmem %s2, 67
    %332 = vst [vmem:[%s331] ss:$8 sm:$0xf] %v325
    %333 = vst [vmem:[%s331] ss:$8 sm:$0xf0] %v325
    %s334 = scalar_lea.vmem %s2, 131
    %335 = vst [vmem:[%s334] ss:$8 sm:$0xf] %v326
    %336 = vst [vmem:[%s334] ss:$8 sm:$0xf0] %v326
    %s337 = scalar_lea.vmem %s2, 195
    %338 = vst [vmem:[%s337] ss:$8 sm:$0xf] %v327
    %339 = vst [vmem:[%s337] ss:$8 sm:$0xf0] %v327
    %v340 = vmul.u32 %v253, 256
    %v341 = vmul.u32 %v254, 256
    %v342 = vmul.u32 %v255, 256
    %v343 = vmul.u32 %v256, 256
    %v344 = vadd.s32 %v340, %v261
    %v345 = vadd.s32 %v341, %v262
    %v346 = vadd.s32 %v342, %v263
    %v347 = vadd.s32 %v343, %v264
    %v348 = vadd.s32 %v344, %v181
    %v349 = vadd.s32 %v345, %v182
    %v350 = vadd.s32 %v346, %v183
    %v351 = vadd.s32 %v347, %v184
    %s352 = scalar_lea.vmem %s2, 4
    %353 = vst [vmem:[%s352] ss:$8 sm:$0xf] %v348
    %354 = vst [vmem:[%s352] ss:$8 sm:$0xf0] %v348
    %s355 = scalar_lea.vmem %s2, 68
    %356 = vst [vmem:[%s355] ss:$8 sm:$0xf] %v349
    %357 = vst [vmem:[%s355] ss:$8 sm:$0xf0] %v349
    %s358 = scalar_lea.vmem %s2, 132
    %359 = vst [vmem:[%s358] ss:$8 sm:$0xf] %v350
    %360 = vst [vmem:[%s358] ss:$8 sm:$0xf0] %v350
    %s361 = scalar_lea.vmem %s2, 196
    %362 = vst [vmem:[%s361] ss:$8 sm:$0xf] %v351
    %363 = vst [vmem:[%s361] ss:$8 sm:$0xf0] %v351
    %v364 = vadd.s32 %v344, %v197
    %v365 = vadd.s32 %v345, %v198
    %v366 = vadd.s32 %v346, %v199
    %v367 = vadd.s32 %v347, %v200
    %s368 = scalar_lea.vmem %s2, 5
    %369 = vst [vmem:[%s368] ss:$8 sm:$0xf] %v364
    %370 = vst [vmem:[%s368] ss:$8 sm:$0xf0] %v364
    %s371 = scalar_lea.vmem %s2, 69
    %372 = vst [vmem:[%s371] ss:$8 sm:$0xf] %v365
    %373 = vst [vmem:[%s371] ss:$8 sm:$0xf0] %v365
    %s374 = scalar_lea.vmem %s2, 133
    %375 = vst [vmem:[%s374] ss:$8 sm:$0xf] %v366
    %376 = vst [vmem:[%s374] ss:$8 sm:$0xf0] %v366
    %s377 = scalar_lea.vmem %s2, 197
    %378 = vst [vmem:[%s377] ss:$8 sm:$0xf] %v367
    %379 = vst [vmem:[%s377] ss:$8 sm:$0xf0] %v367
    %v380 = vadd.s32 %v340, %v300
    %v381 = vadd.s32 %v341, %v301
    %v382 = vadd.s32 %v342, %v302
    %v383 = vadd.s32 %v343, %v303
    %v384 = vadd.s32 %v380, %v181
    %v385 = vadd.s32 %v381, %v182
    %v386 = vadd.s32 %v382, %v183
    %v387 = vadd.s32 %v383, %v184
    %s388 = scalar_lea.vmem %s2, 6
    %389 = vst [vmem:[%s388] ss:$8 sm:$0xf] %v384
    %390 = vst [vmem:[%s388] ss:$8 sm:$0xf0] %v384
    %s391 = scalar_lea.vmem %s2, 70
    %392 = vst [vmem:[%s391] ss:$8 sm:$0xf] %v385
    %393 = vst [vmem:[%s391] ss:$8 sm:$0xf0] %v385
    %s394 = scalar_lea.vmem %s2, 134
    %395 = vst [vmem:[%s394] ss:$8 sm:$0xf] %v386
    %396 = vst [vmem:[%s394] ss:$8 sm:$0xf0] %v386
    %s397 = scalar_lea.vmem %s2, 198
    %398 = vst [vmem:[%s397] ss:$8 sm:$0xf] %v387
    %399 = vst [vmem:[%s397] ss:$8 sm:$0xf0] %v387
    %v400 = vadd.s32 %v380, %v197
    %v401 = vadd.s32 %v381, %v198
    %v402 = vadd.s32 %v382, %v199
    %v403 = vadd.s32 %v383, %v200
    %s404 = scalar_lea.vmem %s2, 7
    %405 = vst [vmem:[%s404] ss:$8 sm:$0xf] %v400
    %406 = vst [vmem:[%s404] ss:$8 sm:$0xf0] %v400
    %s407 = scalar_lea.vmem %s2, 71
    %408 = vst [vmem:[%s407] ss:$8 sm:$0xf] %v401
    %409 = vst [vmem:[%s407] ss:$8 sm:$0xf0] %v401
    %s410 = scalar_lea.vmem %s2, 135
    %411 = vst [vmem:[%s410] ss:$8 sm:$0xf] %v402
    %412 = vst [vmem:[%s410] ss:$8 sm:$0xf0] %v402
    %s413 = scalar_lea.vmem %s2, 199
    %414 = vst [vmem:[%s413] ss:$8 sm:$0xf] %v403
    %415 = vst [vmem:[%s413] ss:$8 sm:$0xf0] %v403
    %v416 = vld [vmem:[#allocation5] ss:$4 sm:$0xff]
    %v417 = vld [vmem:[%s37] ss:$4 sm:$0xff]
    %v418 = vld [vmem:[%s39] ss:$4 sm:$0xff]
    %v419 = vld [vmem:[%s41] ss:$4 sm:$0xff]
    %v420 = vld [vmem:[%s43] ss:$4 sm:$0xff]
    %v421 = vld [vmem:[%s45] ss:$4 sm:$0xff]
    %v422 = vld [vmem:[%s47] ss:$4 sm:$0xff]
    %v423 = vld [vmem:[%s49] ss:$4 sm:$0xff]
    %v424 = vld [vmem:[%s51] ss:$4 sm:$0xff]
    %v425 = vld [vmem:[%s53] ss:$4 sm:$0xff]
    %v426 = vld [vmem:[%s55] ss:$4 sm:$0xff]
    %v427 = vld [vmem:[%s57] ss:$4 sm:$0xff]
    %s428 = sld [smem:[#allocation2 + $0x80]]
    %s429 = sld [smem:[#allocation2 + $0x81]]
    %s430 = sld [smem:[#allocation2 + $0x82]]
    %s431 = sld [smem:[#allocation2 + $0x83]]
    %s432 = sld [smem:[#allocation2 + $0x84]]
    %s433 = sld [smem:[#allocation2 + $0x85]]
    %s434 = sld [smem:[#allocation2 + $0x86]]
    %s435 = sld [smem:[#allocation2 + $0x87]]
    %s436 = sld [smem:[#allocation2 + $0x88]]
    %v437 = vstv %s428
    %v438 = vmul.f32 %v416, %v437
    %v439 = vmul.f32 %v417, %v437
    %v440 = vmul.f32 %v418, %v437
    %v441 = vmul.f32 %v419, %v437
    %v442 = vstv %s431
    %v443 = vmul.f32 %v420, %v442
    %v444 = vmul.f32 %v421, %v442
    %v445 = vmul.f32 %v422, %v442
    %v446 = vmul.f32 %v423, %v442
    %v447 = vadd.f32 %v438, %v443
    %v448 = vadd.f32 %v439, %v444
    %v449 = vadd.f32 %v440, %v445
    %v450 = vadd.f32 %v441, %v446
    %v451 = vstv %s434
    %v452 = vmul.f32 %v424, %v451
    %v453 = vmul.f32 %v425, %v451
    %v454 = vmul.f32 %v426, %v451
    %v455 = vmul.f32 %v427, %v451
    %v456 = vadd.f32 %v447, %v452
    %v457 = vadd.f32 %v448, %v453
    %v458 = vadd.f32 %v449, %v454
    %v459 = vadd.f32 %v450, %v455
    %v460 = vstv %s429
    %v461 = vmul.f32 %v416, %v460
    %v462 = vmul.f32 %v417, %v460
    %v463 = vmul.f32 %v418, %v460
    %v464 = vmul.f32 %v419, %v460
    %v465 = vstv %s432
    %v466 = vmul.f32 %v420, %v465
    %v467 = vmul.f32 %v421, %v465
    %v468 = vmul.f32 %v422, %v465
    %v469 = vmul.f32 %v423, %v465
    %v470 = vadd.f32 %v461, %v466
    %v471 = vadd.f32 %v462, %v467
    %v472 = vadd.f32 %v463, %v468
    %v473 = vadd.f32 %v464, %v469
    %v474 = vstv %s435
    %v475 = vmul.f32 %v424, %v474
    %v476 = vmul.f32 %v425, %v474
    %v477 = vmul.f32 %v426, %v474
    %v478 = vmul.f32 %v427, %v474
    %v479 = vadd.f32 %v470, %v475
    %v480 = vadd.f32 %v471, %v476
    %v481 = vadd.f32 %v472, %v477
    %v482 = vadd.f32 %v473, %v478
    %v483 = vstv %s430
    %v484 = vmul.f32 %v416, %v483
    %v485 = vmul.f32 %v417, %v483
    %v486 = vmul.f32 %v418, %v483
    %v487 = vmul.f32 %v419, %v483
    %v488 = vstv %s433
    %v489 = vmul.f32 %v420, %v488
    %v490 = vmul.f32 %v421, %v488
    %v491 = vmul.f32 %v422, %v488
    %v492 = vmul.f32 %v423, %v488
    %v493 = vadd.f32 %v484, %v489
    %v494 = vadd.f32 %v485, %v490
    %v495 = vadd.f32 %v486, %v491
    %v496 = vadd.f32 %v487, %v492
    %v497 = vstv %s436
    %v498 = vmul.f32 %v424, %v497
    %v499 = vmul.f32 %v425, %v497
    %v500 = vmul.f32 %v426, %v497
    %v501 = vmul.f32 %v427, %v497
    %v502 = vadd.f32 %v493, %v498
    %v503 = vadd.f32 %v494, %v499
    %v504 = vadd.f32 %v495, %v500
    %v505 = vadd.f32 %v496, %v501
    %v506 = vadd.f32 %v456, 1.0
    %v507 = vadd.f32 %v457, 1.0
    %v508 = vadd.f32 %v458, 1.0
    %v509 = vadd.f32 %v459, 1.0
    %v510 = vmul.f32 %v506, 7.5
    %v511 = vmul.f32 %v507, 7.5
    %v512 = vmul.f32 %v508, 7.5
    %v513 = vmul.f32 %v509, 7.5
    %v514 = vadd.f32 %v479, 1.0
    %v515 = vadd.f32 %v480, 1.0
    %v516 = vadd.f32 %v481, 1.0
    %v517 = vadd.f32 %v482, 1.0
    %v518 = vmul.f32 %v514, 7.5
    %v519 = vmul.f32 %v515, 7.5
    %v520 = vmul.f32 %v516, 7.5
    %v521 = vmul.f32 %v517, 7.5
    %v522 = vadd.f32 %v502, 1.0
    %v523 = vadd.f32 %v503, 1.0
    %v524 = vadd.f32 %v504, 1.0
    %v525 = vadd.f32 %v505, 1.0
    %v526 = vmul.f32 %v522, 7.5
    %v527 = vmul.f32 %v523, 7.5
    %v528 = vmul.f32 %v524, 7.5
    %v529 = vmul.f32 %v525, 7.5
    %v530 = vfloor.f32 %v510
    %v531 = vfloor.f32 %v511
    %v532 = vfloor.f32 %v512
    %v533 = vfloor.f32 %v513
    %v534 = vfloor.f32 %v518
    %v535 = vfloor.f32 %v519
    %v536 = vfloor.f32 %v520
    %v537 = vfloor.f32 %v521
    %v538 = vfloor.f32 %v526
    %v539 = vfloor.f32 %v527
    %v540 = vfloor.f32 %v528
    %v541 = vfloor.f32 %v529
    %v542 = vmax.f32 %v530, 0.0
    %v543 = vmax.f32 %v531, 0.0
    %v544 = vmax.f32 %v532, 0.0
    %v545 = vmax.f32 %v533, 0.0
    %v546 = vmin.f32 %v542, 15.0
    %v547 = vmin.f32 %v543, 15.0
    %v548 = vmin.f32 %v544, 15.0
    %v549 = vmin.f32 %v545, 15.0
    %v550 = vcvt.f32.s32.to.zero.pseudo %v546
    %v551 = vcvt.f32.s32.to.zero.pseudo %v547
    %v552 = vcvt.f32.s32.to.zero.pseudo %v548
    %v553 = vcvt.f32.s32.to.zero.pseudo %v549
    %v554 = vadd.f32 %v530, 1.0
    %v555 = vadd.f32 %v531, 1.0
    %v556 = vadd.f32 %v532, 1.0
    %v557 = vadd.f32 %v533, 1.0
    %v558 = vmax.f32 %v554, 0.0
    %v559 = vmax.f32 %v555, 0.0
    %v560 = vmax.f32 %v556, 0.0
    %v561 = vmax.f32 %v557, 0.0
    %v562 = vmin.f32 %v558, 15.0
    %v563 = vmin.f32 %v559, 15.0
    %v564 = vmin.f32 %v560, 15.0
    %v565 = vmin.f32 %v561, 15.0
    %v566 = vcvt.f32.s32.to.zero.pseudo %v562
    %v567 = vcvt.f32.s32.to.zero.pseudo %v563
    %v568 = vcvt.f32.s32.to.zero.pseudo %v564
    %v569 = vcvt.f32.s32.to.zero.pseudo %v565
    %v570 = vmax.f32 %v534, 0.0
    %v571 = vmax.f32 %v535, 0.0
    %v572 = vmax.f32 %v536, 0.0
    %v573 = vmax.f32 %v537, 0.0
    %v574 = vmin.f32 %v570, 15.0
    %v575 = vmin.f32 %v571, 15.0
    %v576 = vmin.f32 %v572, 15.0
    %v577 = vmin.f32 %v573, 15.0
    %v578 = vcvt.f32.s32.to.zero.pseudo %v574
    %v579 = vcvt.f32.s32.to.zero.pseudo %v575
    %v580 = vcvt.f32.s32.to.zero.pseudo %v576
    %v581 = vcvt.f32.s32.to.zero.pseudo %v577
    %v582 = vadd.f32 %v534, 1.0
    %v583 = vadd.f32 %v535, 1.0
    %v584 = vadd.f32 %v536, 1.0
    %v585 = vadd.f32 %v537, 1.0
    %v586 = vmax.f32 %v582, 0.0
    %v587 = vmax.f32 %v583, 0.0
    %v588 = vmax.f32 %v584, 0.0
    %v589 = vmax.f32 %v585, 0.0
    %v590 = vmin.f32 %v586, 15.0
    %v591 = vmin.f32 %v587, 15.0
    %v592 = vmin.f32 %v588, 15.0
    %v593 = vmin.f32 %v589, 15.0
    %v594 = vcvt.f32.s32.to.zero.pseudo %v590
    %v595 = vcvt.f32.s32.to.zero.pseudo %v591
    %v596 = vcvt.f32.s32.to.zero.pseudo %v592
    %v597 = vcvt.f32.s32.to.zero.pseudo %v593
    %v598 = vmax.f32 %v538, 0.0
    %v599 = vmax.f32 %v539, 0.0
    %v600 = vmax.f32 %v540, 0.0
    %v601 = vmax.f32 %v541, 0.0
    %v602 = vmin.f32 %v598, 15.0
    %v603 = vmin.f32 %v599, 15.0
    %v604 = vmin.f32 %v600, 15.0
    %v605 = vmin.f32 %v601, 15.0
    %v606 = vcvt.f32.s32.to.zero.pseudo %v602
    %v607 = vcvt.f32.s32.to.zero.pseudo %v603
    %v608 = vcvt.f32.s32.to.zero.pseudo %v604
    %v609 = vcvt.f32.s32.to.zero.pseudo %v605
    %v610 = vadd.f32 %v538, 1.0
    %v611 = vadd.f32 %v539, 1.0
    %v612 = vadd.f32 %v540, 1.0
    %v613 = vadd.f32 %v541, 1.0
    %v614 = vmax.f32 %v610, 0.0
    %v615 = vmax.f32 %v611, 0.0
    %v616 = vmax.f32 %v612, 0.0
    %v617 = vmax.f32 %v613, 0.0
    %v618 = vmin.f32 %v614, 15.0
    %v619 = vmin.f32 %v615, 15.0
    %v620 = vmin.f32 %v616, 15.0
    %v621 = vmin.f32 %v617, 15.0
    %v622 = vcvt.f32.s32.to.zero.pseudo %v618
    %v623 = vcvt.f32.s32.to.zero.pseudo %v619
    %v624 = vcvt.f32.s32.to.zero.pseudo %v620
    %v625 = vcvt.f32.s32.to.zero.pseudo %v621
    %v626 = vmul.u32 %v606, 256
    %v627 = vmul.u32 %v607, 256
    %v628 = vmul.u32 %v608, 256
    %v629 = vmul.u32 %v609, 256
    %v630 = vmul.u32 %v578, 16
    %v631 = vmul.u32 %v579, 16
    %v632 = vmul.u32 %v580, 16
    %v633 = vmul.u32 %v581, 16
    %v634 = vadd.s32 %v626, %v630
    %v635 = vadd.s32 %v627, %v631
    %v636 = vadd.s32 %v628, %v632
    %v637 = vadd.s32 %v629, %v633
    %v638 = vadd.s32 %v634, %v550
    %v639 = vadd.s32 %v635, %v551
    %v640 = vadd.s32 %v636, %v552
    %v641 = vadd.s32 %v637, %v553
    %s642 = scalar_lea.vmem %s2, 256
    %643 = vst [vmem:[%s642] ss:$8 sm:$0xf] %v638
    %644 = vst [vmem:[%s642] ss:$8 sm:$0xf0] %v638
    %s645 = scalar_lea.vmem %s2, 320
    %646 = vst [vmem:[%s645] ss:$8 sm:$0xf] %v639
    %647 = vst [vmem:[%s645] ss:$8 sm:$0xf0] %v639
    %s648 = scalar_lea.vmem %s2, 384
    %649 = vst [vmem:[%s648] ss:$8 sm:$0xf] %v640
    %650 = vst [vmem:[%s648] ss:$8 sm:$0xf0] %v640
    %s651 = scalar_lea.vmem %s2, 448
    %652 = vst [vmem:[%s651] ss:$8 sm:$0xf] %v641
    %653 = vst [vmem:[%s651] ss:$8 sm:$0xf0] %v641
    %v654 = vadd.s32 %v634, %v566
    %v655 = vadd.s32 %v635, %v567
    %v656 = vadd.s32 %v636, %v568
    %v657 = vadd.s32 %v637, %v569
    %s658 = scalar_lea.vmem %s2, 257
    %659 = vst [vmem:[%s658] ss:$8 sm:$0xf] %v654
    %660 = vst [vmem:[%s658] ss:$8 sm:$0xf0] %v654
    %s661 = scalar_lea.vmem %s2, 321
    %662 = vst [vmem:[%s661] ss:$8 sm:$0xf] %v655
    %663 = vst [vmem:[%s661] ss:$8 sm:$0xf0] %v655
    %s664 = scalar_lea.vmem %s2, 385
    %665 = vst [vmem:[%s664] ss:$8 sm:$0xf] %v656
    %666 = vst [vmem:[%s664] ss:$8 sm:$0xf0] %v656
    %s667 = scalar_lea.vmem %s2, 449
    %668 = vst [vmem:[%s667] ss:$8 sm:$0xf] %v657
    %669 = vst [vmem:[%s667] ss:$8 sm:$0xf0] %v657
    %v670 = vmul.u32 %v594, 16
    %v671 = vmul.u32 %v595, 16
    %v672 = vmul.u32 %v596, 16
    %v673 = vmul.u32 %v597, 16
    %v674 = vadd.s32 %v626, %v670
    %v675 = vadd.s32 %v627, %v671
    %v676 = vadd.s32 %v628, %v672
    %v677 = vadd.s32 %v629, %v673
    %v678 = vadd.s32 %v674, %v550
    %v679 = vadd.s32 %v675, %v551
    %v680 = vadd.s32 %v676, %v552
    %v681 = vadd.s32 %v677, %v553
    %s682 = scalar_lea.vmem %s2, 258
    %683 = vst [vmem:[%s682] ss:$8 sm:$0xf] %v678
    %684 = vst [vmem:[%s682] ss:$8 sm:$0xf0] %v678
    %s685 = scalar_lea.vmem %s2, 322
    %686 = vst [vmem:[%s685] ss:$8 sm:$0xf] %v679
    %687 = vst [vmem:[%s685] ss:$8 sm:$0xf0] %v679
    %s688 = scalar_lea.vmem %s2, 386
    %689 = vst [vmem:[%s688] ss:$8 sm:$0xf] %v680
    %690 = vst [vmem:[%s688] ss:$8 sm:$0xf0] %v680
    %s691 = scalar_lea.vmem %s2, 450
    %692 = vst [vmem:[%s691] ss:$8 sm:$0xf] %v681
    %693 = vst [vmem:[%s691] ss:$8 sm:$0xf0] %v681
    %v694 = vadd.s32 %v674, %v566
    %v695 = vadd.s32 %v675, %v567
    %v696 = vadd.s32 %v676, %v568
    %v697 = vadd.s32 %v677, %v569
    %s698 = scalar_lea.vmem %s2, 259
    %699 = vst [vmem:[%s698] ss:$8 sm:$0xf] %v694
    %700 = vst [vmem:[%s698] ss:$8 sm:$0xf0] %v694
    %s701 = scalar_lea.vmem %s2, 323
    %702 = vst [vmem:[%s701] ss:$8 sm:$0xf] %v695
    %703 = vst [vmem:[%s701] ss:$8 sm:$0xf0] %v695
    %s704 = scalar_lea.vmem %s2, 387
    %705 = vst [vmem:[%s704] ss:$8 sm:$0xf] %v696
    %706 = vst [vmem:[%s704] ss:$8 sm:$0xf0] %v696
    %s707 = scalar_lea.vmem %s2, 451
    %708 = vst [vmem:[%s707] ss:$8 sm:$0xf] %v697
    %709 = vst [vmem:[%s707] ss:$8 sm:$0xf0] %v697
    %v710 = vmul.u32 %v622, 256
    %v711 = vmul.u32 %v623, 256
    %v712 = vmul.u32 %v624, 256
    %v713 = vmul.u32 %v625, 256
    %v714 = vadd.s32 %v710, %v630
    %v715 = vadd.s32 %v711, %v631
    %v716 = vadd.s32 %v712, %v632
    %v717 = vadd.s32 %v713, %v633
    %v718 = vadd.s32 %v714, %v550
    %v719 = vadd.s32 %v715, %v551
    %v720 = vadd.s32 %v716, %v552
    %v721 = vadd.s32 %v717, %v553
    %s722 = scalar_lea.vmem %s2, 260
    %723 = vst [vmem:[%s722] ss:$8 sm:$0xf] %v718
    %724 = vst [vmem:[%s722] ss:$8 sm:$0xf0] %v718
    %s725 = scalar_lea.vmem %s2, 324
    %726 = vst [vmem:[%s725] ss:$8 sm:$0xf] %v719
    %727 = vst [vmem:[%s725] ss:$8 sm:$0xf0] %v719
    %s728 = scalar_lea.vmem %s2, 388
    %729 = vst [vmem:[%s728] ss:$8 sm:$0xf] %v720
    %730 = vst [vmem:[%s728] ss:$8 sm:$0xf0] %v720
    %s731 = scalar_lea.vmem %s2, 452
    %732 = vst [vmem:[%s731] ss:$8 sm:$0xf] %v721
    %733 = vst [vmem:[%s731] ss:$8 sm:$0xf0] %v721
    %v734 = vadd.s32 %v714, %v566
    %v735 = vadd.s32 %v715, %v567
    %v736 = vadd.s32 %v716, %v568
    %v737 = vadd.s32 %v717, %v569
    %s738 = scalar_lea.vmem %s2, 261
    %739 = vst [vmem:[%s738] ss:$8 sm:$0xf] %v734
    %740 = vst [vmem:[%s738] ss:$8 sm:$0xf0] %v734
    %s741 = scalar_lea.vmem %s2, 325
    %742 = vst [vmem:[%s741] ss:$8 sm:$0xf] %v735
    %743 = vst [vmem:[%s741] ss:$8 sm:$0xf0] %v735
    %s744 = scalar_lea.vmem %s2, 389
    %745 = vst [vmem:[%s744] ss:$8 sm:$0xf] %v736
    %746 = vst [vmem:[%s744] ss:$8 sm:$0xf0] %v736
    %s747 = scalar_lea.vmem %s2, 453
    %748 = vst [vmem:[%s747] ss:$8 sm:$0xf] %v737
    %749 = vst [vmem:[%s747] ss:$8 sm:$0xf0] %v737
    %v750 = vadd.s32 %v710, %v670
    %v751 = vadd.s32 %v711, %v671
    %v752 = vadd.s32 %v712, %v672
    %v753 = vadd.s32 %v713, %v673
    %v754 = vadd.s32 %v750, %v550
    %v755 = vadd.s32 %v751, %v551
    %v756 = vadd.s32 %v752, %v552
    %v757 = vadd.s32 %v753, %v553
    %s758 = scalar_lea.vmem %s2, 262
    %759 = vst [vmem:[%s758] ss:$8 sm:$0xf] %v754
    %760 = vst [vmem:[%s758] ss:$8 sm:$0xf0] %v754
    %s761 = scalar_lea.vmem %s2, 326
    %762 = vst [vmem:[%s761] ss:$8 sm:$0xf] %v755
    %763 = vst [vmem:[%s761] ss:$8 sm:$0xf0] %v755
    %s764 = scalar_lea.vmem %s2, 390
    %765 = vst [vmem:[%s764] ss:$8 sm:$0xf] %v756
    %766 = vst [vmem:[%s764] ss:$8 sm:$0xf0] %v756
    %s767 = scalar_lea.vmem %s2, 454
    %768 = vst [vmem:[%s767] ss:$8 sm:$0xf] %v757
    %769 = vst [vmem:[%s767] ss:$8 sm:$0xf0] %v757
    %v770 = vadd.s32 %v750, %v566
    %v771 = vadd.s32 %v751, %v567
    %v772 = vadd.s32 %v752, %v568
    %v773 = vadd.s32 %v753, %v569
    %s774 = scalar_lea.vmem %s2, 263
    %775 = vst [vmem:[%s774] ss:$8 sm:$0xf] %v770
    %776 = vst [vmem:[%s774] ss:$8 sm:$0xf0] %v770
    %s777 = scalar_lea.vmem %s2, 327
    %778 = vst [vmem:[%s777] ss:$8 sm:$0xf] %v771
    %779 = vst [vmem:[%s777] ss:$8 sm:$0xf0] %v771
    %s780 = scalar_lea.vmem %s2, 391
    %781 = vst [vmem:[%s780] ss:$8 sm:$0xf] %v772
    %782 = vst [vmem:[%s780] ss:$8 sm:$0xf0] %v772
    %s783 = scalar_lea.vmem %s2, 455
    %784 = vst [vmem:[%s783] ss:$8 sm:$0xf] %v773
    %785 = vst [vmem:[%s783] ss:$8 sm:$0xf0] %v773
    // Predicated region
    $region18: #{a_call__.3} parent=1 // pred_check
      _
    $region19: #{a_call__.3} parent=1 // pred_check_branch
      %787 = sbr.rel (0) target = $region21
    $region20: #{a_call__.3} parent=1 // pred_region
      _
    $region21: #{a_call__.3} parent=1 // pred_fallthru
      _
    // Predicated region
    $region22: #{a_call__.3} parent=1 // pred_check
      _
    $region23: #{a_call__.3} parent=1 // pred_check_branch
      %789 = sbr.rel (0) target = $region25
    $region24: #{a_call__.3} parent=1 // pred_region
      _
    $region25: #{a_call__.3} parent=1 // pred_fallthru
      _
    %790 = vsyncpa [#allocation3], 1
    %791 = vsyncpa [#allocation4], 1

// kernel: a_call__.4
$region0: #{a_call__.4}
  #allocation0 [shape = 'u32[]', space=smem, size = 0x4, offset = 0x4, fixed_abs, tag = 'smem constant byte address 0x4 - core index']
  #allocation1 [shape = 'u32[144,128]{1,0:T(1,128)}', space=vmem, size = 0x12000, scoped, tag = 'internal scratch']
  %s0 = inlined_call_operand.vmem [shape: f32[2,9], index: 0, kind: input, shape index: {}]
  %s1 = inlined_call_operand.vmem [shape: f32[3,4096], index: 1, kind: input, shape index: {}]
  %s2 = inlined_call_operand.vmem [shape: f32[16,4096], index: 2, kind: input, shape index: {}]
  %s3 = inlined_call_operand.vmem [shape: f32[1,256], index: 3, kind: input, shape index: {}]
  %s4 = inlined_call_operand.vmem [shape: f32[2,256], index: 4, kind: output, shape index: {}]
  %s5 = sld [smem:[#allocation0]]
  $region30: #{a_call__.4} parent=0
    _
  %s7 = ssub.s32 1, %s5
  %s8 = scalar_select 0, %s7, %s5
  $region1: #{a_call__.4} parent=0
    #allocation2 [shape = 'u8[1024]{0}', space=smem, size = 0x400, scoped, tag = 'input window, operand 0, single buffered']
    #allocation3 [shape = 's32[1]{0}', space=sflag, size = 0x4, scoped, tag = 'scoped memory for a_call__.4']
    %9 = vsyncpa [#allocation3], 0
    // Predicated region
    $region2: #{a_call__.4} parent=1 // pred_check
      _
    $region3: #{a_call__.4} parent=1 // pred_check_branch
      %11 = sbr.rel (0) target = $region5
    $region4: #{a_call__.4} parent=1 // pred_region
      %s13 = ssub.s32 32, 32
      %14 = vsyncadd [#allocation3], %s13
      %s16 = sshll.u32 %s0, 4
      %s17 = int_to_ptr.vmem [resolvable:$true] %s16
      %19 = dma.vmem_to_smem %s17, 32, [#allocation2], [#allocation3]
    $region5: #{a_call__.4} parent=1 // pred_fallthru
      _
    // Predicated region
    $region6: #{a_call__.4} parent=1 // pred_check
      _
    $region7: #{a_call__.4} parent=1 // pred_check_branch
      %21 = sbr.rel (0) target = $region9
    $region8: #{a_call__.4} parent=1 // pred_region
      _
    $region9: #{a_call__.4} parent=1 // pred_fallthru
      _
    // Predicated region
    $region10: #{a_call__.4} parent=1 // pred_check
      _
    $region11: #{a_call__.4} parent=1 // pred_check_branch
      %23 = sbr.rel (0) target = $region13
    $region12: #{a_call__.4} parent=1 // pred_region
      _
    $region13: #{a_call__.4} parent=1 // pred_fallthru
      _
    // Predicated region
    $region14: #{a_call__.4} parent=1 // pred_check
      _
    $region15: #{a_call__.4} parent=1 // pred_check_branch
      %25 = sbr.rel (0) target = $region17
    $region16: #{a_call__.4} parent=1 // pred_region
      _
    $region17: #{a_call__.4} parent=1 // pred_fallthru
      _
    // Predicated region
    $region18: #{a_call__.4} parent=1 // pred_check
      _
    $region19: #{a_call__.4} parent=1 // pred_check_branch
      %27 = sbr.rel (0) target = $region21
    $region20: #{a_call__.4} parent=1 // pred_region
      %28 = dma.done [#allocation3], 32
    $region21: #{a_call__.4} parent=1 // pred_fallthru
      _
    %29 = sfence
    %v30 = vld [vmem:[%s3] sm:$0x3]
    %v31 = vld [vmem:[%s1] ss:$4 sm:$0xff]
    %s32 = scalar_lea.vmem %s1, 32
    %v33 = vld [vmem:[%s32] ss:$4 sm:$0xff]
    %s34 = scalar_lea.vmem %s1, 64
    %v35 = vld [vmem:[%s34] ss:$4 sm:$0xff]
    %s36 = scalar_lea.vmem %s1, 96
    %v37 = vld [vmem:[%s36] ss:$4 sm:$0xff]
    %s38 = scalar_lea.vmem %s1, 1
    %v39 = vld [vmem:[%s38] ss:$4 sm:$0xff]
    %s40 = scalar_lea.vmem %s1, 33
    %v41 = vld [vmem:[%s40] ss:$4 sm:$0xff]
    %s42 = scalar_lea.vmem %s1, 65
    %v43 = vld [vmem:[%s42] ss:$4 sm:$0xff]
    %s44 = scalar_lea.vmem %s1, 97
    %v45 = vld [vmem:[%s44] ss:$4 sm:$0xff]
    %s46 = scalar_lea.vmem %s1, 2
    %v47 = vld [vmem:[%s46] ss:$4 sm:$0xff]
    %s48 = scalar_lea.vmem %s1, 34
    %v49 = vld [vmem:[%s48] ss:$4 sm:$0xff]
    %s50 = scalar_lea.vmem %s1, 66
    %v51 = vld [vmem:[%s50] ss:$4 sm:$0xff]
    %s52 = scalar_lea.vmem %s1, 98
    %v53 = vld [vmem:[%s52] ss:$4 sm:$0xff]
    %s54 = sld [smem:[#allocation2]]
    %s55 = sld [smem:[#allocation2 + $0x1]]
    %s56 = sld [smem:[#allocation2 + $0x2]]
    %s57 = sld [smem:[#allocation2 + $0x3]]
    %s58 = sld [smem:[#allocation2 + $0x4]]
    %s59 = sld [smem:[#allocation2 + $0x5]]
    %s60 = sld [smem:[#allocation2 + $0x6]]
    %s61 = sld [smem:[#allocation2 + $0x7]]
    %s62 = sld [smem:[#allocation2 + $0x8]]
    %v63 = vstv %s54
    %v64 = vmul.f32 %v31, %v63
    %v65 = vmul.f32 %v33, %v63
    %v66 = vmul.f32 %v35, %v63
    %v67 = vmul.f32 %v37, %v63
    %v68 = vstv %s57
    %v69 = vmul.f32 %v39, %v68
    %v70 = vmul.f32 %v41, %v68
    %v71 = vmul.f32 %v43, %v68
    %v72 = vmul.f32 %v45, %v68
    %v73 = vadd.f32 %v64, %v69
    %v74 = vadd.f32 %v65, %v70
    %v75 = vadd.f32 %v66, %v71
    %v76 = vadd.f32 %v67, %v72
    %v77 = vstv %s60
    %v78 = vmul.f32 %v47, %v77
    %v79 = vmul.f32 %v49, %v77
    %v80 = vmul.f32 %v51, %v77
    %v81 = vmul.f32 %v53, %v77
    %v82 = vadd.f32 %v73, %v78
    %v83 = vadd.f32 %v74, %v79
    %v84 = vadd.f32 %v75, %v80
    %v85 = vadd.f32 %v76, %v81
    %v86 = vstv %s55
    %v87 = vmul.f32 %v31, %v86
    %v88 = vmul.f32 %v33, %v86
    %v89 = vmul.f32 %v35, %v86
    %v90 = vmul.f32 %v37, %v86
    %v91 = vstv %s58
    %v92 = vmul.f32 %v39, %v91
    %v93 = vmul.f32 %v41, %v91
    %v94 = vmul.f32 %v43, %v91
    %v95 = vmul.f32 %v45, %v91
    %v96 = vadd.f32 %v87, %v92
    %v97 = vadd.f32 %v88, %v93
    %v98 = vadd.f32 %v89, %v94
    %v99 = vadd.f32 %v90, %v95
    %v100 = vstv %s61
    %v101 = vmul.f32 %v47, %v100
    %v102 = vmul.f32 %v49, %v100
    %v103 = vmul.f32 %v51, %v100
    %v104 = vmul.f32 %v53, %v100
    %v105 = vadd.f32 %v96, %v101
    %v106 = vadd.f32 %v97, %v102
    %v107 = vadd.f32 %v98, %v103
    %v108 = vadd.f32 %v99, %v104
    %v109 = vstv %s56
    %v110 = vmul.f32 %v31, %v109
    %v111 = vmul.f32 %v33, %v109
    %v112 = vmul.f32 %v35, %v109
    %v113 = vmul.f32 %v37, %v109
    %v114 = vstv %s59
    %v115 = vmul.f32 %v39, %v114
    %v116 = vmul.f32 %v41, %v114
    %v117 = vmul.f32 %v43, %v114
    %v118 = vmul.f32 %v45, %v114
    %v119 = vadd.f32 %v110, %v115
    %v120 = vadd.f32 %v111, %v116
    %v121 = vadd.f32 %v112, %v117
    %v122 = vadd.f32 %v113, %v118
    %v123 = vstv %s62
    %v124 = vmul.f32 %v47, %v123
    %v125 = vmul.f32 %v49, %v123
    %v126 = vmul.f32 %v51, %v123
    %v127 = vmul.f32 %v53, %v123
    %v128 = vadd.f32 %v119, %v124
    %v129 = vadd.f32 %v120, %v125
    %v130 = vadd.f32 %v121, %v126
    %v131 = vadd.f32 %v122, %v127
    %v132 = vadd.f32 %v82, 1.0
    %v133 = vadd.f32 %v83, 1.0
    %v134 = vadd.f32 %v84, 1.0
    %v135 = vadd.f32 %v85, 1.0
    %v136 = vmul.f32 %v132, 7.5
    %v137 = vmul.f32 %v133, 7.5
    %v138 = vmul.f32 %v134, 7.5
    %v139 = vmul.f32 %v135, 7.5
    %v140 = vadd.f32 %v105, 1.0
    %v141 = vadd.f32 %v106, 1.0
    %v142 = vadd.f32 %v107, 1.0
    %v143 = vadd.f32 %v108, 1.0
    %v144 = vmul.f32 %v140, 7.5
    %v145 = vmul.f32 %v141, 7.5
    %v146 = vmul.f32 %v142, 7.5
    %v147 = vmul.f32 %v143, 7.5
    %v148 = vadd.f32 %v128, 1.0
    %v149 = vadd.f32 %v129, 1.0
    %v150 = vadd.f32 %v130, 1.0
    %v151 = vadd.f32 %v131, 1.0
    %v152 = vmul.f32 %v148, 7.5
    %v153 = vmul.f32 %v149, 7.5
    %v154 = vmul.f32 %v150, 7.5
    %v155 = vmul.f32 %v151, 7.5
    %v156 = vfloor.f32 %v136
    %v157 = vfloor.f32 %v137
    %v158 = vfloor.f32 %v138
    %v159 = vfloor.f32 %v139
    %v160 = vfloor.f32 %v144
    %v161 = vfloor.f32 %v145
    %v162 = vfloor.f32 %v146
    %v163 = vfloor.f32 %v147
    %v164 = vfloor.f32 %v152
    %v165 = vfloor.f32 %v153
    %v166 = vfloor.f32 %v154
    %v167 = vfloor.f32 %v155
    %v168 = vsub.f32 %v136, %v156
    %v169 = vsub.f32 %v137, %v157
    %v170 = vsub.f32 %v138, %v158
    %v171 = vsub.f32 %v139, %v159
    %v172 = vsub.f32 %v144, %v160
    %v173 = vsub.f32 %v145, %v161
    %v174 = vsub.f32 %v146, %v162
    %v175 = vsub.f32 %v147, %v163
    %v176 = vsub.f32 %v152, %v164
    %v177 = vsub.f32 %v153, %v165
    %v178 = vsub.f32 %v154, %v166
    %v179 = vsub.f32 %v155, %v167
    %vm180 = vcmp.ge.f32.partialorder %v156, 0.0
    %vm181 = vcmp.ge.f32.partialorder %v157, 0.0
    %vm182 = vcmp.ge.f32.partialorder %v158, 0.0
    %vm183 = vcmp.ge.f32.partialorder %v159, 0.0
    %vm184 = vcmp.le.f32.partialorder %v156, 15.0
    %vm185 = vcmp.le.f32.partialorder %v157, 15.0
    %vm186 = vcmp.le.f32.partialorder %v158, 15.0
    %vm187 = vcmp.le.f32.partialorder %v159, 15.0
    %vm188 = vmand %vm180, %vm184
    %vm189 = vmand %vm181, %vm185
    %vm190 = vmand %vm182, %vm186
    %vm191 = vmand %vm183, %vm187
    %v192 = vsub.f32 1.0, %v168
    %v193 = vsub.f32 1.0, %v169
    %v194 = vsub.f32 1.0, %v170
    %v195 = vsub.f32 1.0, %v171
    %v196 = vsel %vm188, %v192, 0.0
    %v197 = vsel %vm189, %v193, 0.0
    %v198 = vsel %vm190, %v194, 0.0
    %v199 = vsel %vm191, %v195, 0.0
    %v200 = vadd.f32 %v156, 1.0
    %v201 = vadd.f32 %v157, 1.0
    %v202 = vadd.f32 %v158, 1.0
    %v203 = vadd.f32 %v159, 1.0
    %vm204 = vcmp.ge.f32.partialorder %v200, 0.0
    %vm205 = vcmp.ge.f32.partialorder %v201, 0.0
    %vm206 = vcmp.ge.f32.partialorder %v202, 0.0
    %vm207 = vcmp.ge.f32.partialorder %v203, 0.0
    %vm208 = vcmp.le.f32.partialorder %v200, 15.0
    %vm209 = vcmp.le.f32.partialorder %v201, 15.0
    %vm210 = vcmp.le.f32.partialorder %v202, 15.0
    %vm211 = vcmp.le.f32.partialorder %v203, 15.0
    %vm212 = vmand %vm204, %vm208
    %vm213 = vmand %vm205, %vm209
    %vm214 = vmand %vm206, %vm210
    %vm215 = vmand %vm207, %vm211
    %v216 = vsel %vm212, %v168, 0.0
    %v217 = vsel %vm213, %v169, 0.0
    %v218 = vsel %vm214, %v170, 0.0
    %v219 = vsel %vm215, %v171, 0.0
    %vm220 = vcmp.ge.f32.partialorder %v160, 0.0
    %vm221 = vcmp.ge.f32.partialorder %v161, 0.0
    %vm222 = vcmp.ge.f32.partialorder %v162, 0.0
    %vm223 = vcmp.ge.f32.partialorder %v163, 0.0
    %vm224 = vcmp.le.f32.partialorder %v160, 15.0
    %vm225 = vcmp.le.f32.partialorder %v161, 15.0
    %vm226 = vcmp.le.f32.partialorder %v162, 15.0
    %vm227 = vcmp.le.f32.partialorder %v163, 15.0
    %vm228 = vmand %vm220, %vm224
    %vm229 = vmand %vm221, %vm225
    %vm230 = vmand %vm222, %vm226
    %vm231 = vmand %vm223, %vm227
    %v232 = vsub.f32 1.0, %v172
    %v233 = vsub.f32 1.0, %v173
    %v234 = vsub.f32 1.0, %v174
    %v235 = vsub.f32 1.0, %v175
    %v236 = vsel %vm228, %v232, 0.0
    %v237 = vsel %vm229, %v233, 0.0
    %v238 = vsel %vm230, %v234, 0.0
    %v239 = vsel %vm231, %v235, 0.0
    %v240 = vadd.f32 %v160, 1.0
    %v241 = vadd.f32 %v161, 1.0
    %v242 = vadd.f32 %v162, 1.0
    %v243 = vadd.f32 %v163, 1.0
    %vm244 = vcmp.ge.f32.partialorder %v240, 0.0
    %vm245 = vcmp.ge.f32.partialorder %v241, 0.0
    %vm246 = vcmp.ge.f32.partialorder %v242, 0.0
    %vm247 = vcmp.ge.f32.partialorder %v243, 0.0
    %vm248 = vcmp.le.f32.partialorder %v240, 15.0
    %vm249 = vcmp.le.f32.partialorder %v241, 15.0
    %vm250 = vcmp.le.f32.partialorder %v242, 15.0
    %vm251 = vcmp.le.f32.partialorder %v243, 15.0
    %vm252 = vmand %vm244, %vm248
    %vm253 = vmand %vm245, %vm249
    %vm254 = vmand %vm246, %vm250
    %vm255 = vmand %vm247, %vm251
    %v256 = vsel %vm252, %v172, 0.0
    %v257 = vsel %vm253, %v173, 0.0
    %v258 = vsel %vm254, %v174, 0.0
    %v259 = vsel %vm255, %v175, 0.0
    %vm260 = vcmp.ge.f32.partialorder %v164, 0.0
    %vm261 = vcmp.ge.f32.partialorder %v165, 0.0
    %vm262 = vcmp.ge.f32.partialorder %v166, 0.0
    %vm263 = vcmp.ge.f32.partialorder %v167, 0.0
    %vm264 = vcmp.le.f32.partialorder %v164, 15.0
    %vm265 = vcmp.le.f32.partialorder %v165, 15.0
    %vm266 = vcmp.le.f32.partialorder %v166, 15.0
    %vm267 = vcmp.le.f32.partialorder %v167, 15.0
    %vm268 = vmand %vm260, %vm264
    %vm269 = vmand %vm261, %vm265
    %vm270 = vmand %vm262, %vm266
    %vm271 = vmand %vm263, %vm267
    %v272 = vsub.f32 1.0, %v176
    %v273 = vsub.f32 1.0, %v177
    %v274 = vsub.f32 1.0, %v178
    %v275 = vsub.f32 1.0, %v179
    %v276 = vsel %vm268, %v272, 0.0
    %v277 = vsel %vm269, %v273, 0.0
    %v278 = vsel %vm270, %v274, 0.0
    %v279 = vsel %vm271, %v275, 0.0
    %v280 = vadd.f32 %v164, 1.0
    %v281 = vadd.f32 %v165, 1.0
    %v282 = vadd.f32 %v166, 1.0
    %v283 = vadd.f32 %v167, 1.0
    %vm284 = vcmp.ge.f32.partialorder %v280, 0.0
    %vm285 = vcmp.ge.f32.partialorder %v281, 0.0
    %vm286 = vcmp.ge.f32.partialorder %v282, 0.0
    %vm287 = vcmp.ge.f32.partialorder %v283, 0.0
    %vm288 = vcmp.le.f32.partialorder %v280, 15.0
    %vm289 = vcmp.le.f32.partialorder %v281, 15.0
    %vm290 = vcmp.le.f32.partialorder %v282, 15.0
    %vm291 = vcmp.le.f32.partialorder %v283, 15.0
    %vm292 = vmand %vm284, %vm288
    %vm293 = vmand %vm285, %vm289
    %vm294 = vmand %vm286, %vm290
    %vm295 = vmand %vm287, %vm291
    %v296 = vsel %vm292, %v176, 0.0
    %v297 = vsel %vm293, %v177, 0.0
    %v298 = vsel %vm294, %v178, 0.0
    %v299 = vsel %vm295, %v179, 0.0
    %v300 = vmul.f32 %v276, %v236
    %v301 = vmul.f32 %v277, %v237
    %v302 = vmul.f32 %v278, %v238
    %v303 = vmul.f32 %v279, %v239
    %v304 = vmul.f32 %v300, %v196
    %v305 = vmul.f32 %v301, %v197
    %v306 = vmul.f32 %v302, %v198
    %v307 = vmul.f32 %v303, %v199
    %v308 = vld [vmem:[%s2] ss:$8 sm:$0xf]
    %v309 = vld [vmem:[%s2] ss:$8 sm:$0xf0]
    %v310 = vor.u32 %v308, %v309
    %s311 = scalar_lea.vmem %s2, 64
    %v312 = vld [vmem:[%s311] ss:$8 sm:$0xf]
    %v313 = vld [vmem:[%s311] ss:$8 sm:$0xf0]
    %v314 = vor.u32 %v312, %v313
    %s315 = scalar_lea.vmem %s2, 128
    %v316 = vld [vmem:[%s315] ss:$8 sm:$0xf]
    %v317 = vld [vmem:[%s315] ss:$8 sm:$0xf0]
    %v318 = vor.u32 %v316, %v317
    %s319 = scalar_lea.vmem %s2, 192
    %v320 = vld [vmem:[%s319] ss:$8 sm:$0xf]
    %v321 = vld [vmem:[%s319] ss:$8 sm:$0xf0]
    %v322 = vor.u32 %v320, %v321
    %v323 = vmul.f32 %v310, %v304
    %v324 = vmul.f32 %v314, %v305
    %v325 = vmul.f32 %v318, %v306
    %v326 = vmul.f32 %v322, %v307
    %v327 = vmul.f32 %v300, %v216
    %v328 = vmul.f32 %v301, %v217
    %v329 = vmul.f32 %v302, %v218
    %v330 = vmul.f32 %v303, %v219
    %s331 = scalar_lea.vmem %s2, 1
    %v332 = vld [vmem:[%s331] ss:$8 sm:$0xf]
    %v333 = vld [vmem:[%s331] ss:$8 sm:$0xf0]
    %v334 = vor.u32 %v332, %v333
    %s335 = scalar_lea.vmem %s2, 65
    %v336 = vld [vmem:[%s335] ss:$8 sm:$0xf]
    %v337 = vld [vmem:[%s335] ss:$8 sm:$0xf0]
    %v338 = vor.u32 %v336, %v337
    %s339 = scalar_lea.vmem %s2, 129
    %v340 = vld [vmem:[%s339] ss:$8 sm:$0xf]
    %v341 = vld [vmem:[%s339] ss:$8 sm:$0xf0]
    %v342 = vor.u32 %v340, %v341
    %s343 = scalar_lea.vmem %s2, 193
    %v344 = vld [vmem:[%s343] ss:$8 sm:$0xf]
    %v345 = vld [vmem:[%s343] ss:$8 sm:$0xf0]
    %v346 = vor.u32 %v344, %v345
    %v347 = vmul.f32 %v334, %v327
    %v348 = vmul.f32 %v338, %v328
    %v349 = vmul.f32 %v342, %v329
    %v350 = vmul.f32 %v346, %v330
    %v351 = vadd.f32 %v323, %v347
    %v352 = vadd.f32 %v324, %v348
    %v353 = vadd.f32 %v325, %v349
    %v354 = vadd.f32 %v326, %v350
    %v355 = vmul.f32 %v276, %v256
    %v356 = vmul.f32 %v277, %v257
    %v357 = vmul.f32 %v278, %v258
    %v358 = vmul.f32 %v279, %v259
    %v359 = vmul.f32 %v355, %v196
    %v360 = vmul.f32 %v356, %v197
    %v361 = vmul.f32 %v357, %v198
    %v362 = vmul.f32 %v358, %v199
    %s363 = scalar_lea.vmem %s2, 2
    %v364 = vld [vmem:[%s363] ss:$8 sm:$0xf]
    %v365 = vld [vmem:[%s363] ss:$8 sm:$0xf0]
    %v366 = vor.u32 %v364, %v365
    %s367 = scalar_lea.vmem %s2, 66
    %v368 = vld [vmem:[%s367] ss:$8 sm:$0xf]
    %v369 = vld [vmem:[%s367] ss:$8 sm:$0xf0]
    %v370 = vor.u32 %v368, %v369
    %s371 = scalar_lea.vmem %s2, 130
    %v372 = vld [vmem:[%s371] ss:$8 sm:$0xf]
    %v373 = vld [vmem:[%s371] ss:$8 sm:$0xf0]
    %v374 = vor.u32 %v372, %v373
    %s375 = scalar_lea.vmem %s2, 194
    %v376 = vld [vmem:[%s375] ss:$8 sm:$0xf]
    %v377 = vld [vmem:[%s375] ss:$8 sm:$0xf0]
    %v378 = vor.u32 %v376, %v377
    %v379 = vmul.f32 %v366, %v359
    %v380 = vmul.f32 %v370, %v360
    %v381 = vmul.f32 %v374, %v361
    %v382 = vmul.f32 %v378, %v362
    %v383 = vadd.f32 %v351, %v379
    %v384 = vadd.f32 %v352, %v380
    %v385 = vadd.f32 %v353, %v381
    %v386 = vadd.f32 %v354, %v382
    %v387 = vmul.f32 %v355, %v216
    %v388 = vmul.f32 %v356, %v217
    %v389 = vmul.f32 %v357, %v218
    %v390 = vmul.f32 %v358, %v219
    %s391 = scalar_lea.vmem %s2, 3
    %v392 = vld [vmem:[%s391] ss:$8 sm:$0xf]
    %v393 = vld [vmem:[%s391] ss:$8 sm:$0xf0]
    %v394 = vor.u32 %v392, %v393
    %s395 = scalar_lea.vmem %s2, 67
    %v396 = vld [vmem:[%s395] ss:$8 sm:$0xf]
    %v397 = vld [vmem:[%s395] ss:$8 sm:$0xf0]
    %v398 = vor.u32 %v396, %v397
    %s399 = scalar_lea.vmem %s2, 131
    %v400 = vld [vmem:[%s399] ss:$8 sm:$0xf]
    %v401 = vld [vmem:[%s399] ss:$8 sm:$0xf0]
    %v402 = vor.u32 %v400, %v401
    %s403 = scalar_lea.vmem %s2, 195
    %v404 = vld [vmem:[%s403] ss:$8 sm:$0xf]
    %v405 = vld [vmem:[%s403] ss:$8 sm:$0xf0]
    %v406 = vor.u32 %v404, %v405
    %v407 = vmul.f32 %v394, %v387
    %v408 = vmul.f32 %v398, %v388
    %v409 = vmul.f32 %v402, %v389
    %v410 = vmul.f32 %v406, %v390
    %v411 = vadd.f32 %v383, %v407
    %v412 = vadd.f32 %v384, %v408
    %v413 = vadd.f32 %v385, %v409
    %v414 = vadd.f32 %v386, %v410
    %v415 = vmul.f32 %v296, %v236
    %v416 = vmul.f32 %v297, %v237
    %v417 = vmul.f32 %v298, %v238
    %v418 = vmul.f32 %v299, %v239
    %v419 = vmul.f32 %v415, %v196
    %v420 = vmul.f32 %v416, %v197
    %v421 = vmul.f32 %v417, %v198
    %v422 = vmul.f32 %v418, %v199
    %s423 = scalar_lea.vmem %s2, 4
    %v424 = vld [vmem:[%s423] ss:$8 sm:$0xf]
    %v425 = vld [vmem:[%s423] ss:$8 sm:$0xf0]
    %v426 = vor.u32 %v424, %v425
    %s427 = scalar_lea.vmem %s2, 68
    %v428 = vld [vmem:[%s427] ss:$8 sm:$0xf]
    %v429 = vld [vmem:[%s427] ss:$8 sm:$0xf0]
    %v430 = vor.u32 %v428, %v429
    %s431 = scalar_lea.vmem %s2, 132
    %v432 = vld [vmem:[%s431] ss:$8 sm:$0xf]
    %v433 = vld [vmem:[%s431] ss:$8 sm:$0xf0]
    %v434 = vor.u32 %v432, %v433
    %s435 = scalar_lea.vmem %s2, 196
    %v436 = vld [vmem:[%s435] ss:$8 sm:$0xf]
    %v437 = vld [vmem:[%s435] ss:$8 sm:$0xf0]
    %v438 = vor.u32 %v436, %v437
    %v439 = vmul.f32 %v426, %v419
    %v440 = vmul.f32 %v430, %v420
    %v441 = vmul.f32 %v434, %v421
    %v442 = vmul.f32 %v438, %v422
    %v443 = vadd.f32 %v411, %v439
    %v444 = vadd.f32 %v412, %v440
    %v445 = vadd.f32 %v413, %v441
    %v446 = vadd.f32 %v414, %v442
    %v447 = vmul.f32 %v415, %v216
    %v448 = vmul.f32 %v416, %v217
    %v449 = vmul.f32 %v417, %v218
    %v450 = vmul.f32 %v418, %v219
    %s451 = scalar_lea.vmem %s2, 5
    %v452 = vld [vmem:[%s451] ss:$8 sm:$0xf]
    %v453 = vld [vmem:[%s451] ss:$8 sm:$0xf0]
    %v454 = vor.u32 %v452, %v453
    %s455 = scalar_lea.vmem %s2, 69
    %v456 = vld [vmem:[%s455] ss:$8 sm:$0xf]
    %v457 = vld [vmem:[%s455] ss:$8 sm:$0xf0]
    %v458 = vor.u32 %v456, %v457
    %s459 = scalar_lea.vmem %s2, 133
    %v460 = vld [vmem:[%s459] ss:$8 sm:$0xf]
    %v461 = vld [vmem:[%s459] ss:$8 sm:$0xf0]
    %v462 = vor.u32 %v460, %v461
    %s463 = scalar_lea.vmem %s2, 197
    %v464 = vld [vmem:[%s463] ss:$8 sm:$0xf]
    %v465 = vld [vmem:[%s463] ss:$8 sm:$0xf0]
    %v466 = vor.u32 %v464, %v465
    %v467 = vmul.f32 %v454, %v447
    %v468 = vmul.f32 %v458, %v448
    %v469 = vmul.f32 %v462, %v449
    %v470 = vmul.f32 %v466, %v450
    %v471 = vadd.f32 %v443, %v467
    %v472 = vadd.f32 %v444, %v468
    %v473 = vadd.f32 %v445, %v469
    %v474 = vadd.f32 %v446, %v470
    %v475 = vmul.f32 %v296, %v256
    %v476 = vmul.f32 %v297, %v257
    %v477 = vmul.f32 %v298, %v258
    %v478 = vmul.f32 %v299, %v259
    %v479 = vmul.f32 %v475, %v196
    %v480 = vmul.f32 %v476, %v197
    %v481 = vmul.f32 %v477, %v198
    %v482 = vmul.f32 %v478, %v199
    %s483 = scalar_lea.vmem %s2, 6
    %v484 = vld [vmem:[%s483] ss:$8 sm:$0xf]
    %v485 = vld [vmem:[%s483] ss:$8 sm:$0xf0]
    %v486 = vor.u32 %v484, %v485
    %s487 = scalar_lea.vmem %s2, 70
    %v488 = vld [vmem:[%s487] ss:$8 sm:$0xf]
    %v489 = vld [vmem:[%s487] ss:$8 sm:$0xf0]
    %v490 = vor.u32 %v488, %v489
    %s491 = scalar_lea.vmem %s2, 134
    %v492 = vld [vmem:[%s491] ss:$8 sm:$0xf]
    %v493 = vld [vmem:[%s491] ss:$8 sm:$0xf0]
    %v494 = vor.u32 %v492, %v493
    %s495 = scalar_lea.vmem %s2, 198
    %v496 = vld [vmem:[%s495] ss:$8 sm:$0xf]
    %v497 = vld [vmem:[%s495] ss:$8 sm:$0xf0]
    %v498 = vor.u32 %v496, %v497
    %v499 = vmul.f32 %v486, %v479
    %v500 = vmul.f32 %v490, %v480
    %v501 = vmul.f32 %v494, %v481
    %v502 = vmul.f32 %v498, %v482
    %v503 = vadd.f32 %v471, %v499
    %v504 = vadd.f32 %v472, %v500
    %v505 = vadd.f32 %v473, %v501
    %v506 = vadd.f32 %v474, %v502
    %v507 = vmul.f32 %v475, %v216
    %v508 = vmul.f32 %v476, %v217
    %v509 = vmul.f32 %v477, %v218
    %v510 = vmul.f32 %v478, %v219
    %s511 = scalar_lea.vmem %s2, 7
    %v512 = vld [vmem:[%s511] ss:$8 sm:$0xf]
    %v513 = vld [vmem:[%s511] ss:$8 sm:$0xf0]
    %v514 = vor.u32 %v512, %v513
    %s515 = scalar_lea.vmem %s2, 71
    %v516 = vld [vmem:[%s515] ss:$8 sm:$0xf]
    %v517 = vld [vmem:[%s515] ss:$8 sm:$0xf0]
    %v518 = vor.u32 %v516, %v517
    %s519 = scalar_lea.vmem %s2, 135
    %v520 = vld [vmem:[%s519] ss:$8 sm:$0xf]
    %v521 = vld [vmem:[%s519] ss:$8 sm:$0xf0]
    %v522 = vor.u32 %v520, %v521
    %s523 = scalar_lea.vmem %s2, 199
    %v524 = vld [vmem:[%s523] ss:$8 sm:$0xf]
    %v525 = vld [vmem:[%s523] ss:$8 sm:$0xf0]
    %v526 = vor.u32 %v524, %v525
    %v527 = vmul.f32 %v514, %v507
    %v528 = vmul.f32 %v518, %v508
    %v529 = vmul.f32 %v522, %v509
    %v530 = vmul.f32 %v526, %v510
    %v531 = vadd.f32 %v503, %v527
    %v532 = vadd.f32 %v504, %v528
    %v533 = vadd.f32 %v505, %v529
    %v534 = vadd.f32 %v506, %v530
    %v536 = vrot.slane %v531, 2
    %v538 = vadd.f32 %v531, %v536
    %v539 = vrot.slane %v531, 4
    %v541 = vadd.f32 %v538, %v539
    %v542 = vrot.slane %v531, 6
    %v544 = vadd.f32 %v541, %v542
    %v545 = vadd.f32 %v544, %v532
    %v547 = vrot.slane %v532, 2
    %v549 = vadd.f32 %v545, %v547
    %v550 = vrot.slane %v532, 4
    %v552 = vadd.f32 %v549, %v550
    %v553 = vrot.slane %v532, 6
    %v555 = vadd.f32 %v552, %v553
    %v556 = vadd.f32 %v555, %v533
    %v558 = vrot.slane %v533, 2
    %v560 = vadd.f32 %v556, %v558
    %v561 = vrot.slane %v533, 4
    %v563 = vadd.f32 %v560, %v561
    %v564 = vrot.slane %v533, 6
    %v566 = vadd.f32 %v563, %v564
    %v567 = vadd.f32 %v566, %v534
    %v569 = vrot.slane %v534, 2
    %v571 = vadd.f32 %v567, %v569
    %v572 = vrot.slane %v534, 4
    %v574 = vadd.f32 %v571, %v572
    %v575 = vrot.slane %v534, 6
    %v577 = vadd.f32 %v574, %v575
    %v578 = vmul.f32 %v577, %v30
    %v579 = vlaneseq
    %vm580 = vcmp.ge.s32.totalorder %v579, 0
    %vm581 = vcmp.lt.s32.totalorder %v579, 256
    %vm582 = vmand %vm580, %vm581
    %583 = vst.msk [vmem:[%s4] ss:$2 sm:$0x3] %vm582, %v578
    %v584 = vld [vmem:[%s1] ss:$4 sm:$0xff]
    %v585 = vld [vmem:[%s32] ss:$4 sm:$0xff]
    %v586 = vld [vmem:[%s34] ss:$4 sm:$0xff]
    %v587 = vld [vmem:[%s36] ss:$4 sm:$0xff]
    %v588 = vld [vmem:[%s38] ss:$4 sm:$0xff]
    %v589 = vld [vmem:[%s40] ss:$4 sm:$0xff]
    %v590 = vld [vmem:[%s42] ss:$4 sm:$0xff]
    %v591 = vld [vmem:[%s44] ss:$4 sm:$0xff]
    %v592 = vld [vmem:[%s46] ss:$4 sm:$0xff]
    %v593 = vld [vmem:[%s48] ss:$4 sm:$0xff]
    %v594 = vld [vmem:[%s50] ss:$4 sm:$0xff]
    %v595 = vld [vmem:[%s52] ss:$4 sm:$0xff]
    %s596 = sld [smem:[#allocation2 + $0x80]]
    %s597 = sld [smem:[#allocation2 + $0x81]]
    %s598 = sld [smem:[#allocation2 + $0x82]]
    %s599 = sld [smem:[#allocation2 + $0x83]]
    %s600 = sld [smem:[#allocation2 + $0x84]]
    %s601 = sld [smem:[#allocation2 + $0x85]]
    %s602 = sld [smem:[#allocation2 + $0x86]]
    %s603 = sld [smem:[#allocation2 + $0x87]]
    %s604 = sld [smem:[#allocation2 + $0x88]]
    %v605 = vstv %s596
    %v606 = vmul.f32 %v584, %v605
    %v607 = vmul.f32 %v585, %v605
    %v608 = vmul.f32 %v586, %v605
    %v609 = vmul.f32 %v587, %v605
    %v610 = vstv %s599
    %v611 = vmul.f32 %v588, %v610
    %v612 = vmul.f32 %v589, %v610
    %v613 = vmul.f32 %v590, %v610
    %v614 = vmul.f32 %v591, %v610
    %v615 = vadd.f32 %v606, %v611
    %v616 = vadd.f32 %v607, %v612
    %v617 = vadd.f32 %v608, %v613
    %v618 = vadd.f32 %v609, %v614
    %v619 = vstv %s602
    %v620 = vmul.f32 %v592, %v619
    %v621 = vmul.f32 %v593, %v619
    %v622 = vmul.f32 %v594, %v619
    %v623 = vmul.f32 %v595, %v619
    %v624 = vadd.f32 %v615, %v620
    %v625 = vadd.f32 %v616, %v621
    %v626 = vadd.f32 %v617, %v622
    %v627 = vadd.f32 %v618, %v623
    %v628 = vstv %s597
    %v629 = vmul.f32 %v584, %v628
    %v630 = vmul.f32 %v585, %v628
    %v631 = vmul.f32 %v586, %v628
    %v632 = vmul.f32 %v587, %v628
    %v633 = vstv %s600
    %v634 = vmul.f32 %v588, %v633
    %v635 = vmul.f32 %v589, %v633
    %v636 = vmul.f32 %v590, %v633
    %v637 = vmul.f32 %v591, %v633
    %v638 = vadd.f32 %v629, %v634
    %v639 = vadd.f32 %v630, %v635
    %v640 = vadd.f32 %v631, %v636
    %v641 = vadd.f32 %v632, %v637
    %v642 = vstv %s603
    %v643 = vmul.f32 %v592, %v642
    %v644 = vmul.f32 %v593, %v642
    %v645 = vmul.f32 %v594, %v642
    %v646 = vmul.f32 %v595, %v642
    %v647 = vadd.f32 %v638, %v643
    %v648 = vadd.f32 %v639, %v644
    %v649 = vadd.f32 %v640, %v645
    %v650 = vadd.f32 %v641, %v646
    %v651 = vstv %s598
    %v652 = vmul.f32 %v584, %v651
    %v653 = vmul.f32 %v585, %v651
    %v654 = vmul.f32 %v586, %v651
    %v655 = vmul.f32 %v587, %v651
    %v656 = vstv %s601
    %v657 = vmul.f32 %v588, %v656
    %v658 = vmul.f32 %v589, %v656
    %v659 = vmul.f32 %v590, %v656
    %v660 = vmul.f32 %v591, %v656
    %v661 = vadd.f32 %v652, %v657
    %v662 = vadd.f32 %v653, %v658
    %v663 = vadd.f32 %v654, %v659
    %v664 = vadd.f32 %v655, %v660
    %v665 = vstv %s604
    %v666 = vmul.f32 %v592, %v665
    %v667 = vmul.f32 %v593, %v665
    %v668 = vmul.f32 %v594, %v665
    %v669 = vmul.f32 %v595, %v665
    %v670 = vadd.f32 %v661, %v666
    %v671 = vadd.f32 %v662, %v667
    %v672 = vadd.f32 %v663, %v668
    %v673 = vadd.f32 %v664, %v669
    %v674 = vadd.f32 %v624, 1.0
    %v675 = vadd.f32 %v625, 1.0
    %v676 = vadd.f32 %v626, 1.0
    %v677 = vadd.f32 %v627, 1.0
    %v678 = vmul.f32 %v674, 7.5
    %v679 = vmul.f32 %v675, 7.5
    %v680 = vmul.f32 %v676, 7.5
    %v681 = vmul.f32 %v677, 7.5
    %v682 = vadd.f32 %v647, 1.0
    %v683 = vadd.f32 %v648, 1.0
    %v684 = vadd.f32 %v649, 1.0
    %v685 = vadd.f32 %v650, 1.0
    %v686 = vmul.f32 %v682, 7.5
    %v687 = vmul.f32 %v683, 7.5
    %v688 = vmul.f32 %v684, 7.5
    %v689 = vmul.f32 %v685, 7.5
    %v690 = vadd.f32 %v670, 1.0
    %v691 = vadd.f32 %v671, 1.0
    %v692 = vadd.f32 %v672, 1.0
    %v693 = vadd.f32 %v673, 1.0
    %v694 = vmul.f32 %v690, 7.5
    %v695 = vmul.f32 %v691, 7.5
    %v696 = vmul.f32 %v692, 7.5
    %v697 = vmul.f32 %v693, 7.5
    %v698 = vfloor.f32 %v678
    %v699 = vfloor.f32 %v679
    %v700 = vfloor.f32 %v680
    %v701 = vfloor.f32 %v681
    %v702 = vfloor.f32 %v686
    %v703 = vfloor.f32 %v687
    %v704 = vfloor.f32 %v688
    %v705 = vfloor.f32 %v689
    %v706 = vfloor.f32 %v694
    %v707 = vfloor.f32 %v695
    %v708 = vfloor.f32 %v696
    %v709 = vfloor.f32 %v697
    %v710 = vsub.f32 %v678, %v698
    %v711 = vsub.f32 %v679, %v699
    %v712 = vsub.f32 %v680, %v700
    %v713 = vsub.f32 %v681, %v701
    %v714 = vsub.f32 %v686, %v702
    %v715 = vsub.f32 %v687, %v703
    %v716 = vsub.f32 %v688, %v704
    %v717 = vsub.f32 %v689, %v705
    %v718 = vsub.f32 %v694, %v706
    %v719 = vsub.f32 %v695, %v707
    %v720 = vsub.f32 %v696, %v708
    %v721 = vsub.f32 %v697, %v709
    %vm722 = vcmp.ge.f32.partialorder %v698, 0.0
    %vm723 = vcmp.ge.f32.partialorder %v699, 0.0
    %vm724 = vcmp.ge.f32.partialorder %v700, 0.0
    %vm725 = vcmp.ge.f32.partialorder %v701, 0.0
    %vm726 = vcmp.le.f32.partialorder %v698, 15.0
    %vm727 = vcmp.le.f32.partialorder %v699, 15.0
    %vm728 = vcmp.le.f32.partialorder %v700, 15.0
    %vm729 = vcmp.le.f32.partialorder %v701, 15.0
    %vm730 = vmand %vm722, %vm726
    %vm731 = vmand %vm723, %vm727
    %vm732 = vmand %vm724, %vm728
    %vm733 = vmand %vm725, %vm729
    %v734 = vsub.f32 1.0, %v710
    %v735 = vsub.f32 1.0, %v711
    %v736 = vsub.f32 1.0, %v712
    %v737 = vsub.f32 1.0, %v713
    %v738 = vsel %vm730, %v734, 0.0
    %v739 = vsel %vm731, %v735, 0.0
    %v740 = vsel %vm732, %v736, 0.0
    %v741 = vsel %vm733, %v737, 0.0
    %v742 = vadd.f32 %v698, 1.0
    %v743 = vadd.f32 %v699, 1.0
    %v744 = vadd.f32 %v700, 1.0
    %v745 = vadd.f32 %v701, 1.0
    %vm746 = vcmp.ge.f32.partialorder %v742, 0.0
    %vm747 = vcmp.ge.f32.partialorder %v743, 0.0
    %vm748 = vcmp.ge.f32.partialorder %v744, 0.0
    %vm749 = vcmp.ge.f32.partialorder %v745, 0.0
    %vm750 = vcmp.le.f32.partialorder %v742, 15.0
    %vm751 = vcmp.le.f32.partialorder %v743, 15.0
    %vm752 = vcmp.le.f32.partialorder %v744, 15.0
    %vm753 = vcmp.le.f32.partialorder %v745, 15.0
    %vm754 = vmand %vm746, %vm750
    %vm755 = vmand %vm747, %vm751
    %vm756 = vmand %vm748, %vm752
    %vm757 = vmand %vm749, %vm753
    %v758 = vsel %vm754, %v710, 0.0
    %v759 = vsel %vm755, %v711, 0.0
    %v760 = vsel %vm756, %v712, 0.0
    %v761 = vsel %vm757, %v713, 0.0
    %vm762 = vcmp.ge.f32.partialorder %v702, 0.0
    %vm763 = vcmp.ge.f32.partialorder %v703, 0.0
    %vm764 = vcmp.ge.f32.partialorder %v704, 0.0
    %vm765 = vcmp.ge.f32.partialorder %v705, 0.0
    %vm766 = vcmp.le.f32.partialorder %v702, 15.0
    %vm767 = vcmp.le.f32.partialorder %v703, 15.0
    %vm768 = vcmp.le.f32.partialorder %v704, 15.0
    %vm769 = vcmp.le.f32.partialorder %v705, 15.0
    %vm770 = vmand %vm762, %vm766
    %vm771 = vmand %vm763, %vm767
    %vm772 = vmand %vm764, %vm768
    %vm773 = vmand %vm765, %vm769
    %v774 = vsub.f32 1.0, %v714
    %v775 = vsub.f32 1.0, %v715
    %v776 = vsub.f32 1.0, %v716
    %v777 = vsub.f32 1.0, %v717
    %v778 = vsel %vm770, %v774, 0.0
    %v779 = vsel %vm771, %v775, 0.0
    %v780 = vsel %vm772, %v776, 0.0
    %v781 = vsel %vm773, %v777, 0.0
    %v782 = vadd.f32 %v702, 1.0
    %v783 = vadd.f32 %v703, 1.0
    %v784 = vadd.f32 %v704, 1.0
    %v785 = vadd.f32 %v705, 1.0
    %vm786 = vcmp.ge.f32.partialorder %v782, 0.0
    %vm787 = vcmp.ge.f32.partialorder %v783, 0.0
    %vm788 = vcmp.ge.f32.partialorder %v784, 0.0
    %vm789 = vcmp.ge.f32.partialorder %v785, 0.0
    %vm790 = vcmp.le.f32.partialorder %v782, 15.0
    %vm791 = vcmp.le.f32.partialorder %v783, 15.0
    %vm792 = vcmp.le.f32.partialorder %v784, 15.0
    %vm793 = vcmp.le.f32.partialorder %v785, 15.0
    %vm794 = vmand %vm786, %vm790
    %vm795 = vmand %vm787, %vm791
    %vm796 = vmand %vm788, %vm792
    %vm797 = vmand %vm789, %vm793
    %v798 = vsel %vm794, %v714, 0.0
    %v799 = vsel %vm795, %v715, 0.0
    %v800 = vsel %vm796, %v716, 0.0
    %v801 = vsel %vm797, %v717, 0.0
    %vm802 = vcmp.ge.f32.partialorder %v706, 0.0
    %vm803 = vcmp.ge.f32.partialorder %v707, 0.0
    %vm804 = vcmp.ge.f32.partialorder %v708, 0.0
    %vm805 = vcmp.ge.f32.partialorder %v709, 0.0
    %vm806 = vcmp.le.f32.partialorder %v706, 15.0
    %vm807 = vcmp.le.f32.partialorder %v707, 15.0
    %vm808 = vcmp.le.f32.partialorder %v708, 15.0
    %vm809 = vcmp.le.f32.partialorder %v709, 15.0
    %vm810 = vmand %vm802, %vm806
    %vm811 = vmand %vm803, %vm807
    %vm812 = vmand %vm804, %vm808
    %vm813 = vmand %vm805, %vm809
    %v814 = vsub.f32 1.0, %v718
    %v815 = vsub.f32 1.0, %v719
    %v816 = vsub.f32 1.0, %v720
    %v817 = vsub.f32 1.0, %v721
    %v818 = vsel %vm810, %v814, 0.0
    %v819 = vsel %vm811, %v815, 0.0
    %v820 = vsel %vm812, %v816, 0.0
    %v821 = vsel %vm813, %v817, 0.0
    %v822 = vadd.f32 %v706, 1.0
    %v823 = vadd.f32 %v707, 1.0
    %v824 = vadd.f32 %v708, 1.0
    %v825 = vadd.f32 %v709, 1.0
    %vm826 = vcmp.ge.f32.partialorder %v822, 0.0
    %vm827 = vcmp.ge.f32.partialorder %v823, 0.0
    %vm828 = vcmp.ge.f32.partialorder %v824, 0.0
    %vm829 = vcmp.ge.f32.partialorder %v825, 0.0
    %vm830 = vcmp.le.f32.partialorder %v822, 15.0
    %vm831 = vcmp.le.f32.partialorder %v823, 15.0
    %vm832 = vcmp.le.f32.partialorder %v824, 15.0
    %vm833 = vcmp.le.f32.partialorder %v825, 15.0
    %vm834 = vmand %vm826, %vm830
    %vm835 = vmand %vm827, %vm831
    %vm836 = vmand %vm828, %vm832
    %vm837 = vmand %vm829, %vm833
    %v838 = vsel %vm834, %v718, 0.0
    %v839 = vsel %vm835, %v719, 0.0
    %v840 = vsel %vm836, %v720, 0.0
    %v841 = vsel %vm837, %v721, 0.0
    %v842 = vmul.f32 %v818, %v778
    %v843 = vmul.f32 %v819, %v779
    %v844 = vmul.f32 %v820, %v780
    %v845 = vmul.f32 %v821, %v781
    %v846 = vmul.f32 %v842, %v738
    %v847 = vmul.f32 %v843, %v739
    %v848 = vmul.f32 %v844, %v740
    %v849 = vmul.f32 %v845, %v741
    %s850 = scalar_lea.vmem %s2, 256
    %v851 = vld [vmem:[%s850] ss:$8 sm:$0xf]
    %v852 = vld [vmem:[%s850] ss:$8 sm:$0xf0]
    %v853 = vor.u32 %v851, %v852
    %s854 = scalar_lea.vmem %s2, 320
    %v855 = vld [vmem:[%s854] ss:$8 sm:$0xf]
    %v856 = vld [vmem:[%s854] ss:$8 sm:$0xf0]
    %v857 = vor.u32 %v855, %v856
    %s858 = scalar_lea.vmem %s2, 384
    %v859 = vld [vmem:[%s858] ss:$8 sm:$0xf]
    %v860 = vld [vmem:[%s858] ss:$8 sm:$0xf0]
    %v861 = vor.u32 %v859, %v860
    %s862 = scalar_lea.vmem %s2, 448
    %v863 = vld [vmem:[%s862] ss:$8 sm:$0xf]
    %v864 = vld [vmem:[%s862] ss:$8 sm:$0xf0]
    %v865 = vor.u32 %v863, %v864
    %v866 = vmul.f32 %v853, %v846
    %v867 = vmul.f32 %v857, %v847
    %v868 = vmul.f32 %v861, %v848
    %v869 = vmul.f32 %v865, %v849
    %v870 = vmul.f32 %v842, %v758
    %v871 = vmul.f32 %v843, %v759
    %v872 = vmul.f32 %v844, %v760
    %v873 = vmul.f32 %v845, %v761
    %s874 = scalar_lea.vmem %s2, 257
    %v875 = vld [vmem:[%s874] ss:$8 sm:$0xf]
    %v876 = vld [vmem:[%s874] ss:$8 sm:$0xf0]
    %v877 = vor.u32 %v875, %v876
    %s878 = scalar_lea.vmem %s2, 321
    %v879 = vld [vmem:[%s878] ss:$8 sm:$0xf]
    %v880 = vld [vmem:[%s878] ss:$8 sm:$0xf0]
    %v881 = vor.u32 %v879, %v880
    %s882 = scalar_lea.vmem %s2, 385
    %v883 = vld [vmem:[%s882] ss:$8 sm:$0xf]
    %v884 = vld [vmem:[%s882] ss:$8 sm:$0xf0]
    %v885 = vor.u32 %v883, %v884
    %s886 = scalar_lea.vmem %s2, 449
    %v887 = vld [vmem:[%s886] ss:$8 sm:$0xf]
    %v888 = vld [vmem:[%s886] ss:$8 sm:$0xf0]
    %v889 = vor.u32 %v887, %v888
    %v890 = vmul.f32 %v877, %v870
    %v891 = vmul.f32 %v881, %v871
    %v892 = vmul.f32 %v885, %v872
    %v893 = vmul.f32 %v889, %v873
    %v894 = vadd.f32 %v866, %v890
    %v895 = vadd.f32 %v867, %v891
    %v896 = vadd.f32 %v868, %v892
    %v897 = vadd.f32 %v869, %v893
    %v898 = vmul.f32 %v818, %v798
    %v899 = vmul.f32 %v819, %v799
    %v900 = vmul.f32 %v820, %v800
    %v901 = vmul.f32 %v821, %v801
    %v902 = vmul.f32 %v898, %v738
    %v903 = vmul.f32 %v899, %v739
    %v904 = vmul.f32 %v900, %v740
    %v905 = vmul.f32 %v901, %v741
    %s906 = scalar_lea.vmem %s2, 258
    %v907 = vld [vmem:[%s906] ss:$8 sm:$0xf]
    %v908 = vld [vmem:[%s906] ss:$8 sm:$0xf0]
    %v909 = vor.u32 %v907, %v908
    %s910 = scalar_lea.vmem %s2, 322
    %v911 = vld [vmem:[%s910] ss:$8 sm:$0xf]
    %v912 = vld [vmem:[%s910] ss:$8 sm:$0xf0]
    %v913 = vor.u32 %v911, %v912
    %s914 = scalar_lea.vmem %s2, 386
    %v915 = vld [vmem:[%s914] ss:$8 sm:$0xf]
    %v916 = vld [vmem:[%s914] ss:$8 sm:$0xf0]
    %v917 = vor.u32 %v915, %v916
    %s918 = scalar_lea.vmem %s2, 450
    %v919 = vld [vmem:[%s918] ss:$8 sm:$0xf]
    %v920 = vld [vmem:[%s918] ss:$8 sm:$0xf0]
    %v921 = vor.u32 %v919, %v920
    %v922 = vmul.f32 %v909, %v902
    %v923 = vmul.f32 %v913, %v903
    %v924 = vmul.f32 %v917, %v904
    %v925 = vmul.f32 %v921, %v905
    %v926 = vadd.f32 %v894, %v922
    %v927 = vadd.f32 %v895, %v923
    %v928 = vadd.f32 %v896, %v924
    %v929 = vadd.f32 %v897, %v925
    %v930 = vmul.f32 %v898, %v758
    %v931 = vmul.f32 %v899, %v759
    %v932 = vmul.f32 %v900, %v760
    %v933 = vmul.f32 %v901, %v761
    %s934 = scalar_lea.vmem %s2, 259
    %v935 = vld [vmem:[%s934] ss:$8 sm:$0xf]
    %v936 = vld [vmem:[%s934] ss:$8 sm:$0xf0]
    %v937 = vor.u32 %v935, %v936
    %s938 = scalar_lea.vmem %s2, 323
    %v939 = vld [vmem:[%s938] ss:$8 sm:$0xf]
    %v940 = vld [vmem:[%s938] ss:$8 sm:$0xf0]
    %v941 = vor.u32 %v939, %v940
    %s942 = scalar_lea.vmem %s2, 387
    %v943 = vld [vmem:[%s942] ss:$8 sm:$0xf]
    %v944 = vld [vmem:[%s942] ss:$8 sm:$0xf0]
    %v945 = vor.u32 %v943, %v944
    %s946 = scalar_lea.vmem %s2, 451
    %v947 = vld [vmem:[%s946] ss:$8 sm:$0xf]
    %v948 = vld [vmem:[%s946] ss:$8 sm:$0xf0]
    %v949 = vor.u32 %v947, %v948
    %v950 = vmul.f32 %v937, %v930
    %v951 = vmul.f32 %v941, %v931
    %v952 = vmul.f32 %v945, %v932
    %v953 = vmul.f32 %v949, %v933
    %v954 = vadd.f32 %v926, %v950
    %v955 = vadd.f32 %v927, %v951
    %v956 = vadd.f32 %v928, %v952
    %v957 = vadd.f32 %v929, %v953
    %v958 = vmul.f32 %v838, %v778
    %v959 = vmul.f32 %v839, %v779
    %v960 = vmul.f32 %v840, %v780
    %v961 = vmul.f32 %v841, %v781
    %v962 = vmul.f32 %v958, %v738
    %v963 = vmul.f32 %v959, %v739
    %v964 = vmul.f32 %v960, %v740
    %v965 = vmul.f32 %v961, %v741
    %s966 = scalar_lea.vmem %s2, 260
    %v967 = vld [vmem:[%s966] ss:$8 sm:$0xf]
    %v968 = vld [vmem:[%s966] ss:$8 sm:$0xf0]
    %v969 = vor.u32 %v967, %v968
    %s970 = scalar_lea.vmem %s2, 324
    %v971 = vld [vmem:[%s970] ss:$8 sm:$0xf]
    %v972 = vld [vmem:[%s970] ss:$8 sm:$0xf0]
    %v973 = vor.u32 %v971, %v972
    %s974 = scalar_lea.vmem %s2, 388
    %v975 = vld [vmem:[%s974] ss:$8 sm:$0xf]
    %v976 = vld [vmem:[%s974] ss:$8 sm:$0xf0]
    %v977 = vor.u32 %v975, %v976
    %s978 = scalar_lea.vmem %s2, 452
    %v979 = vld [vmem:[%s978] ss:$8 sm:$0xf]
    %v980 = vld [vmem:[%s978] ss:$8 sm:$0xf0]
    %v981 = vor.u32 %v979, %v980
    %v982 = vmul.f32 %v969, %v962
    %v983 = vmul.f32 %v973, %v963
    %v984 = vmul.f32 %v977, %v964
    %v985 = vmul.f32 %v981, %v965
    %v986 = vadd.f32 %v954, %v982
    %v987 = vadd.f32 %v955, %v983
    %v988 = vadd.f32 %v956, %v984
    %v989 = vadd.f32 %v957, %v985
    %v990 = vmul.f32 %v958, %v758
    %v991 = vmul.f32 %v959, %v759
    %v992 = vmul.f32 %v960, %v760
    %v993 = vmul.f32 %v961, %v761
    %s994 = scalar_lea.vmem %s2, 261
    %v995 = vld [vmem:[%s994] ss:$8 sm:$0xf]
    %v996 = vld [vmem:[%s994] ss:$8 sm:$0xf0]
    %v997 = vor.u32 %v995, %v996
    %s998 = scalar_lea.vmem %s2, 325
    %v999 = vld [vmem:[%s998] ss:$8 sm:$0xf]
    %v1000 = vld [vmem:[%s998] ss:$8 sm:$0xf0]
    %v1001 = vor.u32 %v999, %v1000
    %s1002 = scalar_lea.vmem %s2, 389
    %v1003 = vld [vmem:[%s1002] ss:$8 sm:$0xf]
    %v1004 = vld [vmem:[%s1002] ss:$8 sm:$0xf0]
    %v1005 = vor.u32 %v1003, %v1004
    %s1006 = scalar_lea.vmem %s2, 453
    %v1007 = vld [vmem:[%s1006] ss:$8 sm:$0xf]
    %v1008 = vld [vmem:[%s1006] ss:$8 sm:$0xf0]
    %v1009 = vor.u32 %v1007, %v1008
    %v1010 = vmul.f32 %v997, %v990
    %v1011 = vmul.f32 %v1001, %v991
    %v1012 = vmul.f32 %v1005, %v992
    %v1013 = vmul.f32 %v1009, %v993
    %v1014 = vadd.f32 %v986, %v1010
    %v1015 = vadd.f32 %v987, %v1011
    %v1016 = vadd.f32 %v988, %v1012
    %v1017 = vadd.f32 %v989, %v1013
    %v1018 = vmul.f32 %v838, %v798
    %v1019 = vmul.f32 %v839, %v799
    %v1020 = vmul.f32 %v840, %v800
    %v1021 = vmul.f32 %v841, %v801
    %v1022 = vmul.f32 %v1018, %v738
    %v1023 = vmul.f32 %v1019, %v739
    %v1024 = vmul.f32 %v1020, %v740
    %v1025 = vmul.f32 %v1021, %v741
    %s1026 = scalar_lea.vmem %s2, 262
    %v1027 = vld [vmem:[%s1026] ss:$8 sm:$0xf]
    %v1028 = vld [vmem:[%s1026] ss:$8 sm:$0xf0]
    %v1029 = vor.u32 %v1027, %v1028
    %s1030 = scalar_lea.vmem %s2, 326
    %v1031 = vld [vmem:[%s1030] ss:$8 sm:$0xf]
    %v1032 = vld [vmem:[%s1030] ss:$8 sm:$0xf0]
    %v1033 = vor.u32 %v1031, %v1032
    %s1034 = scalar_lea.vmem %s2, 390
    %v1035 = vld [vmem:[%s1034] ss:$8 sm:$0xf]
    %v1036 = vld [vmem:[%s1034] ss:$8 sm:$0xf0]
    %v1037 = vor.u32 %v1035, %v1036
    %s1038 = scalar_lea.vmem %s2, 454
    %v1039 = vld [vmem:[%s1038] ss:$8 sm:$0xf]
    %v1040 = vld [vmem:[%s1038] ss:$8 sm:$0xf0]
    %v1041 = vor.u32 %v1039, %v1040
    %v1042 = vmul.f32 %v1029, %v1022
    %v1043 = vmul.f32 %v1033, %v1023
    %v1044 = vmul.f32 %v1037, %v1024
    %v1045 = vmul.f32 %v1041, %v1025
    %v1046 = vadd.f32 %v1014, %v1042
    %v1047 = vadd.f32 %v1015, %v1043
    %v1048 = vadd.f32 %v1016, %v1044
    %v1049 = vadd.f32 %v1017, %v1045
    %v1050 = vmul.f32 %v1018, %v758
    %v1051 = vmul.f32 %v1019, %v759
    %v1052 = vmul.f32 %v1020, %v760
    %v1053 = vmul.f32 %v1021, %v761
    %s1054 = scalar_lea.vmem %s2, 263
    %v1055 = vld [vmem:[%s1054] ss:$8 sm:$0xf]
    %v1056 = vld [vmem:[%s1054] ss:$8 sm:$0xf0]
    %v1057 = vor.u32 %v1055, %v1056
    %s1058 = scalar_lea.vmem %s2, 327
    %v1059 = vld [vmem:[%s1058] ss:$8 sm:$0xf]
    %v1060 = vld [vmem:[%s1058] ss:$8 sm:$0xf0]
    %v1061 = vor.u32 %v1059, %v1060
    %s1062 = scalar_lea.vmem %s2, 391
    %v1063 = vld [vmem:[%s1062] ss:$8 sm:$0xf]
    %v1064 = vld [vmem:[%s1062] ss:$8 sm:$0xf0]
    %v1065 = vor.u32 %v1063, %v1064
    %s1066 = scalar_lea.vmem %s2, 455
    %v1067 = vld [vmem:[%s1066] ss:$8 sm:$0xf]
    %v1068 = vld [vmem:[%s1066] ss:$8 sm:$0xf0]
    %v1069 = vor.u32 %v1067, %v1068
    %v1070 = vmul.f32 %v1057, %v1050
    %v1071 = vmul.f32 %v1061, %v1051
    %v1072 = vmul.f32 %v1065, %v1052
    %v1073 = vmul.f32 %v1069, %v1053
    %v1074 = vadd.f32 %v1046, %v1070
    %v1075 = vadd.f32 %v1047, %v1071
    %v1076 = vadd.f32 %v1048, %v1072
    %v1077 = vadd.f32 %v1049, %v1073
    %v1079 = vrot.slane %v1074, 2
    %v1081 = vadd.f32 %v1074, %v1079
    %v1082 = vrot.slane %v1074, 4
    %v1084 = vadd.f32 %v1081, %v1082
    %v1085 = vrot.slane %v1074, 6
    %v1087 = vadd.f32 %v1084, %v1085
    %v1088 = vadd.f32 %v1087, %v1075
    %v1090 = vrot.slane %v1075, 2
    %v1092 = vadd.f32 %v1088, %v1090
    %v1093 = vrot.slane %v1075, 4
    %v1095 = vadd.f32 %v1092, %v1093
    %v1096 = vrot.slane %v1075, 6
    %v1098 = vadd.f32 %v1095, %v1096
    %v1099 = vadd.f32 %v1098, %v1076
    %v1101 = vrot.slane %v1076, 2
    %v1103 = vadd.f32 %v1099, %v1101
    %v1104 = vrot.slane %v1076, 4
    %v1106 = vadd.f32 %v1103, %v1104
    %v1107 = vrot.slane %v1076, 6
    %v1109 = vadd.f32 %v1106, %v1107
    %v1110 = vadd.f32 %v1109, %v1077
    %v1112 = vrot.slane %v1077, 2
    %v1114 = vadd.f32 %v1110, %v1112
    %v1115 = vrot.slane %v1077, 4
    %v1117 = vadd.f32 %v1114, %v1115
    %v1118 = vrot.slane %v1077, 6
    %v1120 = vadd.f32 %v1117, %v1118
    %v1121 = vmul.f32 %v1120, %v30
    %s1122 = scalar_lea.vmem %s4, 1
    %1123 = vst.msk [vmem:[%s1122] ss:$2 sm:$0x3] %vm582, %v1121
    // Predicated region
    $region22: #{a_call__.4} parent=1 // pred_check
      _
    $region23: #{a_call__.4} parent=1 // pred_check_branch
      %1125 = sbr.rel (0) target = $region25
    $region24: #{a_call__.4} parent=1 // pred_region
      _
    $region25: #{a_call__.4} parent=1 // pred_fallthru
      _
    // Predicated region
    $region26: #{a_call__.4} parent=1 // pred_check
      _
    $region27: #{a_call__.4} parent=1 // pred_check_branch
      %1127 = sbr.rel (0) target = $region29
    $region28: #{a_call__.4} parent=1 // pred_region
      _
    $region29: #{a_call__.4} parent=1 // pred_fallthru
      _
    %1128 = vsyncpa [#allocation3], 1

// kernel: a_call__.5
$region0: #{a_call__.5}
  #allocation0 [shape = 'u32[]', space=smem, size = 0x4, offset = 0x4, fixed_abs, tag = 'smem constant byte address 0x4 - core index']
  #allocation1 [shape = 'u32[144,128]{1,0:T(1,128)}', space=vmem, size = 0x12000, scoped, tag = 'internal scratch']
  %s0 = inlined_call_operand.vmem [shape: f32[2,6], index: 0, kind: input, shape index: {}]
  %s1 = inlined_call_operand.vmem [shape: f32[2,256], index: 1, kind: input, shape index: {}]
  %s2 = inlined_call_operand.vmem [shape: f32[2,256], index: 2, kind: input, shape index: {}]
  %s3 = inlined_call_operand.vmem [shape: f32[7,256], index: 3, kind: input, shape index: {}]
  %s4 = inlined_call_operand.vmem [shape: f32[4,256], index: 4, kind: output, shape index: {}]
  %s5 = sld [smem:[#allocation0]]
  $region30: #{a_call__.5} parent=0
    _
  %s7 = ssub.s32 1, %s5
  %s8 = scalar_select 0, %s7, %s5
  $region1: #{a_call__.5} parent=0
    #allocation2 [shape = 'u8[1024]{0}', space=smem, size = 0x400, scoped, tag = 'input window, operand 0, single buffered']
    #allocation3 [shape = 's32[1]{0}', space=sflag, size = 0x4, scoped, tag = 'scoped memory for a_call__.5']
    %9 = vsyncpa [#allocation3], 0
    // Predicated region
    $region2: #{a_call__.5} parent=1 // pred_check
      _
    $region3: #{a_call__.5} parent=1 // pred_check_branch
      %11 = sbr.rel (0) target = $region5
    $region4: #{a_call__.5} parent=1 // pred_region
      %s13 = ssub.s32 32, 32
      %14 = vsyncadd [#allocation3], %s13
      %s16 = sshll.u32 %s0, 4
      %s17 = int_to_ptr.vmem [resolvable:$true] %s16
      %19 = dma.vmem_to_smem %s17, 32, [#allocation2], [#allocation3]
    $region5: #{a_call__.5} parent=1 // pred_fallthru
      _
    // Predicated region
    $region6: #{a_call__.5} parent=1 // pred_check
      _
    $region7: #{a_call__.5} parent=1 // pred_check_branch
      %21 = sbr.rel (0) target = $region9
    $region8: #{a_call__.5} parent=1 // pred_region
      _
    $region9: #{a_call__.5} parent=1 // pred_fallthru
      _
    // Predicated region
    $region10: #{a_call__.5} parent=1 // pred_check
      _
    $region11: #{a_call__.5} parent=1 // pred_check_branch
      %23 = sbr.rel (0) target = $region13
    $region12: #{a_call__.5} parent=1 // pred_region
      _
    $region13: #{a_call__.5} parent=1 // pred_fallthru
      _
    // Predicated region
    $region14: #{a_call__.5} parent=1 // pred_check
      _
    $region15: #{a_call__.5} parent=1 // pred_check_branch
      %25 = sbr.rel (0) target = $region17
    $region16: #{a_call__.5} parent=1 // pred_region
      _
    $region17: #{a_call__.5} parent=1 // pred_fallthru
      _
    // Predicated region
    $region18: #{a_call__.5} parent=1 // pred_check
      _
    $region19: #{a_call__.5} parent=1 // pred_check_branch
      %27 = sbr.rel (0) target = $region21
    $region20: #{a_call__.5} parent=1 // pred_region
      %28 = dma.done [#allocation3], 32
    $region21: #{a_call__.5} parent=1 // pred_fallthru
      _
    %29 = sfence
    %v30 = vld [vmem:[%s3] ss:$8 sm:$0x3]
    %s31 = scalar_lea.vmem %s3, 1
    %v32 = vld [vmem:[%s31] ss:$8 sm:$0x3]
    %s33 = scalar_lea.vmem %s3, 2
    %v34 = vld [vmem:[%s33] ss:$8 sm:$0x3]
    %s35 = scalar_lea.vmem %s3, 3
    %v36 = vld [vmem:[%s35] ss:$8 sm:$0x3]
    %s37 = scalar_lea.vmem %s3, 4
    %v38 = vld [vmem:[%s37] ss:$8 sm:$0x3]
    %s39 = scalar_lea.vmem %s3, 5
    %v40 = vld [vmem:[%s39] ss:$8 sm:$0x3]
    %s41 = scalar_lea.vmem %s3, 6
    %v42 = vld [vmem:[%s41] ss:$8 sm:$0x3]
    %s43 = sld [smem:[#allocation2]]
    %s44 = sld [smem:[#allocation2 + $0x1]]
    %s45 = sld [smem:[#allocation2 + $0x2]]
    %s46 = sld [smem:[#allocation2 + $0x3]]
    %s47 = sld [smem:[#allocation2 + $0x4]]
    %s48 = sld [smem:[#allocation2 + $0x5]]
    %v49 = vstv %s45
    %v50 = vmul.f32 %v30, %v49
    %v51 = vstv %s46
    %v52 = vmul.f32 %v32, %v51
    %v53 = vadd.f32 %v50, %v52
    %v54 = vstv %s44
    %v55 = vmul.f32 %v54, %v53
    %v56 = vstv %s43
    %v57 = vadd.f32 %v56, %v55
    %v58 = vmul.f32 %v57, %v34
    %v59 = vadd.f32 %v58, %v36
    %v60 = vadd.f32 %v59, 0.10016742
    %v61 = vand.u32 2147483647, %v60
    %vm62 = vcmp.le.f32.partialorder %v61, 0.7853982
    %vm63 = vcmp.lt.s32.totalorder %v60, 0
    %v64 = vand.u32 %v60, 2139095040
    %v65 = vshrl.u32 %v64, 23
    %v66 = vsub.s32 %v65, 127
    %v67 = vand.u32 2147483647, %v60
    %v68 = vand.u32 %v67, 8388607
    %v69 = vor.u32 %v68, 8388608
    %v70 = vsub.s32 0, %v69
    %v71 = vadd.s32 %v66, 1
    %vm72 = vcmp.gt.s32.totalorder %v71, 0
    %v73 = vsel %vm72, %v71, 0
    %v74 = vshrl.u32 %v73, 5
    %v75 = vand.u32 %v73, 31
    %v76 = vsub.s32 32, %v75
    %v77 = vshrl.u32 683565275, %v76
    %v78 = vshll.u32 683565275, %v75
    %v79 = vshrl.u32 2475754826, %v76
    %v80 = vor.u32 %v78, %v79
    %v81 = vshll.u32 2475754826, %v75
    %v82 = vshrl.u32 2131351028, %v76
    %v83 = vor.u32 %v81, %v82
    %v84 = vshll.u32 2131351028, %v75
    %v85 = vshrl.u32 2102212464, %v76
    %v86 = vor.u32 %v84, %v85
    %v87 = vshll.u32 2102212464, %v75
    %v88 = vshrl.u32 920167782, %v76
    %v89 = vor.u32 %v87, %v88
    %v90 = vshll.u32 920167782, %v75
    %v91 = vshrl.u32 1326507024, %v76
    %v92 = vor.u32 %v90, %v91
    %vm93 = vcmp.lt.s32.totalorder %v74, 1
    %vm94 = vcmp.lt.s32.totalorder %v74, 2
    %vm95 = vcmp.lt.s32.totalorder %v74, 3
    %vm96 = vcmp.lt.s32.totalorder %v74, 4
    %v97 = vsel %vm93, %v77, %v80
    %v98 = vsel %vm96, %v86, 2102212464
    %v99 = vsel %vm95, %v83, %v98
    %v100 = vsel %vm94, %v97, %v99
    %v101 = vsel %vm93, %v80, %v83
    %v102 = vsel %vm96, %v89, 920167782
    %v103 = vsel %vm95, %v86, %v102
    %v104 = vsel %vm94, %v101, %v103
    %v105 = vsel %vm93, %v83, %v86
    %v106 = vsel %vm96, %v92, 1326507024
    %v107 = vsel %vm95, %v89, %v106
    %v108 = vsel %vm94, %v105, %v107
    %v109 = vshll.u32 %v69, 8
    %v110 = vmul.u32.u64.compose %v109, %v108
    %v111 = vextract.low.u32 %v110
    %v112 = vextract.high.u32 %v110
    %v113 = vmul.u32.u64.compose %v109, %v104
    %v114 = vextract.low.u32 %v113
    %v115 = vextract.high.u32 %v113
    %v116 = vmul.u32 %v109, %v100
    %v117 = vadd.s32 %v112, %v114
    %vm118 = vc.u32 %v112, %v114
    %v119 = vadd.s32 %v115, 1
    %v120 = vsel %vm118, %v119, %v115
    %v121 = vadd.s32 %v116, %v120
    %v122 = vadd.s32 %v121, 536870912
    %v123 = vshrl.u32 %v122, 30
    %v124 = vshll.u32 %v123, 30
    %v125 = vsub.s32 %v121, %v124
    %vm126 = vcmp.lt.s32.totalorder %v125, 0
    %v127 = vsub.s32 0, %v125
    %v128 = vsel %vm126, %v127, %v125
    %v129 = vclz %v128
    %v130 = vsub.s32 %v129, 2
    %vm131 = vcmp.gt.s32.totalorder 0, %v130
    %v132 = vsel %vm131, 0, %v130
    %v133 = vsub.s32 32, %v132
    %v134 = vshll.u32 %v125, %v132
    %v135 = vshrl.u32 %v117, %v133
    %v136 = vor.u32 %v134, %v135
    %v137 = vsub.s32 4294967266, %v132
    %v138 = vadd.s32 %v137, 127
    %v139 = vshll.u32 %v138, 23
    %v140 = vor.u32 4788187, %v139
    %v141 = vand.u32 2147483647, %v140
    %v143 = vcvt.s32.f32 %v136
    %v144 = vmul.f32 %v143, %v141
    %v145 = vxor.u32 %v144, 2147483648
    %v146 = vsel %vm63, %v145, %v144
    %v147 = vsub.s32 4, %v123
    %v148 = vsel %vm63, %v147, %v123
    %v149 = vsel %vm62, %v60, %v146
    %v150 = vsel %vm62, 0, %v148
    %v151 = vcosq.f32.pop %v149
    %v152 = vsinq.f32.pop %v149
    %vm153 = vweird.f32 %v60
    %v154 = vadd.s32 %v150, 3
    %v155 = vand.u32 %v154, 3
    %vm156 = vcmp.lt.s32.totalorder %v155, 2
    %vm157 = vcmp.eq.s32.totalorder %v155, 0
    %v158 = vxor.u32 %v152, 2147483648
    %v159 = vsel %vm157, %v151, %v158
    %vm160 = vcmp.eq.s32.totalorder %v155, 2
    %v161 = vxor.u32 %v151, 2147483648
    %v162 = vsel %vm160, %v161, %v152
    %v163 = vsel %vm156, %v159, %v162
    %v164 = vsel %vm153, nan, %v163
    %v165 = vsub.f32 0.0, %v164
    %v166 = vmul.f32 %v165, %v42
    %v167 = vstv %s47
    %v168 = vmul.f32 %v167, %v38
    %v169 = vstv %s48
    %v170 = vmul.f32 %v169, %v40
    %v171 = vadd.f32 %v168, %v170
    %v172 = vand.u32 2147483647, %v171
    %vm173 = vcmp.le.f32.partialorder %v172, 0.7853982
    %vm174 = vcmp.lt.s32.totalorder %v171, 0
    %v175 = vand.u32 %v171, 2139095040
    %v176 = vshrl.u32 %v175, 23
    %v177 = vsub.s32 %v176, 127
    %v178 = vand.u32 2147483647, %v171
    %v179 = vand.u32 %v178, 8388607
    %v180 = vor.u32 %v179, 8388608
    %v181 = vsub.s32 0, %v180
    %v182 = vadd.s32 %v177, 1
    %vm183 = vcmp.gt.s32.totalorder %v182, 0
    %v184 = vsel %vm183, %v182, 0
    %v185 = vshrl.u32 %v184, 5
    %v186 = vand.u32 %v184, 31
    %v187 = vsub.s32 32, %v186
    %v188 = vshrl.u32 683565275, %v187
    %v189 = vshll.u32 683565275, %v186
    %v190 = vshrl.u32 2475754826, %v187
    %v191 = vor.u32 %v189, %v190
    %v192 = vshll.u32 2475754826, %v186
    %v193 = vshrl.u32 2131351028, %v187
    %v194 = vor.u32 %v192, %v193
    %v195 = vshll.u32 2131351028, %v186
    %v196 = vshrl.u32 2102212464, %v187
    %v197 = vor.u32 %v195, %v196
    %v198 = vshll.u32 2102212464, %v186
    %v199 = vshrl.u32 920167782, %v187
    %v200 = vor.u32 %v198, %v199
    %v201 = vshll.u32 920167782, %v186
    %v202 = vshrl.u32 1326507024, %v187
    %v203 = vor.u32 %v201, %v202
    %vm204 = vcmp.lt.s32.totalorder %v185, 1
    %vm205 = vcmp.lt.s32.totalorder %v185, 2
    %vm206 = vcmp.lt.s32.totalorder %v185, 3
    %vm207 = vcmp.lt.s32.totalorder %v185, 4
    %v208 = vsel %vm204, %v188, %v191
    %v209 = vsel %vm207, %v197, 2102212464
    %v210 = vsel %vm206, %v194, %v209
    %v211 = vsel %vm205, %v208, %v210
    %v212 = vsel %vm204, %v191, %v194
    %v213 = vsel %vm207, %v200, 920167782
    %v214 = vsel %vm206, %v197, %v213
    %v215 = vsel %vm205, %v212, %v214
    %v216 = vsel %vm204, %v194, %v197
    %v217 = vsel %vm207, %v203, 1326507024
    %v218 = vsel %vm206, %v200, %v217
    %v219 = vsel %vm205, %v216, %v218
    %v220 = vshll.u32 %v180, 8
    %v221 = vmul.u32.u64.compose %v220, %v219
    %v222 = vextract.low.u32 %v221
    %v223 = vextract.high.u32 %v221
    %v224 = vmul.u32.u64.compose %v220, %v215
    %v225 = vextract.low.u32 %v224
    %v226 = vextract.high.u32 %v224
    %v227 = vmul.u32 %v220, %v211
    %v228 = vadd.s32 %v223, %v225
    %vm229 = vc.u32 %v223, %v225
    %v230 = vadd.s32 %v226, 1
    %v231 = vsel %vm229, %v230, %v226
    %v232 = vadd.s32 %v227, %v231
    %v233 = vadd.s32 %v232, 536870912
    %v234 = vshrl.u32 %v233, 30
    %v235 = vshll.u32 %v234, 30
    %v236 = vsub.s32 %v232, %v235
    %vm237 = vcmp.lt.s32.totalorder %v236, 0
    %v238 = vsub.s32 0, %v236
    %v239 = vsel %vm237, %v238, %v236
    %v240 = vclz %v239
    %v241 = vsub.s32 %v240, 2
    %vm242 = vcmp.gt.s32.totalorder 0, %v241
    %v243 = vsel %vm242, 0, %v241
    %v244 = vsub.s32 32, %v243
    %v245 = vshll.u32 %v236, %v243
    %v246 = vshrl.u32 %v228, %v244
    %v247 = vor.u32 %v245, %v246
    %v248 = vsub.s32 4294967266, %v243
    %v249 = vadd.s32 %v248, 127
    %v250 = vshll.u32 %v249, 23
    %v251 = vor.u32 4788187, %v250
    %v252 = vand.u32 2147483647, %v251
    %v254 = vcvt.s32.f32 %v247
    %v255 = vmul.f32 %v254, %v252
    %v256 = vxor.u32 %v255, 2147483648
    %v257 = vsel %vm174, %v256, %v255
    %v258 = vsub.s32 4, %v234
    %v259 = vsel %vm174, %v258, %v234
    %v260 = vsel %vm173, %v171, %v257
    %v261 = vsel %vm173, 0, %v259
    %v262 = vcosq.f32.pop %v260
    %v263 = vsinq.f32.pop %v260
    %vm264 = vweird.f32 %v171
    %v265 = vand.u32 %v261, 3
    %vm266 = vcmp.lt.s32.totalorder %v265, 2
    %vm267 = vcmp.eq.s32.totalorder %v265, 0
    %v268 = vxor.u32 %v263, 2147483648
    %v269 = vsel %vm267, %v262, %v268
    %vm270 = vcmp.eq.s32.totalorder %v265, 2
    %v271 = vxor.u32 %v262, 2147483648
    %v272 = vsel %vm270, %v271, %v263
    %v273 = vsel %vm266, %v269, %v272
    %v274 = vsel %vm264, nan, %v273
    %v275 = vand.u32 2147483647, %v171
    %vm276 = vcmp.le.f32.partialorder %v275, 0.7853982
    %vm277 = vcmp.lt.s32.totalorder %v171, 0
    %v278 = vand.u32 %v171, 2139095040
    %v279 = vshrl.u32 %v278, 23
    %v280 = vsub.s32 %v279, 127
    %v281 = vand.u32 2147483647, %v171
    %v282 = vand.u32 %v281, 8388607
    %v283 = vor.u32 %v282, 8388608
    %v284 = vsub.s32 0, %v283
    %v285 = vadd.s32 %v280, 1
    %vm286 = vcmp.gt.s32.totalorder %v285, 0
    %v287 = vsel %vm286, %v285, 0
    %v288 = vshrl.u32 %v287, 5
    %v289 = vand.u32 %v287, 31
    %v290 = vsub.s32 32, %v289
    %v291 = vshrl.u32 683565275, %v290
    %v292 = vshll.u32 683565275, %v289
    %v293 = vshrl.u32 2475754826, %v290
    %v294 = vor.u32 %v292, %v293
    %v295 = vshll.u32 2475754826, %v289
    %v296 = vshrl.u32 2131351028, %v290
    %v297 = vor.u32 %v295, %v296
    %v298 = vshll.u32 2131351028, %v289
    %v299 = vshrl.u32 2102212464, %v290
    %v300 = vor.u32 %v298, %v299
    %v301 = vshll.u32 2102212464, %v289
    %v302 = vshrl.u32 920167782, %v290
    %v303 = vor.u32 %v301, %v302
    %v304 = vshll.u32 920167782, %v289
    %v305 = vshrl.u32 1326507024, %v290
    %v306 = vor.u32 %v304, %v305
    %vm307 = vcmp.lt.s32.totalorder %v288, 1
    %vm308 = vcmp.lt.s32.totalorder %v288, 2
    %vm309 = vcmp.lt.s32.totalorder %v288, 3
    %vm310 = vcmp.lt.s32.totalorder %v288, 4
    %v311 = vsel %vm307, %v291, %v294
    %v312 = vsel %vm310, %v300, 2102212464
    %v313 = vsel %vm309, %v297, %v312
    %v314 = vsel %vm308, %v311, %v313
    %v315 = vsel %vm307, %v294, %v297
    %v316 = vsel %vm310, %v303, 920167782
    %v317 = vsel %vm309, %v300, %v316
    %v318 = vsel %vm308, %v315, %v317
    %v319 = vsel %vm307, %v297, %v300
    %v320 = vsel %vm310, %v306, 1326507024
    %v321 = vsel %vm309, %v303, %v320
    %v322 = vsel %vm308, %v319, %v321
    %v323 = vshll.u32 %v283, 8
    %v324 = vmul.u32.u64.compose %v323, %v322
    %v325 = vextract.low.u32 %v324
    %v326 = vextract.high.u32 %v324
    %v327 = vmul.u32.u64.compose %v323, %v318
    %v328 = vextract.low.u32 %v327
    %v329 = vextract.high.u32 %v327
    %v330 = vmul.u32 %v323, %v314
    %v331 = vadd.s32 %v326, %v328
    %vm332 = vc.u32 %v326, %v328
    %v333 = vadd.s32 %v329, 1
    %v334 = vsel %vm332, %v333, %v329
    %v335 = vadd.s32 %v330, %v334
    %v336 = vadd.s32 %v335, 536870912
    %v337 = vshrl.u32 %v336, 30
    %v338 = vshll.u32 %v337, 30
    %v339 = vsub.s32 %v335, %v338
    %vm340 = vcmp.lt.s32.totalorder %v339, 0
    %v341 = vsub.s32 0, %v339
    %v342 = vsel %vm340, %v341, %v339
    %v343 = vclz %v342
    %v344 = vsub.s32 %v343, 2
    %vm345 = vcmp.gt.s32.totalorder 0, %v344
    %v346 = vsel %vm345, 0, %v344
    %v347 = vsub.s32 32, %v346
    %v348 = vshll.u32 %v339, %v346
    %v349 = vshrl.u32 %v331, %v347
    %v350 = vor.u32 %v348, %v349
    %v351 = vsub.s32 4294967266, %v346
    %v352 = vadd.s32 %v351, 127
    %v353 = vshll.u32 %v352, 23
    %v354 = vor.u32 4788187, %v353
    %v355 = vand.u32 2147483647, %v354
    %v357 = vcvt.s32.f32 %v350
    %v358 = vmul.f32 %v357, %v355
    %v359 = vxor.u32 %v358, 2147483648
    %v360 = vsel %vm277, %v359, %v358
    %v361 = vsub.s32 4, %v337
    %v362 = vsel %vm277, %v361, %v337
    %v363 = vsel %vm276, %v171, %v360
    %v364 = vsel %vm276, 0, %v362
    %v365 = vcosq.f32.pop %v363
    %v366 = vsinq.f32.pop %v363
    %vm367 = vweird.f32 %v171
    %v368 = vadd.s32 %v364, 3
    %v369 = vand.u32 %v368, 3
    %vm370 = vcmp.lt.s32.totalorder %v369, 2
    %vm371 = vcmp.eq.s32.totalorder %v369, 0
    %v372 = vxor.u32 %v366, 2147483648
    %v373 = vsel %vm371, %v365, %v372
    %vm374 = vcmp.eq.s32.totalorder %v369, 2
    %v375 = vxor.u32 %v365, 2147483648
    %v376 = vsel %vm374, %v375, %v366
    %v377 = vsel %vm370, %v373, %v376
    %v378 = vsel %vm367, nan, %v377
    %v379 = vld [vmem:[%s1] ss:$2 sm:$0x3]
    %v380 = vmul.f32 %v379, %v166
    %v381 = vld [vmem:[%s2] ss:$2 sm:$0x3]
    %v382 = vmul.f32 %v381, %v166
    %v383 = vmul.f32 %v380, %v274
    %v384 = vmul.f32 %v382, %v378
    %v385 = vsub.f32 %v383, %v384
    %v386 = vlaneseq
    %vm387 = vcmp.ge.s32.totalorder %v386, 0
    %vm388 = vcmp.lt.s32.totalorder %v386, 256
    %vm389 = vmand %vm387, %vm388
    %390 = vst.msk [vmem:[%s4] ss:$4 sm:$0x3] %vm389, %v385
    %v391 = vmul.f32 %v380, %v378
    %v392 = vmul.f32 %v382, %v274
    %v393 = vadd.f32 %v391, %v392
    %s394 = scalar_lea.vmem %s4, 1
    %395 = vst.msk [vmem:[%s394] ss:$4 sm:$0x3] %vm389, %v393
    %s396 = sld [smem:[#allocation2 + $0x80]]
    %s397 = sld [smem:[#allocation2 + $0x81]]
    %s398 = sld [smem:[#allocation2 + $0x82]]
    %s399 = sld [smem:[#allocation2 + $0x83]]
    %s400 = sld [smem:[#allocation2 + $0x84]]
    %s401 = sld [smem:[#allocation2 + $0x85]]
    %v402 = vstv %s398
    %v403 = vmul.f32 %v30, %v402
    %v404 = vstv %s399
    %v405 = vmul.f32 %v32, %v404
    %v406 = vadd.f32 %v403, %v405
    %v407 = vstv %s397
    %v408 = vmul.f32 %v407, %v406
    %v409 = vstv %s396
    %v410 = vadd.f32 %v409, %v408
    %v411 = vmul.f32 %v410, %v34
    %v412 = vadd.f32 %v411, %v36
    %v413 = vadd.f32 %v412, 0.10016742
    %v414 = vand.u32 2147483647, %v413
    %vm415 = vcmp.le.f32.partialorder %v414, 0.7853982
    %vm416 = vcmp.lt.s32.totalorder %v413, 0
    %v417 = vand.u32 %v413, 2139095040
    %v418 = vshrl.u32 %v417, 23
    %v419 = vsub.s32 %v418, 127
    %v420 = vand.u32 2147483647, %v413
    %v421 = vand.u32 %v420, 8388607
    %v422 = vor.u32 %v421, 8388608
    %v423 = vsub.s32 0, %v422
    %v424 = vadd.s32 %v419, 1
    %vm425 = vcmp.gt.s32.totalorder %v424, 0
    %v426 = vsel %vm425, %v424, 0
    %v427 = vshrl.u32 %v426, 5
    %v428 = vand.u32 %v426, 31
    %v429 = vsub.s32 32, %v428
    %v430 = vshrl.u32 683565275, %v429
    %v431 = vshll.u32 683565275, %v428
    %v432 = vshrl.u32 2475754826, %v429
    %v433 = vor.u32 %v431, %v432
    %v434 = vshll.u32 2475754826, %v428
    %v435 = vshrl.u32 2131351028, %v429
    %v436 = vor.u32 %v434, %v435
    %v437 = vshll.u32 2131351028, %v428
    %v438 = vshrl.u32 2102212464, %v429
    %v439 = vor.u32 %v437, %v438
    %v440 = vshll.u32 2102212464, %v428
    %v441 = vshrl.u32 920167782, %v429
    %v442 = vor.u32 %v440, %v441
    %v443 = vshll.u32 920167782, %v428
    %v444 = vshrl.u32 1326507024, %v429
    %v445 = vor.u32 %v443, %v444
    %vm446 = vcmp.lt.s32.totalorder %v427, 1
    %vm447 = vcmp.lt.s32.totalorder %v427, 2
    %vm448 = vcmp.lt.s32.totalorder %v427, 3
    %vm449 = vcmp.lt.s32.totalorder %v427, 4
    %v450 = vsel %vm446, %v430, %v433
    %v451 = vsel %vm449, %v439, 2102212464
    %v452 = vsel %vm448, %v436, %v451
    %v453 = vsel %vm447, %v450, %v452
    %v454 = vsel %vm446, %v433, %v436
    %v455 = vsel %vm449, %v442, 920167782
    %v456 = vsel %vm448, %v439, %v455
    %v457 = vsel %vm447, %v454, %v456
    %v458 = vsel %vm446, %v436, %v439
    %v459 = vsel %vm449, %v445, 1326507024
    %v460 = vsel %vm448, %v442, %v459
    %v461 = vsel %vm447, %v458, %v460
    %v462 = vshll.u32 %v422, 8
    %v463 = vmul.u32.u64.compose %v462, %v461
    %v464 = vextract.low.u32 %v463
    %v465 = vextract.high.u32 %v463
    %v466 = vmul.u32.u64.compose %v462, %v457
    %v467 = vextract.low.u32 %v466
    %v468 = vextract.high.u32 %v466
    %v469 = vmul.u32 %v462, %v453
    %v470 = vadd.s32 %v465, %v467
    %vm471 = vc.u32 %v465, %v467
    %v472 = vadd.s32 %v468, 1
    %v473 = vsel %vm471, %v472, %v468
    %v474 = vadd.s32 %v469, %v473
    %v475 = vadd.s32 %v474, 536870912
    %v476 = vshrl.u32 %v475, 30
    %v477 = vshll.u32 %v476, 30
    %v478 = vsub.s32 %v474, %v477
    %vm479 = vcmp.lt.s32.totalorder %v478, 0
    %v480 = vsub.s32 0, %v478
    %v481 = vsel %vm479, %v480, %v478
    %v482 = vclz %v481
    %v483 = vsub.s32 %v482, 2
    %vm484 = vcmp.gt.s32.totalorder 0, %v483
    %v485 = vsel %vm484, 0, %v483
    %v486 = vsub.s32 32, %v485
    %v487 = vshll.u32 %v478, %v485
    %v488 = vshrl.u32 %v470, %v486
    %v489 = vor.u32 %v487, %v488
    %v490 = vsub.s32 4294967266, %v485
    %v491 = vadd.s32 %v490, 127
    %v492 = vshll.u32 %v491, 23
    %v493 = vor.u32 4788187, %v492
    %v494 = vand.u32 2147483647, %v493
    %v496 = vcvt.s32.f32 %v489
    %v497 = vmul.f32 %v496, %v494
    %v498 = vxor.u32 %v497, 2147483648
    %v499 = vsel %vm416, %v498, %v497
    %v500 = vsub.s32 4, %v476
    %v501 = vsel %vm416, %v500, %v476
    %v502 = vsel %vm415, %v413, %v499
    %v503 = vsel %vm415, 0, %v501
    %v504 = vcosq.f32.pop %v502
    %v505 = vsinq.f32.pop %v502
    %vm506 = vweird.f32 %v413
    %v507 = vadd.s32 %v503, 3
    %v508 = vand.u32 %v507, 3
    %vm509 = vcmp.lt.s32.totalorder %v508, 2
    %vm510 = vcmp.eq.s32.totalorder %v508, 0
    %v511 = vxor.u32 %v505, 2147483648
    %v512 = vsel %vm510, %v504, %v511
    %vm513 = vcmp.eq.s32.totalorder %v508, 2
    %v514 = vxor.u32 %v504, 2147483648
    %v515 = vsel %vm513, %v514, %v505
    %v516 = vsel %vm509, %v512, %v515
    %v517 = vsel %vm506, nan, %v516
    %v518 = vsub.f32 0.0, %v517
    %v519 = vmul.f32 %v518, %v42
    %v520 = vstv %s400
    %v521 = vmul.f32 %v520, %v38
    %v522 = vstv %s401
    %v523 = vmul.f32 %v522, %v40
    %v524 = vadd.f32 %v521, %v523
    %v525 = vand.u32 2147483647, %v524
    %vm526 = vcmp.le.f32.partialorder %v525, 0.7853982
    %vm527 = vcmp.lt.s32.totalorder %v524, 0
    %v528 = vand.u32 %v524, 2139095040
    %v529 = vshrl.u32 %v528, 23
    %v530 = vsub.s32 %v529, 127
    %v531 = vand.u32 2147483647, %v524
    %v532 = vand.u32 %v531, 8388607
    %v533 = vor.u32 %v532, 8388608
    %v534 = vsub.s32 0, %v533
    %v535 = vadd.s32 %v530, 1
    %vm536 = vcmp.gt.s32.totalorder %v535, 0
    %v537 = vsel %vm536, %v535, 0
    %v538 = vshrl.u32 %v537, 5
    %v539 = vand.u32 %v537, 31
    %v540 = vsub.s32 32, %v539
    %v541 = vshrl.u32 683565275, %v540
    %v542 = vshll.u32 683565275, %v539
    %v543 = vshrl.u32 2475754826, %v540
    %v544 = vor.u32 %v542, %v543
    %v545 = vshll.u32 2475754826, %v539
    %v546 = vshrl.u32 2131351028, %v540
    %v547 = vor.u32 %v545, %v546
    %v548 = vshll.u32 2131351028, %v539
    %v549 = vshrl.u32 2102212464, %v540
    %v550 = vor.u32 %v548, %v549
    %v551 = vshll.u32 2102212464, %v539
    %v552 = vshrl.u32 920167782, %v540
    %v553 = vor.u32 %v551, %v552
    %v554 = vshll.u32 920167782, %v539
    %v555 = vshrl.u32 1326507024, %v540
    %v556 = vor.u32 %v554, %v555
    %vm557 = vcmp.lt.s32.totalorder %v538, 1
    %vm558 = vcmp.lt.s32.totalorder %v538, 2
    %vm559 = vcmp.lt.s32.totalorder %v538, 3
    %vm560 = vcmp.lt.s32.totalorder %v538, 4
    %v561 = vsel %vm557, %v541, %v544
    %v562 = vsel %vm560, %v550, 2102212464
    %v563 = vsel %vm559, %v547, %v562
    %v564 = vsel %vm558, %v561, %v563
    %v565 = vsel %vm557, %v544, %v547
    %v566 = vsel %vm560, %v553, 920167782
    %v567 = vsel %vm559, %v550, %v566
    %v568 = vsel %vm558, %v565, %v567
    %v569 = vsel %vm557, %v547, %v550
    %v570 = vsel %vm560, %v556, 1326507024
    %v571 = vsel %vm559, %v553, %v570
    %v572 = vsel %vm558, %v569, %v571
    %v573 = vshll.u32 %v533, 8
    %v574 = vmul.u32.u64.compose %v573, %v572
    %v575 = vextract.low.u32 %v574
    %v576 = vextract.high.u32 %v574
    %v577 = vmul.u32.u64.compose %v573, %v568
    %v578 = vextract.low.u32 %v577
    %v579 = vextract.high.u32 %v577
    %v580 = vmul.u32 %v573, %v564
    %v581 = vadd.s32 %v576, %v578
    %vm582 = vc.u32 %v576, %v578
    %v583 = vadd.s32 %v579, 1
    %v584 = vsel %vm582, %v583, %v579
    %v585 = vadd.s32 %v580, %v584
    %v586 = vadd.s32 %v585, 536870912
    %v587 = vshrl.u32 %v586, 30
    %v588 = vshll.u32 %v587, 30
    %v589 = vsub.s32 %v585, %v588
    %vm590 = vcmp.lt.s32.totalorder %v589, 0
    %v591 = vsub.s32 0, %v589
    %v592 = vsel %vm590, %v591, %v589
    %v593 = vclz %v592
    %v594 = vsub.s32 %v593, 2
    %vm595 = vcmp.gt.s32.totalorder 0, %v594
    %v596 = vsel %vm595, 0, %v594
    %v597 = vsub.s32 32, %v596
    %v598 = vshll.u32 %v589, %v596
    %v599 = vshrl.u32 %v581, %v597
    %v600 = vor.u32 %v598, %v599
    %v601 = vsub.s32 4294967266, %v596
    %v602 = vadd.s32 %v601, 127
    %v603 = vshll.u32 %v602, 23
    %v604 = vor.u32 4788187, %v603
    %v605 = vand.u32 2147483647, %v604
    %v607 = vcvt.s32.f32 %v600
    %v608 = vmul.f32 %v607, %v605
    %v609 = vxor.u32 %v608, 2147483648
    %v610 = vsel %vm527, %v609, %v608
    %v611 = vsub.s32 4, %v587
    %v612 = vsel %vm527, %v611, %v587
    %v613 = vsel %vm526, %v524, %v610
    %v614 = vsel %vm526, 0, %v612
    %v615 = vcosq.f32.pop %v613
    %v616 = vsinq.f32.pop %v613
    %vm617 = vweird.f32 %v524
    %v618 = vand.u32 %v614, 3
    %vm619 = vcmp.lt.s32.totalorder %v618, 2
    %vm620 = vcmp.eq.s32.totalorder %v618, 0
    %v621 = vxor.u32 %v616, 2147483648
    %v622 = vsel %vm620, %v615, %v621
    %vm623 = vcmp.eq.s32.totalorder %v618, 2
    %v624 = vxor.u32 %v615, 2147483648
    %v625 = vsel %vm623, %v624, %v616
    %v626 = vsel %vm619, %v622, %v625
    %v627 = vsel %vm617, nan, %v626
    %v628 = vand.u32 2147483647, %v524
    %vm629 = vcmp.le.f32.partialorder %v628, 0.7853982
    %vm630 = vcmp.lt.s32.totalorder %v524, 0
    %v631 = vand.u32 %v524, 2139095040
    %v632 = vshrl.u32 %v631, 23
    %v633 = vsub.s32 %v632, 127
    %v634 = vand.u32 2147483647, %v524
    %v635 = vand.u32 %v634, 8388607
    %v636 = vor.u32 %v635, 8388608
    %v637 = vsub.s32 0, %v636
    %v638 = vadd.s32 %v633, 1
    %vm639 = vcmp.gt.s32.totalorder %v638, 0
    %v640 = vsel %vm639, %v638, 0
    %v641 = vshrl.u32 %v640, 5
    %v642 = vand.u32 %v640, 31
    %v643 = vsub.s32 32, %v642
    %v644 = vshrl.u32 683565275, %v643
    %v645 = vshll.u32 683565275, %v642
    %v646 = vshrl.u32 2475754826, %v643
    %v647 = vor.u32 %v645, %v646
    %v648 = vshll.u32 2475754826, %v642
    %v649 = vshrl.u32 2131351028, %v643
    %v650 = vor.u32 %v648, %v649
    %v651 = vshll.u32 2131351028, %v642
    %v652 = vshrl.u32 2102212464, %v643
    %v653 = vor.u32 %v651, %v652
    %v654 = vshll.u32 2102212464, %v642
    %v655 = vshrl.u32 920167782, %v643
    %v656 = vor.u32 %v654, %v655
    %v657 = vshll.u32 920167782, %v642
    %v658 = vshrl.u32 1326507024, %v643
    %v659 = vor.u32 %v657, %v658
    %vm660 = vcmp.lt.s32.totalorder %v641, 1
    %vm661 = vcmp.lt.s32.totalorder %v641, 2
    %vm662 = vcmp.lt.s32.totalorder %v641, 3
    %vm663 = vcmp.lt.s32.totalorder %v641, 4
    %v664 = vsel %vm660, %v644, %v647
    %v665 = vsel %vm663, %v653, 2102212464
    %v666 = vsel %vm662, %v650, %v665
    %v667 = vsel %vm661, %v664, %v666
    %v668 = vsel %vm660, %v647, %v650
    %v669 = vsel %vm663, %v656, 920167782
    %v670 = vsel %vm662, %v653, %v669
    %v671 = vsel %vm661, %v668, %v670
    %v672 = vsel %vm660, %v650, %v653
    %v673 = vsel %vm663, %v659, 1326507024
    %v674 = vsel %vm662, %v656, %v673
    %v675 = vsel %vm661, %v672, %v674
    %v676 = vshll.u32 %v636, 8
    %v677 = vmul.u32.u64.compose %v676, %v675
    %v678 = vextract.low.u32 %v677
    %v679 = vextract.high.u32 %v677
    %v680 = vmul.u32.u64.compose %v676, %v671
    %v681 = vextract.low.u32 %v680
    %v682 = vextract.high.u32 %v680
    %v683 = vmul.u32 %v676, %v667
    %v684 = vadd.s32 %v679, %v681
    %vm685 = vc.u32 %v679, %v681
    %v686 = vadd.s32 %v682, 1
    %v687 = vsel %vm685, %v686, %v682
    %v688 = vadd.s32 %v683, %v687
    %v689 = vadd.s32 %v688, 536870912
    %v690 = vshrl.u32 %v689, 30
    %v691 = vshll.u32 %v690, 30
    %v692 = vsub.s32 %v688, %v691
    %vm693 = vcmp.lt.s32.totalorder %v692, 0
    %v694 = vsub.s32 0, %v692
    %v695 = vsel %vm693, %v694, %v692
    %v696 = vclz %v695
    %v697 = vsub.s32 %v696, 2
    %vm698 = vcmp.gt.s32.totalorder 0, %v697
    %v699 = vsel %vm698, 0, %v697
    %v700 = vsub.s32 32, %v699
    %v701 = vshll.u32 %v692, %v699
    %v702 = vshrl.u32 %v684, %v700
    %v703 = vor.u32 %v701, %v702
    %v704 = vsub.s32 4294967266, %v699
    %v705 = vadd.s32 %v704, 127
    %v706 = vshll.u32 %v705, 23
    %v707 = vor.u32 4788187, %v706
    %v708 = vand.u32 2147483647, %v707
    %v710 = vcvt.s32.f32 %v703
    %v711 = vmul.f32 %v710, %v708
    %v712 = vxor.u32 %v711, 2147483648
    %v713 = vsel %vm630, %v712, %v711
    %v714 = vsub.s32 4, %v690
    %v715 = vsel %vm630, %v714, %v690
    %v716 = vsel %vm629, %v524, %v713
    %v717 = vsel %vm629, 0, %v715
    %v718 = vcosq.f32.pop %v716
    %v719 = vsinq.f32.pop %v716
    %vm720 = vweird.f32 %v524
    %v721 = vadd.s32 %v717, 3
    %v722 = vand.u32 %v721, 3
    %vm723 = vcmp.lt.s32.totalorder %v722, 2
    %vm724 = vcmp.eq.s32.totalorder %v722, 0
    %v725 = vxor.u32 %v719, 2147483648
    %v726 = vsel %vm724, %v718, %v725
    %vm727 = vcmp.eq.s32.totalorder %v722, 2
    %v728 = vxor.u32 %v718, 2147483648
    %v729 = vsel %vm727, %v728, %v719
    %v730 = vsel %vm723, %v726, %v729
    %v731 = vsel %vm720, nan, %v730
    %s732 = scalar_lea.vmem %s1, 1
    %v733 = vld [vmem:[%s732] ss:$2 sm:$0x3]
    %v734 = vmul.f32 %v733, %v519
    %s735 = scalar_lea.vmem %s2, 1
    %v736 = vld [vmem:[%s735] ss:$2 sm:$0x3]
    %v737 = vmul.f32 %v736, %v519
    %v738 = vmul.f32 %v734, %v627
    %v739 = vmul.f32 %v737, %v731
    %v740 = vsub.f32 %v738, %v739
    %s741 = scalar_lea.vmem %s4, 2
    %742 = vst.msk [vmem:[%s741] ss:$4 sm:$0x3] %vm389, %v740
    %v743 = vmul.f32 %v734, %v731
    %v744 = vmul.f32 %v737, %v627
    %v745 = vadd.f32 %v743, %v744
    %s746 = scalar_lea.vmem %s4, 3
    %747 = vst.msk [vmem:[%s746] ss:$4 sm:$0x3] %vm389, %v745
    // Predicated region
    $region22: #{a_call__.5} parent=1 // pred_check
      _
    $region23: #{a_call__.5} parent=1 // pred_check_branch
      %749 = sbr.rel (0) target = $region25
    $region24: #{a_call__.5} parent=1 // pred_region
      _
    $region25: #{a_call__.5} parent=1 // pred_fallthru
      _
    // Predicated region
    $region26: #{a_call__.5} parent=1 // pred_check
      _
    $region27: #{a_call__.5} parent=1 // pred_check_branch
      %751 = sbr.rel (0) target = $region29
    $region28: #{a_call__.5} parent=1 // pred_region
      _
    $region29: #{a_call__.5} parent=1 // pred_fallthru
      _
    %752 = vsyncpa [#allocation3], 1

</llo_original>
